<compile_context>
chip_gen: v5e
topology: v5e:2x2
jax: 0.10.0
libtpu: 0.0.40
codegen_flags: <defaults>
</compile_context>

<pallas_src>
import jax
import jax.numpy as jnp
from jax.experimental import pallas as pl
from jax.experimental.pallas import tpu as pltpu


def make_spatial_gate_kernel(C, H, W, K, Bt):
    HW = H * W
    P = (K - 1) // 2
    Hp = H + 2 * P
    KK = K * K

    def kernel(x_ref, w_ref, b_ref, o_ref, pad_ref, sf_ref):
        # x_ref  : (Bt, C, HW)          VMEM  lane-dense input block
        # w_ref  : (2*K*K,)             SMEM  BN-folded conv weights (ci*K*K+kh*K+kw)
        # b_ref  : (1,)                 SMEM  folded BN bias
        # o_ref  : (Bt, C, HW)          VMEM  output = x * sigmoid(conv(ChannelPool(x)))
        # pad_ref: (K, 2, Bt, Hp, W)    VMEM  scratch: K column-shifted, zero-padded
        #                                     copies of the (max, mean) pooled maps
        # sf_ref : (Bt, 1, HW)          VMEM  scratch: flattened sigmoid scale map
        xf = x_ref[...].astype(jnp.float32)               # (Bt, C, HW)

        # --- ChannelPool: max & mean over C, in the lane-dense flat layout -------
        mx = jnp.max(xf, axis=1)                          # (Bt, HW)
        mn = jnp.mean(xf, axis=1)                         # (Bt, HW)

        # --- Build zero-padded 2-D pooled maps + K column-shifted copies ---------
        # (one small relayout of the pooled maps; rows -> sublanes, cols -> lanes)
        pad_ref[...] = jnp.zeros(pad_ref.shape, jnp.float32)
        for h in range(H):
            pad_ref[P, 0, :, P + h, :] = mx[:, h * W:(h + 1) * W]
            pad_ref[P, 1, :, P + h, :] = mn[:, h * W:(h + 1) * W]
        cen = pad_ref[P, :, :, P:P + H, :]                # (2, Bt, H, W)
        for kw in range(K):
            dw = kw - P
            if dw > 0:                                    # shift left by dw
                pad_ref[kw, :, :, P:P + H, 0:W - dw] = cen[:, :, :, dw:W]
            elif dw < 0:                                  # shift right by -dw
                pad_ref[kw, :, :, P:P + H, -dw:W] = cen[:, :, :, 0:W + dw]

        # --- 7x7 conv: 49 taps, each one VMEM load (sublane offset) + 2 FMAs -----
        acc = jnp.zeros((Bt, H, W), jnp.float32) + b_ref[0]
        for kh in range(K):
            for kw in range(K):
                t = pad_ref[kw, :, :, kh:kh + H, :]       # (2, Bt, H, W)
                acc = (acc
                       + w_ref[kh * K + kw] * t[0]        # max-pool tap
                       + w_ref[KK + kh * K + kw] * t[1])  # mean-pool tap

        scale = jax.nn.sigmoid(acc)                       # (Bt, H, W)

        # --- relayout the scale map back to the flat lane-dense layout, once -----
        for h in range(H):
            sf_ref[:, 0, h * W:(h + 1) * W] = scale[:, h, :]

        # --- x * scale (broadcast over C), full-lane unmasked store --------------
        o_ref[...] = (x_ref[...].astype(jnp.float32) * sf_ref[...]).astype(o_ref.dtype)

    return kernel


def _pick_block_batch(B):
    """Largest Bt <= 8 dividing B that still leaves >= 2 grid steps (v7x has 2 TCs)."""
    candidates = [bt for bt in range(1, min(8, B) + 1)
                  if B % bt == 0 and B // bt >= 2]
    return max(candidates) if candidates else B


def spatial_gate(x, conv_w, gamma, beta, run_mean, run_var, *, eps=1e-5):
    """SpatialGate forward. x: (B,C,H,W); conv_w: (1,2,K,K) (PyTorch OIHW)."""
    B, C, H, W = x.shape
    _, Cin, K, K2 = conv_w.shape
    assert Cin == 2 and K == K2
    P = (K - 1) // 2
    HW = H * W
    assert HW % 128 == 0, "lane-dense path requires H*W to be a multiple of 128"
    assert min(H, W) > P, "spatial dims must exceed the conv padding"

    # Fold inference-mode BatchNorm into the conv weights and a scalar bias.
    s = (gamma / jnp.sqrt(run_var + eps)).astype(jnp.float32)          # (1,)
    bias = (beta - run_mean * s).astype(jnp.float32)                   # (1,)
    w_eff = (conv_w.astype(jnp.float32) * s[:, None, None, None]).reshape(-1)

    bt = _pick_block_batch(B)
    grid = (B // bt,)
    x_flat = x.reshape(B, C, HW)                                       # contiguous view

    out = pl.pallas_call(
        make_spatial_gate_kernel(C, H, W, K, bt),
        out_shape=jax.ShapeDtypeStruct((B, C, HW), x.dtype),
        grid=grid,
        in_specs=[
            pl.BlockSpec((bt, C, HW), lambda b: (b, 0, 0)),
            pl.BlockSpec(memory_space=pltpu.MemorySpace.SMEM),
            pl.BlockSpec(memory_space=pltpu.MemorySpace.SMEM),
        ],
        out_specs=pl.BlockSpec((bt, C, HW), lambda b: (b, 0, 0)),
        scratch_shapes=[
            pltpu.VMEM((K, 2, bt, H + 2 * P, W), jnp.float32),
            pltpu.VMEM((bt, 1, HW), jnp.float32),
        ],
        compiler_params=pltpu.CompilerParams(dimension_semantics=("parallel",)),
    )(x_flat, w_eff, bias)
    return out.reshape(B, C, H, W)


# ----------------------------------------------------------------------------
# Pure-JAX reference (for correctness check)
# ----------------------------------------------------------------------------
def ref_spatial_gate(x, conv_w, gamma, beta, run_mean, run_var, eps=1e-5):
    mx = jnp.max(x, axis=1, keepdims=True)
    mn = jnp.mean(x, axis=1, keepdims=True)
    xc = jnp.concatenate([mx, mn], axis=1)                  # ChannelPool -> (B,2,H,W)
    pad = (conv_w.shape[-1] - 1) // 2
    y = jax.lax.conv_general_dilated(
        xc, conv_w, (1, 1), [(pad, pad), (pad, pad)],
        dimension_numbers=('NCHW', 'OIHW', 'NCHW'))         # (B,1,H,W)
    s = gamma / jnp.sqrt(run_var + eps)
    b = beta - run_mean * s
    y = y * s[None, :, None, None] + b[None, :, None, None]
    return x * jax.nn.sigmoid(y)


if __name__ == "__main__":
    B, C, H, W = 2, 4, 16, 16
    key = jax.random.PRNGKey(0)
    kx, kw, kg, kb, km, kv = jax.random.split(key, 6)
    x = jax.random.normal(kx, (B, C, H, W), jnp.float32)
    conv_w = 0.3 * jax.random.normal(kw, (1, 2, 7, 7), jnp.float32)  # Conv2d(2,1,7,bias=False)
    gamma = 1.0 + 0.1 * jax.random.normal(kg, (1,), jnp.float32)
    beta = 0.1 * jax.random.normal(kb, (1,), jnp.float32)
    run_mean = 0.1 * jax.random.normal(km, (1,), jnp.float32)
    run_var = 1.0 + 0.1 * jnp.abs(jax.random.normal(kv, (1,), jnp.float32))

    out = jax.block_until_ready(
        spatial_gate(x, conv_w, gamma, beta, run_mean, run_var))
    assert out.shape == (B, C, H, W), out.shape
    assert out.dtype == x.dtype

    ref = ref_spatial_gate(x, conv_w, gamma, beta, run_mean, run_var)
    err = float(jnp.max(jnp.abs(out - ref)))
    assert jnp.allclose(out, ref, atol=2e-4, rtol=2e-4), f"max abs err {err}"

    print("KERNEL_OK")
</pallas_src>

<mosaic_0001>
module attributes {stable_mosaic.version = 11 : i64} {
  func.func @kernel(%arg0: i32, %arg1: memref<1x4x256xf32, #tpu.memory_space<vmem>>, %arg2: memref<98xf32, #tpu.memory_space<smem>>, %arg3: memref<1xf32, #tpu.memory_space<smem>>, %arg4: memref<1x4x256xf32, #tpu.memory_space<vmem>>, %arg5: memref<7x2x1x22x16xf32, #tpu.memory_space<vmem>>, %arg6: memref<1x1x256xf32, #tpu.memory_space<vmem>>) attributes {dimension_semantics = [#tpu.dimension_semantics<parallel>], iteration_bounds = array<i64: 2>, scalar_prefetch = 0 : i64, scratch_operands = 2 : i64, tpu.core_type = #tpu.core_type<tc>, window_params = [{transform_indices = @transform_0, window_bounds = array<i64: 1, 4, 256>}, {transform_indices = @transform_1, window_bounds = array<i64: 98>}, {transform_indices = @transform_2, window_bounds = array<i64: 1>}, {transform_indices = @transform_3, window_bounds = array<i64: 1, 4, 256>}]} {
    %c0 = arith.constant 0 : index
    %c0_0 = arith.constant 0 : index
    %c0_1 = arith.constant 0 : index
    %0 = vector.load %arg1[%c0, %c0_0, %c0_1] : memref<1x4x256xf32, #tpu.memory_space<vmem>>, vector<1x4x256xf32>
    %cst = arith.constant dense<0xFF800000> : vector<1x256xf32>
    %1 = vector.multi_reduction <maximumf>, %0, %cst [1] : vector<1x4x256xf32> to vector<1x256xf32>
    %cst_2 = arith.constant dense<0.000000e+00> : vector<1x256xf32>
    %2 = vector.multi_reduction <add>, %0, %cst_2 [1] : vector<1x4x256xf32> to vector<1x256xf32>
    %cst_3 = arith.constant 4.000000e+00 : f32
    %3 = vector.broadcast %cst_3 : f32 to vector<1x256xf32>
    %4 = arith.divf %2, %3 : vector<1x256xf32>
    %cst_4 = arith.constant 0.000000e+00 : f32
    %5 = vector.broadcast %cst_4 : f32 to vector<7x2x1x22x16xf32>
    %c0_5 = arith.constant 0 : index
    %c0_6 = arith.constant 0 : index
    %c0_7 = arith.constant 0 : index
    %c0_8 = arith.constant 0 : index
    %c0_9 = arith.constant 0 : index
    %6 = vector.load %arg5[%c0_5, %c0_6, %c0_7, %c0_8, %c0_9] : memref<7x2x1x22x16xf32, #tpu.memory_space<vmem>>, vector<7x2x1x22x16xf32>
    tpu.vector_store %arg5[%c0_5, %c0_6, %c0_7, %c0_8, %c0_9], %5 {strides = array<i32>} : memref<7x2x1x22x16xf32, #tpu.memory_space<vmem>>, vector<7x2x1x22x16xf32>,
    %7 = vector.extract_strided_slice %1 {offsets = [0, 0], sizes = [1, 16], strides = [1, 1]} : vector<1x256xf32> to vector<1x16xf32>
    %c3 = arith.constant 3 : index
    %c0_10 = arith.constant 0 : index
    %c0_11 = arith.constant 0 : index
    %c3_12 = arith.constant 3 : index
    %c0_13 = arith.constant 0 : index
    %8 = vector.load %arg5[%c3, %c0_10, %c0_11, %c3_12, %c0_13] : memref<7x2x1x22x16xf32, #tpu.memory_space<vmem>>, vector<1x1x1x1x16xf32>
    %9 = vector.shape_cast %8 : vector<1x1x1x1x16xf32> to vector<1x16xf32>
    %10 = vector.shape_cast %7 : vector<1x16xf32> to vector<1x1x1x1x16xf32>
    tpu.vector_store %arg5[%c3, %c0_10, %c0_11, %c3_12, %c0_13], %10 {strides = array<i32>} : memref<7x2x1x22x16xf32, #tpu.memory_space<vmem>>, vector<1x1x1x1x16xf32>,
    %11 = vector.extract_strided_slice %4 {offsets = [0, 0], sizes = [1, 16], strides = [1, 1]} : vector<1x256xf32> to vector<1x16xf32>
    %c3_14 = arith.constant 3 : index
    %c1 = arith.constant 1 : index
    %c0_15 = arith.constant 0 : index
    %c3_16 = arith.constant 3 : index
    %c0_17 = arith.constant 0 : index
    %12 = vector.load %arg5[%c3_14, %c1, %c0_15, %c3_16, %c0_17] : memref<7x2x1x22x16xf32, #tpu.memory_space<vmem>>, vector<1x1x1x1x16xf32>
    %13 = vector.shape_cast %12 : vector<1x1x1x1x16xf32> to vector<1x16xf32>
    %14 = vector.shape_cast %11 : vector<1x16xf32> to vector<1x1x1x1x16xf32>
    tpu.vector_store %arg5[%c3_14, %c1, %c0_15, %c3_16, %c0_17], %14 {strides = array<i32>} : memref<7x2x1x22x16xf32, #tpu.memory_space<vmem>>, vector<1x1x1x1x16xf32>,
    %15 = vector.extract_strided_slice %1 {offsets = [0, 16], sizes = [1, 16], strides = [1, 1]} : vector<1x256xf32> to vector<1x16xf32>
    %c3_18 = arith.constant 3 : index
    %c0_19 = arith.constant 0 : index
    %c0_20 = arith.constant 0 : index
    %c4 = arith.constant 4 : index
    %c0_21 = arith.constant 0 : index
    %16 = vector.load %arg5[%c3_18, %c0_19, %c0_20, %c4, %c0_21] : memref<7x2x1x22x16xf32, #tpu.memory_space<vmem>>, vector<1x1x1x1x16xf32>
    %17 = vector.shape_cast %16 : vector<1x1x1x1x16xf32> to vector<1x16xf32>
    %18 = vector.shape_cast %15 : vector<1x16xf32> to vector<1x1x1x1x16xf32>
    tpu.vector_store %arg5[%c3_18, %c0_19, %c0_20, %c4, %c0_21], %18 {strides = array<i32>} : memref<7x2x1x22x16xf32, #tpu.memory_space<vmem>>, vector<1x1x1x1x16xf32>,
    %19 = vector.extract_strided_slice %4 {offsets = [0, 16], sizes = [1, 16], strides = [1, 1]} : vector<1x256xf32> to vector<1x16xf32>
    %c3_22 = arith.constant 3 : index
    %c1_23 = arith.constant 1 : index
    %c0_24 = arith.constant 0 : index
    %c4_25 = arith.constant 4 : index
    %c0_26 = arith.constant 0 : index
    %20 = vector.load %arg5[%c3_22, %c1_23, %c0_24, %c4_25, %c0_26] : memref<7x2x1x22x16xf32, #tpu.memory_space<vmem>>, vector<1x1x1x1x16xf32>
    %21 = vector.shape_cast %20 : vector<1x1x1x1x16xf32> to vector<1x16xf32>
    %22 = vector.shape_cast %19 : vector<1x16xf32> to vector<1x1x1x1x16xf32>
    tpu.vector_store %arg5[%c3_22, %c1_23, %c0_24, %c4_25, %c0_26], %22 {strides = array<i32>} : memref<7x2x1x22x16xf32, #tpu.memory_space<vmem>>, vector<1x1x1x1x16xf32>,
    %23 = vector.extract_strided_slice %1 {offsets = [0, 32], sizes = [1, 16], strides = [1, 1]} : vector<1x256xf32> to vector<1x16xf32>
    %c3_27 = arith.constant 3 : index
    %c0_28 = arith.constant 0 : index
    %c0_29 = arith.constant 0 : index
    %c5 = arith.constant 5 : index
    %c0_30 = arith.constant 0 : index
    %24 = vector.load %arg5[%c3_27, %c0_28, %c0_29, %c5, %c0_30] : memref<7x2x1x22x16xf32, #tpu.memory_space<vmem>>, vector<1x1x1x1x16xf32>
    %25 = vector.shape_cast %24 : vector<1x1x1x1x16xf32> to vector<1x16xf32>
    %26 = vector.shape_cast %23 : vector<1x16xf32> to vector<1x1x1x1x16xf32>
    tpu.vector_store %arg5[%c3_27, %c0_28, %c0_29, %c5, %c0_30], %26 {strides = array<i32>} : memref<7x2x1x22x16xf32, #tpu.memory_space<vmem>>, vector<1x1x1x1x16xf32>,
    %27 = vector.extract_strided_slice %4 {offsets = [0, 32], sizes = [1, 16], strides = [1, 1]} : vector<1x256xf32> to vector<1x16xf32>
    %c3_31 = arith.constant 3 : index
    %c1_32 = arith.constant 1 : index
    %c0_33 = arith.constant 0 : index
    %c5_34 = arith.constant 5 : index
    %c0_35 = arith.constant 0 : index
    %28 = vector.load %arg5[%c3_31, %c1_32, %c0_33, %c5_34, %c0_35] : memref<7x2x1x22x16xf32, #tpu.memory_space<vmem>>, vector<1x1x1x1x16xf32>
    %29 = vector.shape_cast %28 : vector<1x1x1x1x16xf32> to vector<1x16xf32>
    %30 = vector.shape_cast %27 : vector<1x16xf32> to vector<1x1x1x1x16xf32>
    tpu.vector_store %arg5[%c3_31, %c1_32, %c0_33, %c5_34, %c0_35], %30 {strides = array<i32>} : memref<7x2x1x22x16xf32, #tpu.memory_space<vmem>>, vector<1x1x1x1x16xf32>,
    %31 = vector.extract_strided_slice %1 {offsets = [0, 48], sizes = [1, 16], strides = [1, 1]} : vector<1x256xf32> to vector<1x16xf32>
    %c3_36 = arith.constant 3 : index
    %c0_37 = arith.constant 0 : index
    %c0_38 = arith.constant 0 : index
    %c6 = arith.constant 6 : index
    %c0_39 = arith.constant 0 : index
    %32 = vector.load %arg5[%c3_36, %c0_37, %c0_38, %c6, %c0_39] : memref<7x2x1x22x16xf32, #tpu.memory_space<vmem>>, vector<1x1x1x1x16xf32>
    %33 = vector.shape_cast %32 : vector<1x1x1x1x16xf32> to vector<1x16xf32>
    %34 = vector.shape_cast %31 : vector<1x16xf32> to vector<1x1x1x1x16xf32>
    tpu.vector_store %arg5[%c3_36, %c0_37, %c0_38, %c6, %c0_39], %34 {strides = array<i32>} : memref<7x2x1x22x16xf32, #tpu.memory_space<vmem>>, vector<1x1x1x1x16xf32>,
    %35 = vector.extract_strided_slice %4 {offsets = [0, 48], sizes = [1, 16], strides = [1, 1]} : vector<1x256xf32> to vector<1x16xf32>
    %c3_40 = arith.constant 3 : index
    %c1_41 = arith.constant 1 : index
    %c0_42 = arith.constant 0 : index
    %c6_43 = arith.constant 6 : index
    %c0_44 = arith.constant 0 : index
    %36 = vector.load %arg5[%c3_40, %c1_41, %c0_42, %c6_43, %c0_44] : memref<7x2x1x22x16xf32, #tpu.memory_space<vmem>>, vector<1x1x1x1x16xf32>
    %37 = vector.shape_cast %36 : vector<1x1x1x1x16xf32> to vector<1x16xf32>
    %38 = vector.shape_cast %35 : vector<1x16xf32> to vector<1x1x1x1x16xf32>
    tpu.vector_store %arg5[%c3_40, %c1_41, %c0_42, %c6_43, %c0_44], %38 {strides = array<i32>} : memref<7x2x1x22x16xf32, #tpu.memory_space<vmem>>, vector<1x1x1x1x16xf32>,
    %39 = vector.extract_strided_slice %1 {offsets = [0, 64], sizes = [1, 16], strides = [1, 1]} : vector<1x256xf32> to vector<1x16xf32>
    %c3_45 = arith.constant 3 : index
    %c0_46 = arith.constant 0 : index
    %c0_47 = arith.constant 0 : index
    %c7 = arith.constant 7 : index
    %c0_48 = arith.constant 0 : index
    %40 = vector.load %arg5[%c3_45, %c0_46, %c0_47, %c7, %c0_48] : memref<7x2x1x22x16xf32, #tpu.memory_space<vmem>>, vector<1x1x1x1x16xf32>
    %41 = vector.shape_cast %40 : vector<1x1x1x1x16xf32> to vector<1x16xf32>
    %42 = vector.shape_cast %39 : vector<1x16xf32> to vector<1x1x1x1x16xf32>
    tpu.vector_store %arg5[%c3_45, %c0_46, %c0_47, %c7, %c0_48], %42 {strides = array<i32>} : memref<7x2x1x22x16xf32, #tpu.memory_space<vmem>>, vector<1x1x1x1x16xf32>,
    %43 = vector.extract_strided_slice %4 {offsets = [0, 64], sizes = [1, 16], strides = [1, 1]} : vector<1x256xf32> to vector<1x16xf32>
    %c3_49 = arith.constant 3 : index
    %c1_50 = arith.constant 1 : index
    %c0_51 = arith.constant 0 : index
    %c7_52 = arith.constant 7 : index
    %c0_53 = arith.constant 0 : index
    %44 = vector.load %arg5[%c3_49, %c1_50, %c0_51, %c7_52, %c0_53] : memref<7x2x1x22x16xf32, #tpu.memory_space<vmem>>, vector<1x1x1x1x16xf32>
    %45 = vector.shape_cast %44 : vector<1x1x1x1x16xf32> to vector<1x16xf32>
    %46 = vector.shape_cast %43 : vector<1x16xf32> to vector<1x1x1x1x16xf32>
    tpu.vector_store %arg5[%c3_49, %c1_50, %c0_51, %c7_52, %c0_53], %46 {strides = array<i32>} : memref<7x2x1x22x16xf32, #tpu.memory_space<vmem>>, vector<1x1x1x1x16xf32>,
    %47 = vector.extract_strided_slice %1 {offsets = [0, 80], sizes = [1, 16], strides = [1, 1]} : vector<1x256xf32> to vector<1x16xf32>
    %c3_54 = arith.constant 3 : index
    %c0_55 = arith.constant 0 : index
    %c0_56 = arith.constant 0 : index
    %c8 = arith.constant 8 : index
    %c0_57 = arith.constant 0 : index
    %48 = vector.load %arg5[%c3_54, %c0_55, %c0_56, %c8, %c0_57] : memref<7x2x1x22x16xf32, #tpu.memory_space<vmem>>, vector<1x1x1x1x16xf32>
    %49 = vector.shape_cast %48 : vector<1x1x1x1x16xf32> to vector<1x16xf32>
    %50 = vector.shape_cast %47 : vector<1x16xf32> to vector<1x1x1x1x16xf32>
    tpu.vector_store %arg5[%c3_54, %c0_55, %c0_56, %c8, %c0_57], %50 {strides = array<i32>} : memref<7x2x1x22x16xf32, #tpu.memory_space<vmem>>, vector<1x1x1x1x16xf32>,
    %51 = vector.extract_strided_slice %4 {offsets = [0, 80], sizes = [1, 16], strides = [1, 1]} : vector<1x256xf32> to vector<1x16xf32>
    %c3_58 = arith.constant 3 : index
    %c1_59 = arith.constant 1 : index
    %c0_60 = arith.constant 0 : index
    %c8_61 = arith.constant 8 : index
    %c0_62 = arith.constant 0 : index
    %52 = vector.load %arg5[%c3_58, %c1_59, %c0_60, %c8_61, %c0_62] : memref<7x2x1x22x16xf32, #tpu.memory_space<vmem>>, vector<1x1x1x1x16xf32>
    %53 = vector.shape_cast %52 : vector<1x1x1x1x16xf32> to vector<1x16xf32>
    %54 = vector.shape_cast %51 : vector<1x16xf32> to vector<1x1x1x1x16xf32>
    tpu.vector_store %arg5[%c3_58, %c1_59, %c0_60, %c8_61, %c0_62], %54 {strides = array<i32>} : memref<7x2x1x22x16xf32, #tpu.memory_space<vmem>>, vector<1x1x1x1x16xf32>,
    %55 = vector.extract_strided_slice %1 {offsets = [0, 96], sizes = [1, 16], strides = [1, 1]} : vector<1x256xf32> to vector<1x16xf32>
    %c3_63 = arith.constant 3 : index
    %c0_64 = arith.constant 0 : index
    %c0_65 = arith.constant 0 : index
    %c9 = arith.constant 9 : index
    %c0_66 = arith.constant 0 : index
    %56 = vector.load %arg5[%c3_63, %c0_64, %c0_65, %c9, %c0_66] : memref<7x2x1x22x16xf32, #tpu.memory_space<vmem>>, vector<1x1x1x1x16xf32>
    %57 = vector.shape_cast %56 : vector<1x1x1x1x16xf32> to vector<1x16xf32>
    %58 = vector.shape_cast %55 : vector<1x16xf32> to vector<1x1x1x1x16xf32>
    tpu.vector_store %arg5[%c3_63, %c0_64, %c0_65, %c9, %c0_66], %58 {strides = array<i32>} : memref<7x2x1x22x16xf32, #tpu.memory_space<vmem>>, vector<1x1x1x1x16xf32>,
    %59 = vector.extract_strided_slice %4 {offsets = [0, 96], sizes = [1, 16], strides = [1, 1]} : vector<1x256xf32> to vector<1x16xf32>
    %c3_67 = arith.constant 3 : index
    %c1_68 = arith.constant 1 : index
    %c0_69 = arith.constant 0 : index
    %c9_70 = arith.constant 9 : index
    %c0_71 = arith.constant 0 : index
    %60 = vector.load %arg5[%c3_67, %c1_68, %c0_69, %c9_70, %c0_71] : memref<7x2x1x22x16xf32, #tpu.memory_space<vmem>>, vector<1x1x1x1x16xf32>
    %61 = vector.shape_cast %60 : vector<1x1x1x1x16xf32> to vector<1x16xf32>
    %62 = vector.shape_cast %59 : vector<1x16xf32> to vector<1x1x1x1x16xf32>
    tpu.vector_store %arg5[%c3_67, %c1_68, %c0_69, %c9_70, %c0_71], %62 {strides = array<i32>} : memref<7x2x1x22x16xf32, #tpu.memory_space<vmem>>, vector<1x1x1x1x16xf32>,
    %63 = vector.extract_strided_slice %1 {offsets = [0, 112], sizes = [1, 16], strides = [1, 1]} : vector<1x256xf32> to vector<1x16xf32>
    %c3_72 = arith.constant 3 : index
    %c0_73 = arith.constant 0 : index
    %c0_74 = arith.constant 0 : index
    %c10 = arith.constant 10 : index
    %c0_75 = arith.constant 0 : index
    %64 = vector.load %arg5[%c3_72, %c0_73, %c0_74, %c10, %c0_75] : memref<7x2x1x22x16xf32, #tpu.memory_space<vmem>>, vector<1x1x1x1x16xf32>
    %65 = vector.shape_cast %64 : vector<1x1x1x1x16xf32> to vector<1x16xf32>
    %66 = vector.shape_cast %63 : vector<1x16xf32> to vector<1x1x1x1x16xf32>
    tpu.vector_store %arg5[%c3_72, %c0_73, %c0_74, %c10, %c0_75], %66 {strides = array<i32>} : memref<7x2x1x22x16xf32, #tpu.memory_space<vmem>>, vector<1x1x1x1x16xf32>,
    %67 = vector.extract_strided_slice %4 {offsets = [0, 112], sizes = [1, 16], strides = [1, 1]} : vector<1x256xf32> to vector<1x16xf32>
    %c3_76 = arith.constant 3 : index
    %c1_77 = arith.constant 1 : index
    %c0_78 = arith.constant 0 : index
    %c10_79 = arith.constant 10 : index
    %c0_80 = arith.constant 0 : index
    %68 = vector.load %arg5[%c3_76, %c1_77, %c0_78, %c10_79, %c0_80] : memref<7x2x1x22x16xf32, #tpu.memory_space<vmem>>, vector<1x1x1x1x16xf32>
    %69 = vector.shape_cast %68 : vector<1x1x1x1x16xf32> to vector<1x16xf32>
    %70 = vector.shape_cast %67 : vector<1x16xf32> to vector<1x1x1x1x16xf32>
    tpu.vector_store %arg5[%c3_76, %c1_77, %c0_78, %c10_79, %c0_80], %70 {strides = array<i32>} : memref<7x2x1x22x16xf32, #tpu.memory_space<vmem>>, vector<1x1x1x1x16xf32>,
    %71 = vector.extract_strided_slice %1 {offsets = [0, 128], sizes = [1, 16], strides = [1, 1]} : vector<1x256xf32> to vector<1x16xf32>
    %c3_81 = arith.constant 3 : index
    %c0_82 = arith.constant 0 : index
    %c0_83 = arith.constant 0 : index
    %c11 = arith.constant 11 : index
    %c0_84 = arith.constant 0 : index
    %72 = vector.load %arg5[%c3_81, %c0_82, %c0_83, %c11, %c0_84] : memref<7x2x1x22x16xf32, #tpu.memory_space<vmem>>, vector<1x1x1x1x16xf32>
    %73 = vector.shape_cast %72 : vector<1x1x1x1x16xf32> to vector<1x16xf32>
    %74 = vector.shape_cast %71 : vector<1x16xf32> to vector<1x1x1x1x16xf32>
    tpu.vector_store %arg5[%c3_81, %c0_82, %c0_83, %c11, %c0_84], %74 {strides = array<i32>} : memref<7x2x1x22x16xf32, #tpu.memory_space<vmem>>, vector<1x1x1x1x16xf32>,
    %75 = vector.extract_strided_slice %4 {offsets = [0, 128], sizes = [1, 16], strides = [1, 1]} : vector<1x256xf32> to vector<1x16xf32>
    %c3_85 = arith.constant 3 : index
    %c1_86 = arith.constant 1 : index
    %c0_87 = arith.constant 0 : index
    %c11_88 = arith.constant 11 : index
    %c0_89 = arith.constant 0 : index
    %76 = vector.load %arg5[%c3_85, %c1_86, %c0_87, %c11_88, %c0_89] : memref<7x2x1x22x16xf32, #tpu.memory_space<vmem>>, vector<1x1x1x1x16xf32>
    %77 = vector.shape_cast %76 : vector<1x1x1x1x16xf32> to vector<1x16xf32>
    %78 = vector.shape_cast %75 : vector<1x16xf32> to vector<1x1x1x1x16xf32>
    tpu.vector_store %arg5[%c3_85, %c1_86, %c0_87, %c11_88, %c0_89], %78 {strides = array<i32>} : memref<7x2x1x22x16xf32, #tpu.memory_space<vmem>>, vector<1x1x1x1x16xf32>,
    %79 = vector.extract_strided_slice %1 {offsets = [0, 144], sizes = [1, 16], strides = [1, 1]} : vector<1x256xf32> to vector<1x16xf32>
    %c3_90 = arith.constant 3 : index
    %c0_91 = arith.constant 0 : index
    %c0_92 = arith.constant 0 : index
    %c12 = arith.constant 12 : index
    %c0_93 = arith.constant 0 : index
    %80 = vector.load %arg5[%c3_90, %c0_91, %c0_92, %c12, %c0_93] : memref<7x2x1x22x16xf32, #tpu.memory_space<vmem>>, vector<1x1x1x1x16xf32>
    %81 = vector.shape_cast %80 : vector<1x1x1x1x16xf32> to vector<1x16xf32>
    %82 = vector.shape_cast %79 : vector<1x16xf32> to vector<1x1x1x1x16xf32>
    tpu.vector_store %arg5[%c3_90, %c0_91, %c0_92, %c12, %c0_93], %82 {strides = array<i32>} : memref<7x2x1x22x16xf32, #tpu.memory_space<vmem>>, vector<1x1x1x1x16xf32>,
    %83 = vector.extract_strided_slice %4 {offsets = [0, 144], sizes = [1, 16], strides = [1, 1]} : vector<1x256xf32> to vector<1x16xf32>
    %c3_94 = arith.constant 3 : index
    %c1_95 = arith.constant 1 : index
    %c0_96 = arith.constant 0 : index
    %c12_97 = arith.constant 12 : index
    %c0_98 = arith.constant 0 : index
    %84 = vector.load %arg5[%c3_94, %c1_95, %c0_96, %c12_97, %c0_98] : memref<7x2x1x22x16xf32, #tpu.memory_space<vmem>>, vector<1x1x1x1x16xf32>
    %85 = vector.shape_cast %84 : vector<1x1x1x1x16xf32> to vector<1x16xf32>
    %86 = vector.shape_cast %83 : vector<1x16xf32> to vector<1x1x1x1x16xf32>
    tpu.vector_store %arg5[%c3_94, %c1_95, %c0_96, %c12_97, %c0_98], %86 {strides = array<i32>} : memref<7x2x1x22x16xf32, #tpu.memory_space<vmem>>, vector<1x1x1x1x16xf32>,
    %87 = vector.extract_strided_slice %1 {offsets = [0, 160], sizes = [1, 16], strides = [1, 1]} : vector<1x256xf32> to vector<1x16xf32>
    %c3_99 = arith.constant 3 : index
    %c0_100 = arith.constant 0 : index
    %c0_101 = arith.constant 0 : index
    %c13 = arith.constant 13 : index
    %c0_102 = arith.constant 0 : index
    %88 = vector.load %arg5[%c3_99, %c0_100, %c0_101, %c13, %c0_102] : memref<7x2x1x22x16xf32, #tpu.memory_space<vmem>>, vector<1x1x1x1x16xf32>
    %89 = vector.shape_cast %88 : vector<1x1x1x1x16xf32> to vector<1x16xf32>
    %90 = vector.shape_cast %87 : vector<1x16xf32> to vector<1x1x1x1x16xf32>
    tpu.vector_store %arg5[%c3_99, %c0_100, %c0_101, %c13, %c0_102], %90 {strides = array<i32>} : memref<7x2x1x22x16xf32, #tpu.memory_space<vmem>>, vector<1x1x1x1x16xf32>,
    %91 = vector.extract_strided_slice %4 {offsets = [0, 160], sizes = [1, 16], strides = [1, 1]} : vector<1x256xf32> to vector<1x16xf32>
    %c3_103 = arith.constant 3 : index
    %c1_104 = arith.constant 1 : index
    %c0_105 = arith.constant 0 : index
    %c13_106 = arith.constant 13 : index
    %c0_107 = arith.constant 0 : index
    %92 = vector.load %arg5[%c3_103, %c1_104, %c0_105, %c13_106, %c0_107] : memref<7x2x1x22x16xf32, #tpu.memory_space<vmem>>, vector<1x1x1x1x16xf32>
    %93 = vector.shape_cast %92 : vector<1x1x1x1x16xf32> to vector<1x16xf32>
    %94 = vector.shape_cast %91 : vector<1x16xf32> to vector<1x1x1x1x16xf32>
    tpu.vector_store %arg5[%c3_103, %c1_104, %c0_105, %c13_106, %c0_107], %94 {strides = array<i32>} : memref<7x2x1x22x16xf32, #tpu.memory_space<vmem>>, vector<1x1x1x1x16xf32>,
    %95 = vector.extract_strided_slice %1 {offsets = [0, 176], sizes = [1, 16], strides = [1, 1]} : vector<1x256xf32> to vector<1x16xf32>
    %c3_108 = arith.constant 3 : index
    %c0_109 = arith.constant 0 : index
    %c0_110 = arith.constant 0 : index
    %c14 = arith.constant 14 : index
    %c0_111 = arith.constant 0 : index
    %96 = vector.load %arg5[%c3_108, %c0_109, %c0_110, %c14, %c0_111] : memref<7x2x1x22x16xf32, #tpu.memory_space<vmem>>, vector<1x1x1x1x16xf32>
    %97 = vector.shape_cast %96 : vector<1x1x1x1x16xf32> to vector<1x16xf32>
    %98 = vector.shape_cast %95 : vector<1x16xf32> to vector<1x1x1x1x16xf32>
    tpu.vector_store %arg5[%c3_108, %c0_109, %c0_110, %c14, %c0_111], %98 {strides = array<i32>} : memref<7x2x1x22x16xf32, #tpu.memory_space<vmem>>, vector<1x1x1x1x16xf32>,
    %99 = vector.extract_strided_slice %4 {offsets = [0, 176], sizes = [1, 16], strides = [1, 1]} : vector<1x256xf32> to vector<1x16xf32>
    %c3_112 = arith.constant 3 : index
    %c1_113 = arith.constant 1 : index
    %c0_114 = arith.constant 0 : index
    %c14_115 = arith.constant 14 : index
    %c0_116 = arith.constant 0 : index
    %100 = vector.load %arg5[%c3_112, %c1_113, %c0_114, %c14_115, %c0_116] : memref<7x2x1x22x16xf32, #tpu.memory_space<vmem>>, vector<1x1x1x1x16xf32>
    %101 = vector.shape_cast %100 : vector<1x1x1x1x16xf32> to vector<1x16xf32>
    %102 = vector.shape_cast %99 : vector<1x16xf32> to vector<1x1x1x1x16xf32>
    tpu.vector_store %arg5[%c3_112, %c1_113, %c0_114, %c14_115, %c0_116], %102 {strides = array<i32>} : memref<7x2x1x22x16xf32, #tpu.memory_space<vmem>>, vector<1x1x1x1x16xf32>,
    %103 = vector.extract_strided_slice %1 {offsets = [0, 192], sizes = [1, 16], strides = [1, 1]} : vector<1x256xf32> to vector<1x16xf32>
    %c3_117 = arith.constant 3 : index
    %c0_118 = arith.constant 0 : index
    %c0_119 = arith.constant 0 : index
    %c15 = arith.constant 15 : index
    %c0_120 = arith.constant 0 : index
    %104 = vector.load %arg5[%c3_117, %c0_118, %c0_119, %c15, %c0_120] : memref<7x2x1x22x16xf32, #tpu.memory_space<vmem>>, vector<1x1x1x1x16xf32>
    %105 = vector.shape_cast %104 : vector<1x1x1x1x16xf32> to vector<1x16xf32>
    %106 = vector.shape_cast %103 : vector<1x16xf32> to vector<1x1x1x1x16xf32>
    tpu.vector_store %arg5[%c3_117, %c0_118, %c0_119, %c15, %c0_120], %106 {strides = array<i32>} : memref<7x2x1x22x16xf32, #tpu.memory_space<vmem>>, vector<1x1x1x1x16xf32>,
    %107 = vector.extract_strided_slice %4 {offsets = [0, 192], sizes = [1, 16], strides = [1, 1]} : vector<1x256xf32> to vector<1x16xf32>
    %c3_121 = arith.constant 3 : index
    %c1_122 = arith.constant 1 : index
    %c0_123 = arith.constant 0 : index
    %c15_124 = arith.constant 15 : index
    %c0_125 = arith.constant 0 : index
    %108 = vector.load %arg5[%c3_121, %c1_122, %c0_123, %c15_124, %c0_125] : memref<7x2x1x22x16xf32, #tpu.memory_space<vmem>>, vector<1x1x1x1x16xf32>
    %109 = vector.shape_cast %108 : vector<1x1x1x1x16xf32> to vector<1x16xf32>
    %110 = vector.shape_cast %107 : vector<1x16xf32> to vector<1x1x1x1x16xf32>
    tpu.vector_store %arg5[%c3_121, %c1_122, %c0_123, %c15_124, %c0_125], %110 {strides = array<i32>} : memref<7x2x1x22x16xf32, #tpu.memory_space<vmem>>, vector<1x1x1x1x16xf32>,
    %111 = vector.extract_strided_slice %1 {offsets = [0, 208], sizes = [1, 16], strides = [1, 1]} : vector<1x256xf32> to vector<1x16xf32>
    %c3_126 = arith.constant 3 : index
    %c0_127 = arith.constant 0 : index
    %c0_128 = arith.constant 0 : index
    %c16 = arith.constant 16 : index
    %c0_129 = arith.constant 0 : index
    %112 = vector.load %arg5[%c3_126, %c0_127, %c0_128, %c16, %c0_129] : memref<7x2x1x22x16xf32, #tpu.memory_space<vmem>>, vector<1x1x1x1x16xf32>
    %113 = vector.shape_cast %112 : vector<1x1x1x1x16xf32> to vector<1x16xf32>
    %114 = vector.shape_cast %111 : vector<1x16xf32> to vector<1x1x1x1x16xf32>
    tpu.vector_store %arg5[%c3_126, %c0_127, %c0_128, %c16, %c0_129], %114 {strides = array<i32>} : memref<7x2x1x22x16xf32, #tpu.memory_space<vmem>>, vector<1x1x1x1x16xf32>,
    %115 = vector.extract_strided_slice %4 {offsets = [0, 208], sizes = [1, 16], strides = [1, 1]} : vector<1x256xf32> to vector<1x16xf32>
    %c3_130 = arith.constant 3 : index
    %c1_131 = arith.constant 1 : index
    %c0_132 = arith.constant 0 : index
    %c16_133 = arith.constant 16 : index
    %c0_134 = arith.constant 0 : index
    %116 = vector.load %arg5[%c3_130, %c1_131, %c0_132, %c16_133, %c0_134] : memref<7x2x1x22x16xf32, #tpu.memory_space<vmem>>, vector<1x1x1x1x16xf32>
    %117 = vector.shape_cast %116 : vector<1x1x1x1x16xf32> to vector<1x16xf32>
    %118 = vector.shape_cast %115 : vector<1x16xf32> to vector<1x1x1x1x16xf32>
    tpu.vector_store %arg5[%c3_130, %c1_131, %c0_132, %c16_133, %c0_134], %118 {strides = array<i32>} : memref<7x2x1x22x16xf32, #tpu.memory_space<vmem>>, vector<1x1x1x1x16xf32>,
    %119 = vector.extract_strided_slice %1 {offsets = [0, 224], sizes = [1, 16], strides = [1, 1]} : vector<1x256xf32> to vector<1x16xf32>
    %c3_135 = arith.constant 3 : index
    %c0_136 = arith.constant 0 : index
    %c0_137 = arith.constant 0 : index
    %c17 = arith.constant 17 : index
    %c0_138 = arith.constant 0 : index
    %120 = vector.load %arg5[%c3_135, %c0_136, %c0_137, %c17, %c0_138] : memref<7x2x1x22x16xf32, #tpu.memory_space<vmem>>, vector<1x1x1x1x16xf32>
    %121 = vector.shape_cast %120 : vector<1x1x1x1x16xf32> to vector<1x16xf32>
    %122 = vector.shape_cast %119 : vector<1x16xf32> to vector<1x1x1x1x16xf32>
    tpu.vector_store %arg5[%c3_135, %c0_136, %c0_137, %c17, %c0_138], %122 {strides = array<i32>} : memref<7x2x1x22x16xf32, #tpu.memory_space<vmem>>, vector<1x1x1x1x16xf32>,
    %123 = vector.extract_strided_slice %4 {offsets = [0, 224], sizes = [1, 16], strides = [1, 1]} : vector<1x256xf32> to vector<1x16xf32>
    %c3_139 = arith.constant 3 : index
    %c1_140 = arith.constant 1 : index
    %c0_141 = arith.constant 0 : index
    %c17_142 = arith.constant 17 : index
    %c0_143 = arith.constant 0 : index
    %124 = vector.load %arg5[%c3_139, %c1_140, %c0_141, %c17_142, %c0_143] : memref<7x2x1x22x16xf32, #tpu.memory_space<vmem>>, vector<1x1x1x1x16xf32>
    %125 = vector.shape_cast %124 : vector<1x1x1x1x16xf32> to vector<1x16xf32>
    %126 = vector.shape_cast %123 : vector<1x16xf32> to vector<1x1x1x1x16xf32>
    tpu.vector_store %arg5[%c3_139, %c1_140, %c0_141, %c17_142, %c0_143], %126 {strides = array<i32>} : memref<7x2x1x22x16xf32, #tpu.memory_space<vmem>>, vector<1x1x1x1x16xf32>,
    %127 = vector.extract_strided_slice %1 {offsets = [0, 240], sizes = [1, 16], strides = [1, 1]} : vector<1x256xf32> to vector<1x16xf32>
    %c3_144 = arith.constant 3 : index
    %c0_145 = arith.constant 0 : index
    %c0_146 = arith.constant 0 : index
    %c18 = arith.constant 18 : index
    %c0_147 = arith.constant 0 : index
    %128 = vector.load %arg5[%c3_144, %c0_145, %c0_146, %c18, %c0_147] : memref<7x2x1x22x16xf32, #tpu.memory_space<vmem>>, vector<1x1x1x1x16xf32>
    %129 = vector.shape_cast %128 : vector<1x1x1x1x16xf32> to vector<1x16xf32>
    %130 = vector.shape_cast %127 : vector<1x16xf32> to vector<1x1x1x1x16xf32>
    tpu.vector_store %arg5[%c3_144, %c0_145, %c0_146, %c18, %c0_147], %130 {strides = array<i32>} : memref<7x2x1x22x16xf32, #tpu.memory_space<vmem>>, vector<1x1x1x1x16xf32>,
    %131 = vector.extract_strided_slice %4 {offsets = [0, 240], sizes = [1, 16], strides = [1, 1]} : vector<1x256xf32> to vector<1x16xf32>
    %c3_148 = arith.constant 3 : index
    %c1_149 = arith.constant 1 : index
    %c0_150 = arith.constant 0 : index
    %c18_151 = arith.constant 18 : index
    %c0_152 = arith.constant 0 : index
    %132 = vector.load %arg5[%c3_148, %c1_149, %c0_150, %c18_151, %c0_152] : memref<7x2x1x22x16xf32, #tpu.memory_space<vmem>>, vector<1x1x1x1x16xf32>
    %133 = vector.shape_cast %132 : vector<1x1x1x1x16xf32> to vector<1x16xf32>
    %134 = vector.shape_cast %131 : vector<1x16xf32> to vector<1x1x1x1x16xf32>
    tpu.vector_store %arg5[%c3_148, %c1_149, %c0_150, %c18_151, %c0_152], %134 {strides = array<i32>} : memref<7x2x1x22x16xf32, #tpu.memory_space<vmem>>, vector<1x1x1x1x16xf32>,
    %c3_153 = arith.constant 3 : index
    %c0_154 = arith.constant 0 : index
    %c0_155 = arith.constant 0 : index
    %c3_156 = arith.constant 3 : index
    %c0_157 = arith.constant 0 : index
    %135 = vector.load %arg5[%c3_153, %c0_154, %c0_155, %c3_156, %c0_157] : memref<7x2x1x22x16xf32, #tpu.memory_space<vmem>>, vector<1x2x1x16x16xf32>
    %136 = vector.shape_cast %135 : vector<1x2x1x16x16xf32> to vector<2x1x16x16xf32>
    %137 = vector.extract_strided_slice %136 {offsets = [0, 0, 0, 0], sizes = [2, 1, 16, 13], strides = [1, 1, 1, 1]} : vector<2x1x16x16xf32> to vector<2x1x16x13xf32>
    %c0_158 = arith.constant 0 : index
    %c0_159 = arith.constant 0 : index
    %c0_160 = arith.constant 0 : index
    %c3_161 = arith.constant 3 : index
    %c3_162 = arith.constant 3 : index
    %138 = vector.load %arg5[%c0_158, %c0_159, %c0_160, %c3_161, %c3_162] : memref<7x2x1x22x16xf32, #tpu.memory_space<vmem>>, vector<1x2x1x16x13xf32>
    %139 = vector.shape_cast %138 : vector<1x2x1x16x13xf32> to vector<2x1x16x13xf32>
    %140 = vector.shape_cast %137 : vector<2x1x16x13xf32> to vector<1x2x1x16x13xf32>
    tpu.vector_store %arg5[%c0_158, %c0_159, %c0_160, %c3_161, %c3_162], %140 {strides = array<i32>} : memref<7x2x1x22x16xf32, #tpu.memory_space<vmem>>, vector<1x2x1x16x13xf32>,
    %141 = vector.extract_strided_slice %136 {offsets = [0, 0, 0, 0], sizes = [2, 1, 16, 14], strides = [1, 1, 1, 1]} : vector<2x1x16x16xf32> to vector<2x1x16x14xf32>
    %c1_163 = arith.constant 1 : index
    %c0_164 = arith.constant 0 : index
    %c0_165 = arith.constant 0 : index
    %c3_166 = arith.constant 3 : index
    %c2 = arith.constant 2 : index
    %142 = vector.load %arg5[%c1_163, %c0_164, %c0_165, %c3_166, %c2] : memref<7x2x1x22x16xf32, #tpu.memory_space<vmem>>, vector<1x2x1x16x14xf32>
    %143 = vector.shape_cast %142 : vector<1x2x1x16x14xf32> to vector<2x1x16x14xf32>
    %144 = vector.shape_cast %141 : vector<2x1x16x14xf32> to vector<1x2x1x16x14xf32>
    tpu.vector_store %arg5[%c1_163, %c0_164, %c0_165, %c3_166, %c2], %144 {strides = array<i32>} : memref<7x2x1x22x16xf32, #tpu.memory_space<vmem>>, vector<1x2x1x16x14xf32>,
    %145 = vector.extract_strided_slice %136 {offsets = [0, 0, 0, 0], sizes = [2, 1, 16, 15], strides = [1, 1, 1, 1]} : vector<2x1x16x16xf32> to vector<2x1x16x15xf32>
    %c2_167 = arith.constant 2 : index
    %c0_168 = arith.constant 0 : index
    %c0_169 = arith.constant 0 : index
    %c3_170 = arith.constant 3 : index
    %c1_171 = arith.constant 1 : index
    %146 = vector.load %arg5[%c2_167, %c0_168, %c0_169, %c3_170, %c1_171] : memref<7x2x1x22x16xf32, #tpu.memory_space<vmem>>, vector<1x2x1x16x15xf32>
    %147 = vector.shape_cast %146 : vector<1x2x1x16x15xf32> to vector<2x1x16x15xf32>
    %148 = vector.shape_cast %145 : vector<2x1x16x15xf32> to vector<1x2x1x16x15xf32>
    tpu.vector_store %arg5[%c2_167, %c0_168, %c0_169, %c3_170, %c1_171], %148 {strides = array<i32>} : memref<7x2x1x22x16xf32, #tpu.memory_space<vmem>>, vector<1x2x1x16x15xf32>,
    %149 = vector.extract_strided_slice %136 {offsets = [0, 0, 0, 1], sizes = [2, 1, 16, 15], strides = [1, 1, 1, 1]} : vector<2x1x16x16xf32> to vector<2x1x16x15xf32>
    %c4_172 = arith.constant 4 : index
    %c0_173 = arith.constant 0 : index
    %c0_174 = arith.constant 0 : index
    %c3_175 = arith.constant 3 : index
    %c0_176 = arith.constant 0 : index
    %150 = vector.load %arg5[%c4_172, %c0_173, %c0_174, %c3_175, %c0_176] : memref<7x2x1x22x16xf32, #tpu.memory_space<vmem>>, vector<1x2x1x16x15xf32>
    %151 = vector.shape_cast %150 : vector<1x2x1x16x15xf32> to vector<2x1x16x15xf32>
    %152 = vector.shape_cast %149 : vector<2x1x16x15xf32> to vector<1x2x1x16x15xf32>
    tpu.vector_store %arg5[%c4_172, %c0_173, %c0_174, %c3_175, %c0_176], %152 {strides = array<i32>} : memref<7x2x1x22x16xf32, #tpu.memory_space<vmem>>, vector<1x2x1x16x15xf32>,
    %153 = vector.extract_strided_slice %136 {offsets = [0, 0, 0, 2], sizes = [2, 1, 16, 14], strides = [1, 1, 1, 1]} : vector<2x1x16x16xf32> to vector<2x1x16x14xf32>
    %c5_177 = arith.constant 5 : index
    %c0_178 = arith.constant 0 : index
    %c0_179 = arith.constant 0 : index
    %c3_180 = arith.constant 3 : index
    %c0_181 = arith.constant 0 : index
    %154 = vector.load %arg5[%c5_177, %c0_178, %c0_179, %c3_180, %c0_181] : memref<7x2x1x22x16xf32, #tpu.memory_space<vmem>>, vector<1x2x1x16x14xf32>
    %155 = vector.shape_cast %154 : vector<1x2x1x16x14xf32> to vector<2x1x16x14xf32>
    %156 = vector.shape_cast %153 : vector<2x1x16x14xf32> to vector<1x2x1x16x14xf32>
    tpu.vector_store %arg5[%c5_177, %c0_178, %c0_179, %c3_180, %c0_181], %156 {strides = array<i32>} : memref<7x2x1x22x16xf32, #tpu.memory_space<vmem>>, vector<1x2x1x16x14xf32>,
    %157 = vector.extract_strided_slice %136 {offsets = [0, 0, 0, 3], sizes = [2, 1, 16, 13], strides = [1, 1, 1, 1]} : vector<2x1x16x16xf32> to vector<2x1x16x13xf32>
    %c6_182 = arith.constant 6 : index
    %c0_183 = arith.constant 0 : index
    %c0_184 = arith.constant 0 : index
    %c3_185 = arith.constant 3 : index
    %c0_186 = arith.constant 0 : index
    %158 = vector.load %arg5[%c6_182, %c0_183, %c0_184, %c3_185, %c0_186] : memref<7x2x1x22x16xf32, #tpu.memory_space<vmem>>, vector<1x2x1x16x13xf32>
    %159 = vector.shape_cast %158 : vector<1x2x1x16x13xf32> to vector<2x1x16x13xf32>
    %160 = vector.shape_cast %157 : vector<2x1x16x13xf32> to vector<1x2x1x16x13xf32>
    tpu.vector_store %arg5[%c6_182, %c0_183, %c0_184, %c3_185, %c0_186], %160 {strides = array<i32>} : memref<7x2x1x22x16xf32, #tpu.memory_space<vmem>>, vector<1x2x1x16x13xf32>,
    %cst_187 = arith.constant 0.000000e+00 : f32
    %161 = vector.broadcast %cst_187 : f32 to vector<1x16x16xf32>
    %c0_188 = arith.constant 0 : index
    %162 = memref.load %arg3[%c0_188] : memref<1xf32, #tpu.memory_space<smem>>
    %163 = vector.broadcast %162 : f32 to vector<1x16x16xf32>
    %164 = arith.addf %161, %163 : vector<1x16x16xf32>
    %c0_189 = arith.constant 0 : index
    %c0_190 = arith.constant 0 : index
    %c0_191 = arith.constant 0 : index
    %c0_192 = arith.constant 0 : index
    %c0_193 = arith.constant 0 : index
    %165 = vector.load %arg5[%c0_189, %c0_190, %c0_191, %c0_192, %c0_193] : memref<7x2x1x22x16xf32, #tpu.memory_space<vmem>>, vector<1x2x1x16x16xf32>
    %166 = vector.shape_cast %165 : vector<1x2x1x16x16xf32> to vector<2x1x16x16xf32>
    %c0_194 = arith.constant 0 : index
    %167 = memref.load %arg2[%c0_194] : memref<98xf32, #tpu.memory_space<smem>>
    %168 = vector.extract_strided_slice %166 {offsets = [0, 0, 0, 0], sizes = [1, 1, 16, 16], strides = [1, 1, 1, 1]} : vector<2x1x16x16xf32> to vector<1x1x16x16xf32>
    %169 = vector.shape_cast %168 : vector<1x1x16x16xf32> to vector<1x16x16xf32>
    %170 = vector.broadcast %167 : f32 to vector<1x16x16xf32>
    %171 = arith.mulf %170, %169 : vector<1x16x16xf32>
    %172 = arith.addf %164, %171 : vector<1x16x16xf32>
    %c49 = arith.constant 49 : index
    %173 = memref.load %arg2[%c49] : memref<98xf32, #tpu.memory_space<smem>>
    %174 = vector.extract_strided_slice %166 {offsets = [1, 0, 0, 0], sizes = [1, 1, 16, 16], strides = [1, 1, 1, 1]} : vector<2x1x16x16xf32> to vector<1x1x16x16xf32>
    %175 = vector.shape_cast %174 : vector<1x1x16x16xf32> to vector<1x16x16xf32>
    %176 = vector.broadcast %173 : f32 to vector<1x16x16xf32>
    %177 = arith.mulf %176, %175 : vector<1x16x16xf32>
    %178 = arith.addf %172, %177 : vector<1x16x16xf32>
    %c1_195 = arith.constant 1 : index
    %c0_196 = arith.constant 0 : index
    %c0_197 = arith.constant 0 : index
    %c0_198 = arith.constant 0 : index
    %c0_199 = arith.constant 0 : index
    %179 = vector.load %arg5[%c1_195, %c0_196, %c0_197, %c0_198, %c0_199] : memref<7x2x1x22x16xf32, #tpu.memory_space<vmem>>, vector<1x2x1x16x16xf32>
    %180 = vector.shape_cast %179 : vector<1x2x1x16x16xf32> to vector<2x1x16x16xf32>
    %c1_200 = arith.constant 1 : index
    %181 = memref.load %arg2[%c1_200] : memref<98xf32, #tpu.memory_space<smem>>
    %182 = vector.extract_strided_slice %180 {offsets = [0, 0, 0, 0], sizes = [1, 1, 16, 16], strides = [1, 1, 1, 1]} : vector<2x1x16x16xf32> to vector<1x1x16x16xf32>
    %183 = vector.shape_cast %182 : vector<1x1x16x16xf32> to vector<1x16x16xf32>
    %184 = vector.broadcast %181 : f32 to vector<1x16x16xf32>
    %185 = arith.mulf %184, %183 : vector<1x16x16xf32>
    %186 = arith.addf %178, %185 : vector<1x16x16xf32>
    %c50 = arith.constant 50 : index
    %187 = memref.load %arg2[%c50] : memref<98xf32, #tpu.memory_space<smem>>
    %188 = vector.extract_strided_slice %180 {offsets = [1, 0, 0, 0], sizes = [1, 1, 16, 16], strides = [1, 1, 1, 1]} : vector<2x1x16x16xf32> to vector<1x1x16x16xf32>
    %189 = vector.shape_cast %188 : vector<1x1x16x16xf32> to vector<1x16x16xf32>
    %190 = vector.broadcast %187 : f32 to vector<1x16x16xf32>
    %191 = arith.mulf %190, %189 : vector<1x16x16xf32>
    %192 = arith.addf %186, %191 : vector<1x16x16xf32>
    %c2_201 = arith.constant 2 : index
    %c0_202 = arith.constant 0 : index
    %c0_203 = arith.constant 0 : index
    %c0_204 = arith.constant 0 : index
    %c0_205 = arith.constant 0 : index
    %193 = vector.load %arg5[%c2_201, %c0_202, %c0_203, %c0_204, %c0_205] : memref<7x2x1x22x16xf32, #tpu.memory_space<vmem>>, vector<1x2x1x16x16xf32>
    %194 = vector.shape_cast %193 : vector<1x2x1x16x16xf32> to vector<2x1x16x16xf32>
    %c2_206 = arith.constant 2 : index
    %195 = memref.load %arg2[%c2_206] : memref<98xf32, #tpu.memory_space<smem>>
    %196 = vector.extract_strided_slice %194 {offsets = [0, 0, 0, 0], sizes = [1, 1, 16, 16], strides = [1, 1, 1, 1]} : vector<2x1x16x16xf32> to vector<1x1x16x16xf32>
    %197 = vector.shape_cast %196 : vector<1x1x16x16xf32> to vector<1x16x16xf32>
    %198 = vector.broadcast %195 : f32 to vector<1x16x16xf32>
    %199 = arith.mulf %198, %197 : vector<1x16x16xf32>
    %200 = arith.addf %192, %199 : vector<1x16x16xf32>
    %c51 = arith.constant 51 : index
    %201 = memref.load %arg2[%c51] : memref<98xf32, #tpu.memory_space<smem>>
    %202 = vector.extract_strided_slice %194 {offsets = [1, 0, 0, 0], sizes = [1, 1, 16, 16], strides = [1, 1, 1, 1]} : vector<2x1x16x16xf32> to vector<1x1x16x16xf32>
    %203 = vector.shape_cast %202 : vector<1x1x16x16xf32> to vector<1x16x16xf32>
    %204 = vector.broadcast %201 : f32 to vector<1x16x16xf32>
    %205 = arith.mulf %204, %203 : vector<1x16x16xf32>
    %206 = arith.addf %200, %205 : vector<1x16x16xf32>
    %c3_207 = arith.constant 3 : index
    %c0_208 = arith.constant 0 : index
    %c0_209 = arith.constant 0 : index
    %c0_210 = arith.constant 0 : index
    %c0_211 = arith.constant 0 : index
    %207 = vector.load %arg5[%c3_207, %c0_208, %c0_209, %c0_210, %c0_211] : memref<7x2x1x22x16xf32, #tpu.memory_space<vmem>>, vector<1x2x1x16x16xf32>
    %208 = vector.shape_cast %207 : vector<1x2x1x16x16xf32> to vector<2x1x16x16xf32>
    %c3_212 = arith.constant 3 : index
    %209 = memref.load %arg2[%c3_212] : memref<98xf32, #tpu.memory_space<smem>>
    %210 = vector.extract_strided_slice %208 {offsets = [0, 0, 0, 0], sizes = [1, 1, 16, 16], strides = [1, 1, 1, 1]} : vector<2x1x16x16xf32> to vector<1x1x16x16xf32>
    %211 = vector.shape_cast %210 : vector<1x1x16x16xf32> to vector<1x16x16xf32>
    %212 = vector.broadcast %209 : f32 to vector<1x16x16xf32>
    %213 = arith.mulf %212, %211 : vector<1x16x16xf32>
    %214 = arith.addf %206, %213 : vector<1x16x16xf32>
    %c52 = arith.constant 52 : index
    %215 = memref.load %arg2[%c52] : memref<98xf32, #tpu.memory_space<smem>>
    %216 = vector.extract_strided_slice %208 {offsets = [1, 0, 0, 0], sizes = [1, 1, 16, 16], strides = [1, 1, 1, 1]} : vector<2x1x16x16xf32> to vector<1x1x16x16xf32>
    %217 = vector.shape_cast %216 : vector<1x1x16x16xf32> to vector<1x16x16xf32>
    %218 = vector.broadcast %215 : f32 to vector<1x16x16xf32>
    %219 = arith.mulf %218, %217 : vector<1x16x16xf32>
    %220 = arith.addf %214, %219 : vector<1x16x16xf32>
    %c4_213 = arith.constant 4 : index
    %c0_214 = arith.constant 0 : index
    %c0_215 = arith.constant 0 : index
    %c0_216 = arith.constant 0 : index
    %c0_217 = arith.constant 0 : index
    %221 = vector.load %arg5[%c4_213, %c0_214, %c0_215, %c0_216, %c0_217] : memref<7x2x1x22x16xf32, #tpu.memory_space<vmem>>, vector<1x2x1x16x16xf32>
    %222 = vector.shape_cast %221 : vector<1x2x1x16x16xf32> to vector<2x1x16x16xf32>
    %c4_218 = arith.constant 4 : index
    %223 = memref.load %arg2[%c4_218] : memref<98xf32, #tpu.memory_space<smem>>
    %224 = vector.extract_strided_slice %222 {offsets = [0, 0, 0, 0], sizes = [1, 1, 16, 16], strides = [1, 1, 1, 1]} : vector<2x1x16x16xf32> to vector<1x1x16x16xf32>
    %225 = vector.shape_cast %224 : vector<1x1x16x16xf32> to vector<1x16x16xf32>
    %226 = vector.broadcast %223 : f32 to vector<1x16x16xf32>
    %227 = arith.mulf %226, %225 : vector<1x16x16xf32>
    %228 = arith.addf %220, %227 : vector<1x16x16xf32>
    %c53 = arith.constant 53 : index
    %229 = memref.load %arg2[%c53] : memref<98xf32, #tpu.memory_space<smem>>
    %230 = vector.extract_strided_slice %222 {offsets = [1, 0, 0, 0], sizes = [1, 1, 16, 16], strides = [1, 1, 1, 1]} : vector<2x1x16x16xf32> to vector<1x1x16x16xf32>
    %231 = vector.shape_cast %230 : vector<1x1x16x16xf32> to vector<1x16x16xf32>
    %232 = vector.broadcast %229 : f32 to vector<1x16x16xf32>
    %233 = arith.mulf %232, %231 : vector<1x16x16xf32>
    %234 = arith.addf %228, %233 : vector<1x16x16xf32>
    %c5_219 = arith.constant 5 : index
    %c0_220 = arith.constant 0 : index
    %c0_221 = arith.constant 0 : index
    %c0_222 = arith.constant 0 : index
    %c0_223 = arith.constant 0 : index
    %235 = vector.load %arg5[%c5_219, %c0_220, %c0_221, %c0_222, %c0_223] : memref<7x2x1x22x16xf32, #tpu.memory_space<vmem>>, vector<1x2x1x16x16xf32>
    %236 = vector.shape_cast %235 : vector<1x2x1x16x16xf32> to vector<2x1x16x16xf32>
    %c5_224 = arith.constant 5 : index
    %237 = memref.load %arg2[%c5_224] : memref<98xf32, #tpu.memory_space<smem>>
    %238 = vector.extract_strided_slice %236 {offsets = [0, 0, 0, 0], sizes = [1, 1, 16, 16], strides = [1, 1, 1, 1]} : vector<2x1x16x16xf32> to vector<1x1x16x16xf32>
    %239 = vector.shape_cast %238 : vector<1x1x16x16xf32> to vector<1x16x16xf32>
    %240 = vector.broadcast %237 : f32 to vector<1x16x16xf32>
    %241 = arith.mulf %240, %239 : vector<1x16x16xf32>
    %242 = arith.addf %234, %241 : vector<1x16x16xf32>
    %c54 = arith.constant 54 : index
    %243 = memref.load %arg2[%c54] : memref<98xf32, #tpu.memory_space<smem>>
    %244 = vector.extract_strided_slice %236 {offsets = [1, 0, 0, 0], sizes = [1, 1, 16, 16], strides = [1, 1, 1, 1]} : vector<2x1x16x16xf32> to vector<1x1x16x16xf32>
    %245 = vector.shape_cast %244 : vector<1x1x16x16xf32> to vector<1x16x16xf32>
    %246 = vector.broadcast %243 : f32 to vector<1x16x16xf32>
    %247 = arith.mulf %246, %245 : vector<1x16x16xf32>
    %248 = arith.addf %242, %247 : vector<1x16x16xf32>
    %c6_225 = arith.constant 6 : index
    %c0_226 = arith.constant 0 : index
    %c0_227 = arith.constant 0 : index
    %c0_228 = arith.constant 0 : index
    %c0_229 = arith.constant 0 : index
    %249 = vector.load %arg5[%c6_225, %c0_226, %c0_227, %c0_228, %c0_229] : memref<7x2x1x22x16xf32, #tpu.memory_space<vmem>>, vector<1x2x1x16x16xf32>
    %250 = vector.shape_cast %249 : vector<1x2x1x16x16xf32> to vector<2x1x16x16xf32>
    %c6_230 = arith.constant 6 : index
    %251 = memref.load %arg2[%c6_230] : memref<98xf32, #tpu.memory_space<smem>>
    %252 = vector.extract_strided_slice %250 {offsets = [0, 0, 0, 0], sizes = [1, 1, 16, 16], strides = [1, 1, 1, 1]} : vector<2x1x16x16xf32> to vector<1x1x16x16xf32>
    %253 = vector.shape_cast %252 : vector<1x1x16x16xf32> to vector<1x16x16xf32>
    %254 = vector.broadcast %251 : f32 to vector<1x16x16xf32>
    %255 = arith.mulf %254, %253 : vector<1x16x16xf32>
    %256 = arith.addf %248, %255 : vector<1x16x16xf32>
    %c55 = arith.constant 55 : index
    %257 = memref.load %arg2[%c55] : memref<98xf32, #tpu.memory_space<smem>>
    %258 = vector.extract_strided_slice %250 {offsets = [1, 0, 0, 0], sizes = [1, 1, 16, 16], strides = [1, 1, 1, 1]} : vector<2x1x16x16xf32> to vector<1x1x16x16xf32>
    %259 = vector.shape_cast %258 : vector<1x1x16x16xf32> to vector<1x16x16xf32>
    %260 = vector.broadcast %257 : f32 to vector<1x16x16xf32>
    %261 = arith.mulf %260, %259 : vector<1x16x16xf32>
    %262 = arith.addf %256, %261 : vector<1x16x16xf32>
    %c0_231 = arith.constant 0 : index
    %c0_232 = arith.constant 0 : index
    %c0_233 = arith.constant 0 : index
    %c1_234 = arith.constant 1 : index
    %c0_235 = arith.constant 0 : index
    %263 = vector.load %arg5[%c0_231, %c0_232, %c0_233, %c1_234, %c0_235] : memref<7x2x1x22x16xf32, #tpu.memory_space<vmem>>, vector<1x2x1x16x16xf32>
    %264 = vector.shape_cast %263 : vector<1x2x1x16x16xf32> to vector<2x1x16x16xf32>
    %c7_236 = arith.constant 7 : index
    %265 = memref.load %arg2[%c7_236] : memref<98xf32, #tpu.memory_space<smem>>
    %266 = vector.extract_strided_slice %264 {offsets = [0, 0, 0, 0], sizes = [1, 1, 16, 16], strides = [1, 1, 1, 1]} : vector<2x1x16x16xf32> to vector<1x1x16x16xf32>
    %267 = vector.shape_cast %266 : vector<1x1x16x16xf32> to vector<1x16x16xf32>
    %268 = vector.broadcast %265 : f32 to vector<1x16x16xf32>
    %269 = arith.mulf %268, %267 : vector<1x16x16xf32>
    %270 = arith.addf %262, %269 : vector<1x16x16xf32>
    %c56 = arith.constant 56 : index
    %271 = memref.load %arg2[%c56] : memref<98xf32, #tpu.memory_space<smem>>
    %272 = vector.extract_strided_slice %264 {offsets = [1, 0, 0, 0], sizes = [1, 1, 16, 16], strides = [1, 1, 1, 1]} : vector<2x1x16x16xf32> to vector<1x1x16x16xf32>
    %273 = vector.shape_cast %272 : vector<1x1x16x16xf32> to vector<1x16x16xf32>
    %274 = vector.broadcast %271 : f32 to vector<1x16x16xf32>
    %275 = arith.mulf %274, %273 : vector<1x16x16xf32>
    %276 = arith.addf %270, %275 : vector<1x16x16xf32>
    %c1_237 = arith.constant 1 : index
    %c0_238 = arith.constant 0 : index
    %c0_239 = arith.constant 0 : index
    %c1_240 = arith.constant 1 : index
    %c0_241 = arith.constant 0 : index
    %277 = vector.load %arg5[%c1_237, %c0_238, %c0_239, %c1_240, %c0_241] : memref<7x2x1x22x16xf32, #tpu.memory_space<vmem>>, vector<1x2x1x16x16xf32>
    %278 = vector.shape_cast %277 : vector<1x2x1x16x16xf32> to vector<2x1x16x16xf32>
    %c8_242 = arith.constant 8 : index
    %279 = memref.load %arg2[%c8_242] : memref<98xf32, #tpu.memory_space<smem>>
    %280 = vector.extract_strided_slice %278 {offsets = [0, 0, 0, 0], sizes = [1, 1, 16, 16], strides = [1, 1, 1, 1]} : vector<2x1x16x16xf32> to vector<1x1x16x16xf32>
    %281 = vector.shape_cast %280 : vector<1x1x16x16xf32> to vector<1x16x16xf32>
    %282 = vector.broadcast %279 : f32 to vector<1x16x16xf32>
    %283 = arith.mulf %282, %281 : vector<1x16x16xf32>
    %284 = arith.addf %276, %283 : vector<1x16x16xf32>
    %c57 = arith.constant 57 : index
    %285 = memref.load %arg2[%c57] : memref<98xf32, #tpu.memory_space<smem>>
    %286 = vector.extract_strided_slice %278 {offsets = [1, 0, 0, 0], sizes = [1, 1, 16, 16], strides = [1, 1, 1, 1]} : vector<2x1x16x16xf32> to vector<1x1x16x16xf32>
    %287 = vector.shape_cast %286 : vector<1x1x16x16xf32> to vector<1x16x16xf32>
    %288 = vector.broadcast %285 : f32 to vector<1x16x16xf32>
    %289 = arith.mulf %288, %287 : vector<1x16x16xf32>
    %290 = arith.addf %284, %289 : vector<1x16x16xf32>
    %c2_243 = arith.constant 2 : index
    %c0_244 = arith.constant 0 : index
    %c0_245 = arith.constant 0 : index
    %c1_246 = arith.constant 1 : index
    %c0_247 = arith.constant 0 : index
    %291 = vector.load %arg5[%c2_243, %c0_244, %c0_245, %c1_246, %c0_247] : memref<7x2x1x22x16xf32, #tpu.memory_space<vmem>>, vector<1x2x1x16x16xf32>
    %292 = vector.shape_cast %291 : vector<1x2x1x16x16xf32> to vector<2x1x16x16xf32>
    %c9_248 = arith.constant 9 : index
    %293 = memref.load %arg2[%c9_248] : memref<98xf32, #tpu.memory_space<smem>>
    %294 = vector.extract_strided_slice %292 {offsets = [0, 0, 0, 0], sizes = [1, 1, 16, 16], strides = [1, 1, 1, 1]} : vector<2x1x16x16xf32> to vector<1x1x16x16xf32>
    %295 = vector.shape_cast %294 : vector<1x1x16x16xf32> to vector<1x16x16xf32>
    %296 = vector.broadcast %293 : f32 to vector<1x16x16xf32>
    %297 = arith.mulf %296, %295 : vector<1x16x16xf32>
    %298 = arith.addf %290, %297 : vector<1x16x16xf32>
    %c58 = arith.constant 58 : index
    %299 = memref.load %arg2[%c58] : memref<98xf32, #tpu.memory_space<smem>>
    %300 = vector.extract_strided_slice %292 {offsets = [1, 0, 0, 0], sizes = [1, 1, 16, 16], strides = [1, 1, 1, 1]} : vector<2x1x16x16xf32> to vector<1x1x16x16xf32>
    %301 = vector.shape_cast %300 : vector<1x1x16x16xf32> to vector<1x16x16xf32>
    %302 = vector.broadcast %299 : f32 to vector<1x16x16xf32>
    %303 = arith.mulf %302, %301 : vector<1x16x16xf32>
    %304 = arith.addf %298, %303 : vector<1x16x16xf32>
    %c3_249 = arith.constant 3 : index
    %c0_250 = arith.constant 0 : index
    %c0_251 = arith.constant 0 : index
    %c1_252 = arith.constant 1 : index
    %c0_253 = arith.constant 0 : index
    %305 = vector.load %arg5[%c3_249, %c0_250, %c0_251, %c1_252, %c0_253] : memref<7x2x1x22x16xf32, #tpu.memory_space<vmem>>, vector<1x2x1x16x16xf32>
    %306 = vector.shape_cast %305 : vector<1x2x1x16x16xf32> to vector<2x1x16x16xf32>
    %c10_254 = arith.constant 10 : index
    %307 = memref.load %arg2[%c10_254] : memref<98xf32, #tpu.memory_space<smem>>
    %308 = vector.extract_strided_slice %306 {offsets = [0, 0, 0, 0], sizes = [1, 1, 16, 16], strides = [1, 1, 1, 1]} : vector<2x1x16x16xf32> to vector<1x1x16x16xf32>
    %309 = vector.shape_cast %308 : vector<1x1x16x16xf32> to vector<1x16x16xf32>
    %310 = vector.broadcast %307 : f32 to vector<1x16x16xf32>
    %311 = arith.mulf %310, %309 : vector<1x16x16xf32>
    %312 = arith.addf %304, %311 : vector<1x16x16xf32>
    %c59 = arith.constant 59 : index
    %313 = memref.load %arg2[%c59] : memref<98xf32, #tpu.memory_space<smem>>
    %314 = vector.extract_strided_slice %306 {offsets = [1, 0, 0, 0], sizes = [1, 1, 16, 16], strides = [1, 1, 1, 1]} : vector<2x1x16x16xf32> to vector<1x1x16x16xf32>
    %315 = vector.shape_cast %314 : vector<1x1x16x16xf32> to vector<1x16x16xf32>
    %316 = vector.broadcast %313 : f32 to vector<1x16x16xf32>
    %317 = arith.mulf %316, %315 : vector<1x16x16xf32>
    %318 = arith.addf %312, %317 : vector<1x16x16xf32>
    %c4_255 = arith.constant 4 : index
    %c0_256 = arith.constant 0 : index
    %c0_257 = arith.constant 0 : index
    %c1_258 = arith.constant 1 : index
    %c0_259 = arith.constant 0 : index
    %319 = vector.load %arg5[%c4_255, %c0_256, %c0_257, %c1_258, %c0_259] : memref<7x2x1x22x16xf32, #tpu.memory_space<vmem>>, vector<1x2x1x16x16xf32>
    %320 = vector.shape_cast %319 : vector<1x2x1x16x16xf32> to vector<2x1x16x16xf32>
    %c11_260 = arith.constant 11 : index
    %321 = memref.load %arg2[%c11_260] : memref<98xf32, #tpu.memory_space<smem>>
    %322 = vector.extract_strided_slice %320 {offsets = [0, 0, 0, 0], sizes = [1, 1, 16, 16], strides = [1, 1, 1, 1]} : vector<2x1x16x16xf32> to vector<1x1x16x16xf32>
    %323 = vector.shape_cast %322 : vector<1x1x16x16xf32> to vector<1x16x16xf32>
    %324 = vector.broadcast %321 : f32 to vector<1x16x16xf32>
    %325 = arith.mulf %324, %323 : vector<1x16x16xf32>
    %326 = arith.addf %318, %325 : vector<1x16x16xf32>
    %c60 = arith.constant 60 : index
    %327 = memref.load %arg2[%c60] : memref<98xf32, #tpu.memory_space<smem>>
    %328 = vector.extract_strided_slice %320 {offsets = [1, 0, 0, 0], sizes = [1, 1, 16, 16], strides = [1, 1, 1, 1]} : vector<2x1x16x16xf32> to vector<1x1x16x16xf32>
    %329 = vector.shape_cast %328 : vector<1x1x16x16xf32> to vector<1x16x16xf32>
    %330 = vector.broadcast %327 : f32 to vector<1x16x16xf32>
    %331 = arith.mulf %330, %329 : vector<1x16x16xf32>
    %332 = arith.addf %326, %331 : vector<1x16x16xf32>
    %c5_261 = arith.constant 5 : index
    %c0_262 = arith.constant 0 : index
    %c0_263 = arith.constant 0 : index
    %c1_264 = arith.constant 1 : index
    %c0_265 = arith.constant 0 : index
    %333 = vector.load %arg5[%c5_261, %c0_262, %c0_263, %c1_264, %c0_265] : memref<7x2x1x22x16xf32, #tpu.memory_space<vmem>>, vector<1x2x1x16x16xf32>
    %334 = vector.shape_cast %333 : vector<1x2x1x16x16xf32> to vector<2x1x16x16xf32>
    %c12_266 = arith.constant 12 : index
    %335 = memref.load %arg2[%c12_266] : memref<98xf32, #tpu.memory_space<smem>>
    %336 = vector.extract_strided_slice %334 {offsets = [0, 0, 0, 0], sizes = [1, 1, 16, 16], strides = [1, 1, 1, 1]} : vector<2x1x16x16xf32> to vector<1x1x16x16xf32>
    %337 = vector.shape_cast %336 : vector<1x1x16x16xf32> to vector<1x16x16xf32>
    %338 = vector.broadcast %335 : f32 to vector<1x16x16xf32>
    %339 = arith.mulf %338, %337 : vector<1x16x16xf32>
    %340 = arith.addf %332, %339 : vector<1x16x16xf32>
    %c61 = arith.constant 61 : index
    %341 = memref.load %arg2[%c61] : memref<98xf32, #tpu.memory_space<smem>>
    %342 = vector.extract_strided_slice %334 {offsets = [1, 0, 0, 0], sizes = [1, 1, 16, 16], strides = [1, 1, 1, 1]} : vector<2x1x16x16xf32> to vector<1x1x16x16xf32>
    %343 = vector.shape_cast %342 : vector<1x1x16x16xf32> to vector<1x16x16xf32>
    %344 = vector.broadcast %341 : f32 to vector<1x16x16xf32>
    %345 = arith.mulf %344, %343 : vector<1x16x16xf32>
    %346 = arith.addf %340, %345 : vector<1x16x16xf32>
    %c6_267 = arith.constant 6 : index
    %c0_268 = arith.constant 0 : index
    %c0_269 = arith.constant 0 : index
    %c1_270 = arith.constant 1 : index
    %c0_271 = arith.constant 0 : index
    %347 = vector.load %arg5[%c6_267, %c0_268, %c0_269, %c1_270, %c0_271] : memref<7x2x1x22x16xf32, #tpu.memory_space<vmem>>, vector<1x2x1x16x16xf32>
    %348 = vector.shape_cast %347 : vector<1x2x1x16x16xf32> to vector<2x1x16x16xf32>
    %c13_272 = arith.constant 13 : index
    %349 = memref.load %arg2[%c13_272] : memref<98xf32, #tpu.memory_space<smem>>
    %350 = vector.extract_strided_slice %348 {offsets = [0, 0, 0, 0], sizes = [1, 1, 16, 16], strides = [1, 1, 1, 1]} : vector<2x1x16x16xf32> to vector<1x1x16x16xf32>
    %351 = vector.shape_cast %350 : vector<1x1x16x16xf32> to vector<1x16x16xf32>
    %352 = vector.broadcast %349 : f32 to vector<1x16x16xf32>
    %353 = arith.mulf %352, %351 : vector<1x16x16xf32>
    %354 = arith.addf %346, %353 : vector<1x16x16xf32>
    %c62 = arith.constant 62 : index
    %355 = memref.load %arg2[%c62] : memref<98xf32, #tpu.memory_space<smem>>
    %356 = vector.extract_strided_slice %348 {offsets = [1, 0, 0, 0], sizes = [1, 1, 16, 16], strides = [1, 1, 1, 1]} : vector<2x1x16x16xf32> to vector<1x1x16x16xf32>
    %357 = vector.shape_cast %356 : vector<1x1x16x16xf32> to vector<1x16x16xf32>
    %358 = vector.broadcast %355 : f32 to vector<1x16x16xf32>
    %359 = arith.mulf %358, %357 : vector<1x16x16xf32>
    %360 = arith.addf %354, %359 : vector<1x16x16xf32>
    %c0_273 = arith.constant 0 : index
    %c0_274 = arith.constant 0 : index
    %c0_275 = arith.constant 0 : index
    %c2_276 = arith.constant 2 : index
    %c0_277 = arith.constant 0 : index
    %361 = vector.load %arg5[%c0_273, %c0_274, %c0_275, %c2_276, %c0_277] : memref<7x2x1x22x16xf32, #tpu.memory_space<vmem>>, vector<1x2x1x16x16xf32>
    %362 = vector.shape_cast %361 : vector<1x2x1x16x16xf32> to vector<2x1x16x16xf32>
    %c14_278 = arith.constant 14 : index
    %363 = memref.load %arg2[%c14_278] : memref<98xf32, #tpu.memory_space<smem>>
    %364 = vector.extract_strided_slice %362 {offsets = [0, 0, 0, 0], sizes = [1, 1, 16, 16], strides = [1, 1, 1, 1]} : vector<2x1x16x16xf32> to vector<1x1x16x16xf32>
    %365 = vector.shape_cast %364 : vector<1x1x16x16xf32> to vector<1x16x16xf32>
    %366 = vector.broadcast %363 : f32 to vector<1x16x16xf32>
    %367 = arith.mulf %366, %365 : vector<1x16x16xf32>
    %368 = arith.addf %360, %367 : vector<1x16x16xf32>
    %c63 = arith.constant 63 : index
    %369 = memref.load %arg2[%c63] : memref<98xf32, #tpu.memory_space<smem>>
    %370 = vector.extract_strided_slice %362 {offsets = [1, 0, 0, 0], sizes = [1, 1, 16, 16], strides = [1, 1, 1, 1]} : vector<2x1x16x16xf32> to vector<1x1x16x16xf32>
    %371 = vector.shape_cast %370 : vector<1x1x16x16xf32> to vector<1x16x16xf32>
    %372 = vector.broadcast %369 : f32 to vector<1x16x16xf32>
    %373 = arith.mulf %372, %371 : vector<1x16x16xf32>
    %374 = arith.addf %368, %373 : vector<1x16x16xf32>
    %c1_279 = arith.constant 1 : index
    %c0_280 = arith.constant 0 : index
    %c0_281 = arith.constant 0 : index
    %c2_282 = arith.constant 2 : index
    %c0_283 = arith.constant 0 : index
    %375 = vector.load %arg5[%c1_279, %c0_280, %c0_281, %c2_282, %c0_283] : memref<7x2x1x22x16xf32, #tpu.memory_space<vmem>>, vector<1x2x1x16x16xf32>
    %376 = vector.shape_cast %375 : vector<1x2x1x16x16xf32> to vector<2x1x16x16xf32>
    %c15_284 = arith.constant 15 : index
    %377 = memref.load %arg2[%c15_284] : memref<98xf32, #tpu.memory_space<smem>>
    %378 = vector.extract_strided_slice %376 {offsets = [0, 0, 0, 0], sizes = [1, 1, 16, 16], strides = [1, 1, 1, 1]} : vector<2x1x16x16xf32> to vector<1x1x16x16xf32>
    %379 = vector.shape_cast %378 : vector<1x1x16x16xf32> to vector<1x16x16xf32>
    %380 = vector.broadcast %377 : f32 to vector<1x16x16xf32>
    %381 = arith.mulf %380, %379 : vector<1x16x16xf32>
    %382 = arith.addf %374, %381 : vector<1x16x16xf32>
    %c64 = arith.constant 64 : index
    %383 = memref.load %arg2[%c64] : memref<98xf32, #tpu.memory_space<smem>>
    %384 = vector.extract_strided_slice %376 {offsets = [1, 0, 0, 0], sizes = [1, 1, 16, 16], strides = [1, 1, 1, 1]} : vector<2x1x16x16xf32> to vector<1x1x16x16xf32>
    %385 = vector.shape_cast %384 : vector<1x1x16x16xf32> to vector<1x16x16xf32>
    %386 = vector.broadcast %383 : f32 to vector<1x16x16xf32>
    %387 = arith.mulf %386, %385 : vector<1x16x16xf32>
    %388 = arith.addf %382, %387 : vector<1x16x16xf32>
    %c2_285 = arith.constant 2 : index
    %c0_286 = arith.constant 0 : index
    %c0_287 = arith.constant 0 : index
    %c2_288 = arith.constant 2 : index
    %c0_289 = arith.constant 0 : index
    %389 = vector.load %arg5[%c2_285, %c0_286, %c0_287, %c2_288, %c0_289] : memref<7x2x1x22x16xf32, #tpu.memory_space<vmem>>, vector<1x2x1x16x16xf32>
    %390 = vector.shape_cast %389 : vector<1x2x1x16x16xf32> to vector<2x1x16x16xf32>
    %c16_290 = arith.constant 16 : index
    %391 = memref.load %arg2[%c16_290] : memref<98xf32, #tpu.memory_space<smem>>
    %392 = vector.extract_strided_slice %390 {offsets = [0, 0, 0, 0], sizes = [1, 1, 16, 16], strides = [1, 1, 1, 1]} : vector<2x1x16x16xf32> to vector<1x1x16x16xf32>
    %393 = vector.shape_cast %392 : vector<1x1x16x16xf32> to vector<1x16x16xf32>
    %394 = vector.broadcast %391 : f32 to vector<1x16x16xf32>
    %395 = arith.mulf %394, %393 : vector<1x16x16xf32>
    %396 = arith.addf %388, %395 : vector<1x16x16xf32>
    %c65 = arith.constant 65 : index
    %397 = memref.load %arg2[%c65] : memref<98xf32, #tpu.memory_space<smem>>
    %398 = vector.extract_strided_slice %390 {offsets = [1, 0, 0, 0], sizes = [1, 1, 16, 16], strides = [1, 1, 1, 1]} : vector<2x1x16x16xf32> to vector<1x1x16x16xf32>
    %399 = vector.shape_cast %398 : vector<1x1x16x16xf32> to vector<1x16x16xf32>
    %400 = vector.broadcast %397 : f32 to vector<1x16x16xf32>
    %401 = arith.mulf %400, %399 : vector<1x16x16xf32>
    %402 = arith.addf %396, %401 : vector<1x16x16xf32>
    %c3_291 = arith.constant 3 : index
    %c0_292 = arith.constant 0 : index
    %c0_293 = arith.constant 0 : index
    %c2_294 = arith.constant 2 : index
    %c0_295 = arith.constant 0 : index
    %403 = vector.load %arg5[%c3_291, %c0_292, %c0_293, %c2_294, %c0_295] : memref<7x2x1x22x16xf32, #tpu.memory_space<vmem>>, vector<1x2x1x16x16xf32>
    %404 = vector.shape_cast %403 : vector<1x2x1x16x16xf32> to vector<2x1x16x16xf32>
    %c17_296 = arith.constant 17 : index
    %405 = memref.load %arg2[%c17_296] : memref<98xf32, #tpu.memory_space<smem>>
    %406 = vector.extract_strided_slice %404 {offsets = [0, 0, 0, 0], sizes = [1, 1, 16, 16], strides = [1, 1, 1, 1]} : vector<2x1x16x16xf32> to vector<1x1x16x16xf32>
    %407 = vector.shape_cast %406 : vector<1x1x16x16xf32> to vector<1x16x16xf32>
    %408 = vector.broadcast %405 : f32 to vector<1x16x16xf32>
    %409 = arith.mulf %408, %407 : vector<1x16x16xf32>
    %410 = arith.addf %402, %409 : vector<1x16x16xf32>
    %c66 = arith.constant 66 : index
    %411 = memref.load %arg2[%c66] : memref<98xf32, #tpu.memory_space<smem>>
    %412 = vector.extract_strided_slice %404 {offsets = [1, 0, 0, 0], sizes = [1, 1, 16, 16], strides = [1, 1, 1, 1]} : vector<2x1x16x16xf32> to vector<1x1x16x16xf32>
    %413 = vector.shape_cast %412 : vector<1x1x16x16xf32> to vector<1x16x16xf32>
    %414 = vector.broadcast %411 : f32 to vector<1x16x16xf32>
    %415 = arith.mulf %414, %413 : vector<1x16x16xf32>
    %416 = arith.addf %410, %415 : vector<1x16x16xf32>
    %c4_297 = arith.constant 4 : index
    %c0_298 = arith.constant 0 : index
    %c0_299 = arith.constant 0 : index
    %c2_300 = arith.constant 2 : index
    %c0_301 = arith.constant 0 : index
    %417 = vector.load %arg5[%c4_297, %c0_298, %c0_299, %c2_300, %c0_301] : memref<7x2x1x22x16xf32, #tpu.memory_space<vmem>>, vector<1x2x1x16x16xf32>
    %418 = vector.shape_cast %417 : vector<1x2x1x16x16xf32> to vector<2x1x16x16xf32>
    %c18_302 = arith.constant 18 : index
    %419 = memref.load %arg2[%c18_302] : memref<98xf32, #tpu.memory_space<smem>>
    %420 = vector.extract_strided_slice %418 {offsets = [0, 0, 0, 0], sizes = [1, 1, 16, 16], strides = [1, 1, 1, 1]} : vector<2x1x16x16xf32> to vector<1x1x16x16xf32>
    %421 = vector.shape_cast %420 : vector<1x1x16x16xf32> to vector<1x16x16xf32>
    %422 = vector.broadcast %419 : f32 to vector<1x16x16xf32>
    %423 = arith.mulf %422, %421 : vector<1x16x16xf32>
    %424 = arith.addf %416, %423 : vector<1x16x16xf32>
    %c67 = arith.constant 67 : index
    %425 = memref.load %arg2[%c67] : memref<98xf32, #tpu.memory_space<smem>>
    %426 = vector.extract_strided_slice %418 {offsets = [1, 0, 0, 0], sizes = [1, 1, 16, 16], strides = [1, 1, 1, 1]} : vector<2x1x16x16xf32> to vector<1x1x16x16xf32>
    %427 = vector.shape_cast %426 : vector<1x1x16x16xf32> to vector<1x16x16xf32>
    %428 = vector.broadcast %425 : f32 to vector<1x16x16xf32>
    %429 = arith.mulf %428, %427 : vector<1x16x16xf32>
    %430 = arith.addf %424, %429 : vector<1x16x16xf32>
    %c5_303 = arith.constant 5 : index
    %c0_304 = arith.constant 0 : index
    %c0_305 = arith.constant 0 : index
    %c2_306 = arith.constant 2 : index
    %c0_307 = arith.constant 0 : index
    %431 = vector.load %arg5[%c5_303, %c0_304, %c0_305, %c2_306, %c0_307] : memref<7x2x1x22x16xf32, #tpu.memory_space<vmem>>, vector<1x2x1x16x16xf32>
    %432 = vector.shape_cast %431 : vector<1x2x1x16x16xf32> to vector<2x1x16x16xf32>
    %c19 = arith.constant 19 : index
    %433 = memref.load %arg2[%c19] : memref<98xf32, #tpu.memory_space<smem>>
    %434 = vector.extract_strided_slice %432 {offsets = [0, 0, 0, 0], sizes = [1, 1, 16, 16], strides = [1, 1, 1, 1]} : vector<2x1x16x16xf32> to vector<1x1x16x16xf32>
    %435 = vector.shape_cast %434 : vector<1x1x16x16xf32> to vector<1x16x16xf32>
    %436 = vector.broadcast %433 : f32 to vector<1x16x16xf32>
    %437 = arith.mulf %436, %435 : vector<1x16x16xf32>
    %438 = arith.addf %430, %437 : vector<1x16x16xf32>
    %c68 = arith.constant 68 : index
    %439 = memref.load %arg2[%c68] : memref<98xf32, #tpu.memory_space<smem>>
    %440 = vector.extract_strided_slice %432 {offsets = [1, 0, 0, 0], sizes = [1, 1, 16, 16], strides = [1, 1, 1, 1]} : vector<2x1x16x16xf32> to vector<1x1x16x16xf32>
    %441 = vector.shape_cast %440 : vector<1x1x16x16xf32> to vector<1x16x16xf32>
    %442 = vector.broadcast %439 : f32 to vector<1x16x16xf32>
    %443 = arith.mulf %442, %441 : vector<1x16x16xf32>
    %444 = arith.addf %438, %443 : vector<1x16x16xf32>
    %c6_308 = arith.constant 6 : index
    %c0_309 = arith.constant 0 : index
    %c0_310 = arith.constant 0 : index
    %c2_311 = arith.constant 2 : index
    %c0_312 = arith.constant 0 : index
    %445 = vector.load %arg5[%c6_308, %c0_309, %c0_310, %c2_311, %c0_312] : memref<7x2x1x22x16xf32, #tpu.memory_space<vmem>>, vector<1x2x1x16x16xf32>
    %446 = vector.shape_cast %445 : vector<1x2x1x16x16xf32> to vector<2x1x16x16xf32>
    %c20 = arith.constant 20 : index
    %447 = memref.load %arg2[%c20] : memref<98xf32, #tpu.memory_space<smem>>
    %448 = vector.extract_strided_slice %446 {offsets = [0, 0, 0, 0], sizes = [1, 1, 16, 16], strides = [1, 1, 1, 1]} : vector<2x1x16x16xf32> to vector<1x1x16x16xf32>
    %449 = vector.shape_cast %448 : vector<1x1x16x16xf32> to vector<1x16x16xf32>
    %450 = vector.broadcast %447 : f32 to vector<1x16x16xf32>
    %451 = arith.mulf %450, %449 : vector<1x16x16xf32>
    %452 = arith.addf %444, %451 : vector<1x16x16xf32>
    %c69 = arith.constant 69 : index
    %453 = memref.load %arg2[%c69] : memref<98xf32, #tpu.memory_space<smem>>
    %454 = vector.extract_strided_slice %446 {offsets = [1, 0, 0, 0], sizes = [1, 1, 16, 16], strides = [1, 1, 1, 1]} : vector<2x1x16x16xf32> to vector<1x1x16x16xf32>
    %455 = vector.shape_cast %454 : vector<1x1x16x16xf32> to vector<1x16x16xf32>
    %456 = vector.broadcast %453 : f32 to vector<1x16x16xf32>
    %457 = arith.mulf %456, %455 : vector<1x16x16xf32>
    %458 = arith.addf %452, %457 : vector<1x16x16xf32>
    %c0_313 = arith.constant 0 : index
    %c0_314 = arith.constant 0 : index
    %c0_315 = arith.constant 0 : index
    %c3_316 = arith.constant 3 : index
    %c0_317 = arith.constant 0 : index
    %459 = vector.load %arg5[%c0_313, %c0_314, %c0_315, %c3_316, %c0_317] : memref<7x2x1x22x16xf32, #tpu.memory_space<vmem>>, vector<1x2x1x16x16xf32>
    %460 = vector.shape_cast %459 : vector<1x2x1x16x16xf32> to vector<2x1x16x16xf32>
    %c21 = arith.constant 21 : index
    %461 = memref.load %arg2[%c21] : memref<98xf32, #tpu.memory_space<smem>>
    %462 = vector.extract_strided_slice %460 {offsets = [0, 0, 0, 0], sizes = [1, 1, 16, 16], strides = [1, 1, 1, 1]} : vector<2x1x16x16xf32> to vector<1x1x16x16xf32>
    %463 = vector.shape_cast %462 : vector<1x1x16x16xf32> to vector<1x16x16xf32>
    %464 = vector.broadcast %461 : f32 to vector<1x16x16xf32>
    %465 = arith.mulf %464, %463 : vector<1x16x16xf32>
    %466 = arith.addf %458, %465 : vector<1x16x16xf32>
    %c70 = arith.constant 70 : index
    %467 = memref.load %arg2[%c70] : memref<98xf32, #tpu.memory_space<smem>>
    %468 = vector.extract_strided_slice %460 {offsets = [1, 0, 0, 0], sizes = [1, 1, 16, 16], strides = [1, 1, 1, 1]} : vector<2x1x16x16xf32> to vector<1x1x16x16xf32>
    %469 = vector.shape_cast %468 : vector<1x1x16x16xf32> to vector<1x16x16xf32>
    %470 = vector.broadcast %467 : f32 to vector<1x16x16xf32>
    %471 = arith.mulf %470, %469 : vector<1x16x16xf32>
    %472 = arith.addf %466, %471 : vector<1x16x16xf32>
    %c1_318 = arith.constant 1 : index
    %c0_319 = arith.constant 0 : index
    %c0_320 = arith.constant 0 : index
    %c3_321 = arith.constant 3 : index
    %c0_322 = arith.constant 0 : index
    %473 = vector.load %arg5[%c1_318, %c0_319, %c0_320, %c3_321, %c0_322] : memref<7x2x1x22x16xf32, #tpu.memory_space<vmem>>, vector<1x2x1x16x16xf32>
    %474 = vector.shape_cast %473 : vector<1x2x1x16x16xf32> to vector<2x1x16x16xf32>
    %c22 = arith.constant 22 : index
    %475 = memref.load %arg2[%c22] : memref<98xf32, #tpu.memory_space<smem>>
    %476 = vector.extract_strided_slice %474 {offsets = [0, 0, 0, 0], sizes = [1, 1, 16, 16], strides = [1, 1, 1, 1]} : vector<2x1x16x16xf32> to vector<1x1x16x16xf32>
    %477 = vector.shape_cast %476 : vector<1x1x16x16xf32> to vector<1x16x16xf32>
    %478 = vector.broadcast %475 : f32 to vector<1x16x16xf32>
    %479 = arith.mulf %478, %477 : vector<1x16x16xf32>
    %480 = arith.addf %472, %479 : vector<1x16x16xf32>
    %c71 = arith.constant 71 : index
    %481 = memref.load %arg2[%c71] : memref<98xf32, #tpu.memory_space<smem>>
    %482 = vector.extract_strided_slice %474 {offsets = [1, 0, 0, 0], sizes = [1, 1, 16, 16], strides = [1, 1, 1, 1]} : vector<2x1x16x16xf32> to vector<1x1x16x16xf32>
    %483 = vector.shape_cast %482 : vector<1x1x16x16xf32> to vector<1x16x16xf32>
    %484 = vector.broadcast %481 : f32 to vector<1x16x16xf32>
    %485 = arith.mulf %484, %483 : vector<1x16x16xf32>
    %486 = arith.addf %480, %485 : vector<1x16x16xf32>
    %c2_323 = arith.constant 2 : index
    %c0_324 = arith.constant 0 : index
    %c0_325 = arith.constant 0 : index
    %c3_326 = arith.constant 3 : index
    %c0_327 = arith.constant 0 : index
    %487 = vector.load %arg5[%c2_323, %c0_324, %c0_325, %c3_326, %c0_327] : memref<7x2x1x22x16xf32, #tpu.memory_space<vmem>>, vector<1x2x1x16x16xf32>
    %488 = vector.shape_cast %487 : vector<1x2x1x16x16xf32> to vector<2x1x16x16xf32>
    %c23 = arith.constant 23 : index
    %489 = memref.load %arg2[%c23] : memref<98xf32, #tpu.memory_space<smem>>
    %490 = vector.extract_strided_slice %488 {offsets = [0, 0, 0, 0], sizes = [1, 1, 16, 16], strides = [1, 1, 1, 1]} : vector<2x1x16x16xf32> to vector<1x1x16x16xf32>
    %491 = vector.shape_cast %490 : vector<1x1x16x16xf32> to vector<1x16x16xf32>
    %492 = vector.broadcast %489 : f32 to vector<1x16x16xf32>
    %493 = arith.mulf %492, %491 : vector<1x16x16xf32>
    %494 = arith.addf %486, %493 : vector<1x16x16xf32>
    %c72 = arith.constant 72 : index
    %495 = memref.load %arg2[%c72] : memref<98xf32, #tpu.memory_space<smem>>
    %496 = vector.extract_strided_slice %488 {offsets = [1, 0, 0, 0], sizes = [1, 1, 16, 16], strides = [1, 1, 1, 1]} : vector<2x1x16x16xf32> to vector<1x1x16x16xf32>
    %497 = vector.shape_cast %496 : vector<1x1x16x16xf32> to vector<1x16x16xf32>
    %498 = vector.broadcast %495 : f32 to vector<1x16x16xf32>
    %499 = arith.mulf %498, %497 : vector<1x16x16xf32>
    %500 = arith.addf %494, %499 : vector<1x16x16xf32>
    %c3_328 = arith.constant 3 : index
    %c0_329 = arith.constant 0 : index
    %c0_330 = arith.constant 0 : index
    %c3_331 = arith.constant 3 : index
    %c0_332 = arith.constant 0 : index
    %501 = vector.load %arg5[%c3_328, %c0_329, %c0_330, %c3_331, %c0_332] : memref<7x2x1x22x16xf32, #tpu.memory_space<vmem>>, vector<1x2x1x16x16xf32>
    %502 = vector.shape_cast %501 : vector<1x2x1x16x16xf32> to vector<2x1x16x16xf32>
    %c24 = arith.constant 24 : index
    %503 = memref.load %arg2[%c24] : memref<98xf32, #tpu.memory_space<smem>>
    %504 = vector.extract_strided_slice %502 {offsets = [0, 0, 0, 0], sizes = [1, 1, 16, 16], strides = [1, 1, 1, 1]} : vector<2x1x16x16xf32> to vector<1x1x16x16xf32>
    %505 = vector.shape_cast %504 : vector<1x1x16x16xf32> to vector<1x16x16xf32>
    %506 = vector.broadcast %503 : f32 to vector<1x16x16xf32>
    %507 = arith.mulf %506, %505 : vector<1x16x16xf32>
    %508 = arith.addf %500, %507 : vector<1x16x16xf32>
    %c73 = arith.constant 73 : index
    %509 = memref.load %arg2[%c73] : memref<98xf32, #tpu.memory_space<smem>>
    %510 = vector.extract_strided_slice %502 {offsets = [1, 0, 0, 0], sizes = [1, 1, 16, 16], strides = [1, 1, 1, 1]} : vector<2x1x16x16xf32> to vector<1x1x16x16xf32>
    %511 = vector.shape_cast %510 : vector<1x1x16x16xf32> to vector<1x16x16xf32>
    %512 = vector.broadcast %509 : f32 to vector<1x16x16xf32>
    %513 = arith.mulf %512, %511 : vector<1x16x16xf32>
    %514 = arith.addf %508, %513 : vector<1x16x16xf32>
    %c4_333 = arith.constant 4 : index
    %c0_334 = arith.constant 0 : index
    %c0_335 = arith.constant 0 : index
    %c3_336 = arith.constant 3 : index
    %c0_337 = arith.constant 0 : index
    %515 = vector.load %arg5[%c4_333, %c0_334, %c0_335, %c3_336, %c0_337] : memref<7x2x1x22x16xf32, #tpu.memory_space<vmem>>, vector<1x2x1x16x16xf32>
    %516 = vector.shape_cast %515 : vector<1x2x1x16x16xf32> to vector<2x1x16x16xf32>
    %c25 = arith.constant 25 : index
    %517 = memref.load %arg2[%c25] : memref<98xf32, #tpu.memory_space<smem>>
    %518 = vector.extract_strided_slice %516 {offsets = [0, 0, 0, 0], sizes = [1, 1, 16, 16], strides = [1, 1, 1, 1]} : vector<2x1x16x16xf32> to vector<1x1x16x16xf32>
    %519 = vector.shape_cast %518 : vector<1x1x16x16xf32> to vector<1x16x16xf32>
    %520 = vector.broadcast %517 : f32 to vector<1x16x16xf32>
    %521 = arith.mulf %520, %519 : vector<1x16x16xf32>
    %522 = arith.addf %514, %521 : vector<1x16x16xf32>
    %c74 = arith.constant 74 : index
    %523 = memref.load %arg2[%c74] : memref<98xf32, #tpu.memory_space<smem>>
    %524 = vector.extract_strided_slice %516 {offsets = [1, 0, 0, 0], sizes = [1, 1, 16, 16], strides = [1, 1, 1, 1]} : vector<2x1x16x16xf32> to vector<1x1x16x16xf32>
    %525 = vector.shape_cast %524 : vector<1x1x16x16xf32> to vector<1x16x16xf32>
    %526 = vector.broadcast %523 : f32 to vector<1x16x16xf32>
    %527 = arith.mulf %526, %525 : vector<1x16x16xf32>
    %528 = arith.addf %522, %527 : vector<1x16x16xf32>
    %c5_338 = arith.constant 5 : index
    %c0_339 = arith.constant 0 : index
    %c0_340 = arith.constant 0 : index
    %c3_341 = arith.constant 3 : index
    %c0_342 = arith.constant 0 : index
    %529 = vector.load %arg5[%c5_338, %c0_339, %c0_340, %c3_341, %c0_342] : memref<7x2x1x22x16xf32, #tpu.memory_space<vmem>>, vector<1x2x1x16x16xf32>
    %530 = vector.shape_cast %529 : vector<1x2x1x16x16xf32> to vector<2x1x16x16xf32>
    %c26 = arith.constant 26 : index
    %531 = memref.load %arg2[%c26] : memref<98xf32, #tpu.memory_space<smem>>
    %532 = vector.extract_strided_slice %530 {offsets = [0, 0, 0, 0], sizes = [1, 1, 16, 16], strides = [1, 1, 1, 1]} : vector<2x1x16x16xf32> to vector<1x1x16x16xf32>
    %533 = vector.shape_cast %532 : vector<1x1x16x16xf32> to vector<1x16x16xf32>
    %534 = vector.broadcast %531 : f32 to vector<1x16x16xf32>
    %535 = arith.mulf %534, %533 : vector<1x16x16xf32>
    %536 = arith.addf %528, %535 : vector<1x16x16xf32>
    %c75 = arith.constant 75 : index
    %537 = memref.load %arg2[%c75] : memref<98xf32, #tpu.memory_space<smem>>
    %538 = vector.extract_strided_slice %530 {offsets = [1, 0, 0, 0], sizes = [1, 1, 16, 16], strides = [1, 1, 1, 1]} : vector<2x1x16x16xf32> to vector<1x1x16x16xf32>
    %539 = vector.shape_cast %538 : vector<1x1x16x16xf32> to vector<1x16x16xf32>
    %540 = vector.broadcast %537 : f32 to vector<1x16x16xf32>
    %541 = arith.mulf %540, %539 : vector<1x16x16xf32>
    %542 = arith.addf %536, %541 : vector<1x16x16xf32>
    %c6_343 = arith.constant 6 : index
    %c0_344 = arith.constant 0 : index
    %c0_345 = arith.constant 0 : index
    %c3_346 = arith.constant 3 : index
    %c0_347 = arith.constant 0 : index
    %543 = vector.load %arg5[%c6_343, %c0_344, %c0_345, %c3_346, %c0_347] : memref<7x2x1x22x16xf32, #tpu.memory_space<vmem>>, vector<1x2x1x16x16xf32>
    %544 = vector.shape_cast %543 : vector<1x2x1x16x16xf32> to vector<2x1x16x16xf32>
    %c27 = arith.constant 27 : index
    %545 = memref.load %arg2[%c27] : memref<98xf32, #tpu.memory_space<smem>>
    %546 = vector.extract_strided_slice %544 {offsets = [0, 0, 0, 0], sizes = [1, 1, 16, 16], strides = [1, 1, 1, 1]} : vector<2x1x16x16xf32> to vector<1x1x16x16xf32>
    %547 = vector.shape_cast %546 : vector<1x1x16x16xf32> to vector<1x16x16xf32>
    %548 = vector.broadcast %545 : f32 to vector<1x16x16xf32>
    %549 = arith.mulf %548, %547 : vector<1x16x16xf32>
    %550 = arith.addf %542, %549 : vector<1x16x16xf32>
    %c76 = arith.constant 76 : index
    %551 = memref.load %arg2[%c76] : memref<98xf32, #tpu.memory_space<smem>>
    %552 = vector.extract_strided_slice %544 {offsets = [1, 0, 0, 0], sizes = [1, 1, 16, 16], strides = [1, 1, 1, 1]} : vector<2x1x16x16xf32> to vector<1x1x16x16xf32>
    %553 = vector.shape_cast %552 : vector<1x1x16x16xf32> to vector<1x16x16xf32>
    %554 = vector.broadcast %551 : f32 to vector<1x16x16xf32>
    %555 = arith.mulf %554, %553 : vector<1x16x16xf32>
    %556 = arith.addf %550, %555 : vector<1x16x16xf32>
    %c0_348 = arith.constant 0 : index
    %c0_349 = arith.constant 0 : index
    %c0_350 = arith.constant 0 : index
    %c4_351 = arith.constant 4 : index
    %c0_352 = arith.constant 0 : index
    %557 = vector.load %arg5[%c0_348, %c0_349, %c0_350, %c4_351, %c0_352] : memref<7x2x1x22x16xf32, #tpu.memory_space<vmem>>, vector<1x2x1x16x16xf32>
    %558 = vector.shape_cast %557 : vector<1x2x1x16x16xf32> to vector<2x1x16x16xf32>
    %c28 = arith.constant 28 : index
    %559 = memref.load %arg2[%c28] : memref<98xf32, #tpu.memory_space<smem>>
    %560 = vector.extract_strided_slice %558 {offsets = [0, 0, 0, 0], sizes = [1, 1, 16, 16], strides = [1, 1, 1, 1]} : vector<2x1x16x16xf32> to vector<1x1x16x16xf32>
    %561 = vector.shape_cast %560 : vector<1x1x16x16xf32> to vector<1x16x16xf32>
    %562 = vector.broadcast %559 : f32 to vector<1x16x16xf32>
    %563 = arith.mulf %562, %561 : vector<1x16x16xf32>
    %564 = arith.addf %556, %563 : vector<1x16x16xf32>
    %c77 = arith.constant 77 : index
    %565 = memref.load %arg2[%c77] : memref<98xf32, #tpu.memory_space<smem>>
    %566 = vector.extract_strided_slice %558 {offsets = [1, 0, 0, 0], sizes = [1, 1, 16, 16], strides = [1, 1, 1, 1]} : vector<2x1x16x16xf32> to vector<1x1x16x16xf32>
    %567 = vector.shape_cast %566 : vector<1x1x16x16xf32> to vector<1x16x16xf32>
    %568 = vector.broadcast %565 : f32 to vector<1x16x16xf32>
    %569 = arith.mulf %568, %567 : vector<1x16x16xf32>
    %570 = arith.addf %564, %569 : vector<1x16x16xf32>
    %c1_353 = arith.constant 1 : index
    %c0_354 = arith.constant 0 : index
    %c0_355 = arith.constant 0 : index
    %c4_356 = arith.constant 4 : index
    %c0_357 = arith.constant 0 : index
    %571 = vector.load %arg5[%c1_353, %c0_354, %c0_355, %c4_356, %c0_357] : memref<7x2x1x22x16xf32, #tpu.memory_space<vmem>>, vector<1x2x1x16x16xf32>
    %572 = vector.shape_cast %571 : vector<1x2x1x16x16xf32> to vector<2x1x16x16xf32>
    %c29 = arith.constant 29 : index
    %573 = memref.load %arg2[%c29] : memref<98xf32, #tpu.memory_space<smem>>
    %574 = vector.extract_strided_slice %572 {offsets = [0, 0, 0, 0], sizes = [1, 1, 16, 16], strides = [1, 1, 1, 1]} : vector<2x1x16x16xf32> to vector<1x1x16x16xf32>
    %575 = vector.shape_cast %574 : vector<1x1x16x16xf32> to vector<1x16x16xf32>
    %576 = vector.broadcast %573 : f32 to vector<1x16x16xf32>
    %577 = arith.mulf %576, %575 : vector<1x16x16xf32>
    %578 = arith.addf %570, %577 : vector<1x16x16xf32>
    %c78 = arith.constant 78 : index
    %579 = memref.load %arg2[%c78] : memref<98xf32, #tpu.memory_space<smem>>
    %580 = vector.extract_strided_slice %572 {offsets = [1, 0, 0, 0], sizes = [1, 1, 16, 16], strides = [1, 1, 1, 1]} : vector<2x1x16x16xf32> to vector<1x1x16x16xf32>
    %581 = vector.shape_cast %580 : vector<1x1x16x16xf32> to vector<1x16x16xf32>
    %582 = vector.broadcast %579 : f32 to vector<1x16x16xf32>
    %583 = arith.mulf %582, %581 : vector<1x16x16xf32>
    %584 = arith.addf %578, %583 : vector<1x16x16xf32>
    %c2_358 = arith.constant 2 : index
    %c0_359 = arith.constant 0 : index
    %c0_360 = arith.constant 0 : index
    %c4_361 = arith.constant 4 : index
    %c0_362 = arith.constant 0 : index
    %585 = vector.load %arg5[%c2_358, %c0_359, %c0_360, %c4_361, %c0_362] : memref<7x2x1x22x16xf32, #tpu.memory_space<vmem>>, vector<1x2x1x16x16xf32>
    %586 = vector.shape_cast %585 : vector<1x2x1x16x16xf32> to vector<2x1x16x16xf32>
    %c30 = arith.constant 30 : index
    %587 = memref.load %arg2[%c30] : memref<98xf32, #tpu.memory_space<smem>>
    %588 = vector.extract_strided_slice %586 {offsets = [0, 0, 0, 0], sizes = [1, 1, 16, 16], strides = [1, 1, 1, 1]} : vector<2x1x16x16xf32> to vector<1x1x16x16xf32>
    %589 = vector.shape_cast %588 : vector<1x1x16x16xf32> to vector<1x16x16xf32>
    %590 = vector.broadcast %587 : f32 to vector<1x16x16xf32>
    %591 = arith.mulf %590, %589 : vector<1x16x16xf32>
    %592 = arith.addf %584, %591 : vector<1x16x16xf32>
    %c79 = arith.constant 79 : index
    %593 = memref.load %arg2[%c79] : memref<98xf32, #tpu.memory_space<smem>>
    %594 = vector.extract_strided_slice %586 {offsets = [1, 0, 0, 0], sizes = [1, 1, 16, 16], strides = [1, 1, 1, 1]} : vector<2x1x16x16xf32> to vector<1x1x16x16xf32>
    %595 = vector.shape_cast %594 : vector<1x1x16x16xf32> to vector<1x16x16xf32>
    %596 = vector.broadcast %593 : f32 to vector<1x16x16xf32>
    %597 = arith.mulf %596, %595 : vector<1x16x16xf32>
    %598 = arith.addf %592, %597 : vector<1x16x16xf32>
    %c3_363 = arith.constant 3 : index
    %c0_364 = arith.constant 0 : index
    %c0_365 = arith.constant 0 : index
    %c4_366 = arith.constant 4 : index
    %c0_367 = arith.constant 0 : index
    %599 = vector.load %arg5[%c3_363, %c0_364, %c0_365, %c4_366, %c0_367] : memref<7x2x1x22x16xf32, #tpu.memory_space<vmem>>, vector<1x2x1x16x16xf32>
    %600 = vector.shape_cast %599 : vector<1x2x1x16x16xf32> to vector<2x1x16x16xf32>
    %c31 = arith.constant 31 : index
    %601 = memref.load %arg2[%c31] : memref<98xf32, #tpu.memory_space<smem>>
    %602 = vector.extract_strided_slice %600 {offsets = [0, 0, 0, 0], sizes = [1, 1, 16, 16], strides = [1, 1, 1, 1]} : vector<2x1x16x16xf32> to vector<1x1x16x16xf32>
    %603 = vector.shape_cast %602 : vector<1x1x16x16xf32> to vector<1x16x16xf32>
    %604 = vector.broadcast %601 : f32 to vector<1x16x16xf32>
    %605 = arith.mulf %604, %603 : vector<1x16x16xf32>
    %606 = arith.addf %598, %605 : vector<1x16x16xf32>
    %c80 = arith.constant 80 : index
    %607 = memref.load %arg2[%c80] : memref<98xf32, #tpu.memory_space<smem>>
    %608 = vector.extract_strided_slice %600 {offsets = [1, 0, 0, 0], sizes = [1, 1, 16, 16], strides = [1, 1, 1, 1]} : vector<2x1x16x16xf32> to vector<1x1x16x16xf32>
    %609 = vector.shape_cast %608 : vector<1x1x16x16xf32> to vector<1x16x16xf32>
    %610 = vector.broadcast %607 : f32 to vector<1x16x16xf32>
    %611 = arith.mulf %610, %609 : vector<1x16x16xf32>
    %612 = arith.addf %606, %611 : vector<1x16x16xf32>
    %c4_368 = arith.constant 4 : index
    %c0_369 = arith.constant 0 : index
    %c0_370 = arith.constant 0 : index
    %c4_371 = arith.constant 4 : index
    %c0_372 = arith.constant 0 : index
    %613 = vector.load %arg5[%c4_368, %c0_369, %c0_370, %c4_371, %c0_372] : memref<7x2x1x22x16xf32, #tpu.memory_space<vmem>>, vector<1x2x1x16x16xf32>
    %614 = vector.shape_cast %613 : vector<1x2x1x16x16xf32> to vector<2x1x16x16xf32>
    %c32 = arith.constant 32 : index
    %615 = memref.load %arg2[%c32] : memref<98xf32, #tpu.memory_space<smem>>
    %616 = vector.extract_strided_slice %614 {offsets = [0, 0, 0, 0], sizes = [1, 1, 16, 16], strides = [1, 1, 1, 1]} : vector<2x1x16x16xf32> to vector<1x1x16x16xf32>
    %617 = vector.shape_cast %616 : vector<1x1x16x16xf32> to vector<1x16x16xf32>
    %618 = vector.broadcast %615 : f32 to vector<1x16x16xf32>
    %619 = arith.mulf %618, %617 : vector<1x16x16xf32>
    %620 = arith.addf %612, %619 : vector<1x16x16xf32>
    %c81 = arith.constant 81 : index
    %621 = memref.load %arg2[%c81] : memref<98xf32, #tpu.memory_space<smem>>
    %622 = vector.extract_strided_slice %614 {offsets = [1, 0, 0, 0], sizes = [1, 1, 16, 16], strides = [1, 1, 1, 1]} : vector<2x1x16x16xf32> to vector<1x1x16x16xf32>
    %623 = vector.shape_cast %622 : vector<1x1x16x16xf32> to vector<1x16x16xf32>
    %624 = vector.broadcast %621 : f32 to vector<1x16x16xf32>
    %625 = arith.mulf %624, %623 : vector<1x16x16xf32>
    %626 = arith.addf %620, %625 : vector<1x16x16xf32>
    %c5_373 = arith.constant 5 : index
    %c0_374 = arith.constant 0 : index
    %c0_375 = arith.constant 0 : index
    %c4_376 = arith.constant 4 : index
    %c0_377 = arith.constant 0 : index
    %627 = vector.load %arg5[%c5_373, %c0_374, %c0_375, %c4_376, %c0_377] : memref<7x2x1x22x16xf32, #tpu.memory_space<vmem>>, vector<1x2x1x16x16xf32>
    %628 = vector.shape_cast %627 : vector<1x2x1x16x16xf32> to vector<2x1x16x16xf32>
    %c33 = arith.constant 33 : index
    %629 = memref.load %arg2[%c33] : memref<98xf32, #tpu.memory_space<smem>>
    %630 = vector.extract_strided_slice %628 {offsets = [0, 0, 0, 0], sizes = [1, 1, 16, 16], strides = [1, 1, 1, 1]} : vector<2x1x16x16xf32> to vector<1x1x16x16xf32>
    %631 = vector.shape_cast %630 : vector<1x1x16x16xf32> to vector<1x16x16xf32>
    %632 = vector.broadcast %629 : f32 to vector<1x16x16xf32>
    %633 = arith.mulf %632, %631 : vector<1x16x16xf32>
    %634 = arith.addf %626, %633 : vector<1x16x16xf32>
    %c82 = arith.constant 82 : index
    %635 = memref.load %arg2[%c82] : memref<98xf32, #tpu.memory_space<smem>>
    %636 = vector.extract_strided_slice %628 {offsets = [1, 0, 0, 0], sizes = [1, 1, 16, 16], strides = [1, 1, 1, 1]} : vector<2x1x16x16xf32> to vector<1x1x16x16xf32>
    %637 = vector.shape_cast %636 : vector<1x1x16x16xf32> to vector<1x16x16xf32>
    %638 = vector.broadcast %635 : f32 to vector<1x16x16xf32>
    %639 = arith.mulf %638, %637 : vector<1x16x16xf32>
    %640 = arith.addf %634, %639 : vector<1x16x16xf32>
    %c6_378 = arith.constant 6 : index
    %c0_379 = arith.constant 0 : index
    %c0_380 = arith.constant 0 : index
    %c4_381 = arith.constant 4 : index
    %c0_382 = arith.constant 0 : index
    %641 = vector.load %arg5[%c6_378, %c0_379, %c0_380, %c4_381, %c0_382] : memref<7x2x1x22x16xf32, #tpu.memory_space<vmem>>, vector<1x2x1x16x16xf32>
    %642 = vector.shape_cast %641 : vector<1x2x1x16x16xf32> to vector<2x1x16x16xf32>
    %c34 = arith.constant 34 : index
    %643 = memref.load %arg2[%c34] : memref<98xf32, #tpu.memory_space<smem>>
    %644 = vector.extract_strided_slice %642 {offsets = [0, 0, 0, 0], sizes = [1, 1, 16, 16], strides = [1, 1, 1, 1]} : vector<2x1x16x16xf32> to vector<1x1x16x16xf32>
    %645 = vector.shape_cast %644 : vector<1x1x16x16xf32> to vector<1x16x16xf32>
    %646 = vector.broadcast %643 : f32 to vector<1x16x16xf32>
    %647 = arith.mulf %646, %645 : vector<1x16x16xf32>
    %648 = arith.addf %640, %647 : vector<1x16x16xf32>
    %c83 = arith.constant 83 : index
    %649 = memref.load %arg2[%c83] : memref<98xf32, #tpu.memory_space<smem>>
    %650 = vector.extract_strided_slice %642 {offsets = [1, 0, 0, 0], sizes = [1, 1, 16, 16], strides = [1, 1, 1, 1]} : vector<2x1x16x16xf32> to vector<1x1x16x16xf32>
    %651 = vector.shape_cast %650 : vector<1x1x16x16xf32> to vector<1x16x16xf32>
    %652 = vector.broadcast %649 : f32 to vector<1x16x16xf32>
    %653 = arith.mulf %652, %651 : vector<1x16x16xf32>
    %654 = arith.addf %648, %653 : vector<1x16x16xf32>
    %c0_383 = arith.constant 0 : index
    %c0_384 = arith.constant 0 : index
    %c0_385 = arith.constant 0 : index
    %c5_386 = arith.constant 5 : index
    %c0_387 = arith.constant 0 : index
    %655 = vector.load %arg5[%c0_383, %c0_384, %c0_385, %c5_386, %c0_387] : memref<7x2x1x22x16xf32, #tpu.memory_space<vmem>>, vector<1x2x1x16x16xf32>
    %656 = vector.shape_cast %655 : vector<1x2x1x16x16xf32> to vector<2x1x16x16xf32>
    %c35 = arith.constant 35 : index
    %657 = memref.load %arg2[%c35] : memref<98xf32, #tpu.memory_space<smem>>
    %658 = vector.extract_strided_slice %656 {offsets = [0, 0, 0, 0], sizes = [1, 1, 16, 16], strides = [1, 1, 1, 1]} : vector<2x1x16x16xf32> to vector<1x1x16x16xf32>
    %659 = vector.shape_cast %658 : vector<1x1x16x16xf32> to vector<1x16x16xf32>
    %660 = vector.broadcast %657 : f32 to vector<1x16x16xf32>
    %661 = arith.mulf %660, %659 : vector<1x16x16xf32>
    %662 = arith.addf %654, %661 : vector<1x16x16xf32>
    %c84 = arith.constant 84 : index
    %663 = memref.load %arg2[%c84] : memref<98xf32, #tpu.memory_space<smem>>
    %664 = vector.extract_strided_slice %656 {offsets = [1, 0, 0, 0], sizes = [1, 1, 16, 16], strides = [1, 1, 1, 1]} : vector<2x1x16x16xf32> to vector<1x1x16x16xf32>
    %665 = vector.shape_cast %664 : vector<1x1x16x16xf32> to vector<1x16x16xf32>
    %666 = vector.broadcast %663 : f32 to vector<1x16x16xf32>
    %667 = arith.mulf %666, %665 : vector<1x16x16xf32>
    %668 = arith.addf %662, %667 : vector<1x16x16xf32>
    %c1_388 = arith.constant 1 : index
    %c0_389 = arith.constant 0 : index
    %c0_390 = arith.constant 0 : index
    %c5_391 = arith.constant 5 : index
    %c0_392 = arith.constant 0 : index
    %669 = vector.load %arg5[%c1_388, %c0_389, %c0_390, %c5_391, %c0_392] : memref<7x2x1x22x16xf32, #tpu.memory_space<vmem>>, vector<1x2x1x16x16xf32>
    %670 = vector.shape_cast %669 : vector<1x2x1x16x16xf32> to vector<2x1x16x16xf32>
    %c36 = arith.constant 36 : index
    %671 = memref.load %arg2[%c36] : memref<98xf32, #tpu.memory_space<smem>>
    %672 = vector.extract_strided_slice %670 {offsets = [0, 0, 0, 0], sizes = [1, 1, 16, 16], strides = [1, 1, 1, 1]} : vector<2x1x16x16xf32> to vector<1x1x16x16xf32>
    %673 = vector.shape_cast %672 : vector<1x1x16x16xf32> to vector<1x16x16xf32>
    %674 = vector.broadcast %671 : f32 to vector<1x16x16xf32>
    %675 = arith.mulf %674, %673 : vector<1x16x16xf32>
    %676 = arith.addf %668, %675 : vector<1x16x16xf32>
    %c85 = arith.constant 85 : index
    %677 = memref.load %arg2[%c85] : memref<98xf32, #tpu.memory_space<smem>>
    %678 = vector.extract_strided_slice %670 {offsets = [1, 0, 0, 0], sizes = [1, 1, 16, 16], strides = [1, 1, 1, 1]} : vector<2x1x16x16xf32> to vector<1x1x16x16xf32>
    %679 = vector.shape_cast %678 : vector<1x1x16x16xf32> to vector<1x16x16xf32>
    %680 = vector.broadcast %677 : f32 to vector<1x16x16xf32>
    %681 = arith.mulf %680, %679 : vector<1x16x16xf32>
    %682 = arith.addf %676, %681 : vector<1x16x16xf32>
    %c2_393 = arith.constant 2 : index
    %c0_394 = arith.constant 0 : index
    %c0_395 = arith.constant 0 : index
    %c5_396 = arith.constant 5 : index
    %c0_397 = arith.constant 0 : index
    %683 = vector.load %arg5[%c2_393, %c0_394, %c0_395, %c5_396, %c0_397] : memref<7x2x1x22x16xf32, #tpu.memory_space<vmem>>, vector<1x2x1x16x16xf32>
    %684 = vector.shape_cast %683 : vector<1x2x1x16x16xf32> to vector<2x1x16x16xf32>
    %c37 = arith.constant 37 : index
    %685 = memref.load %arg2[%c37] : memref<98xf32, #tpu.memory_space<smem>>
    %686 = vector.extract_strided_slice %684 {offsets = [0, 0, 0, 0], sizes = [1, 1, 16, 16], strides = [1, 1, 1, 1]} : vector<2x1x16x16xf32> to vector<1x1x16x16xf32>
    %687 = vector.shape_cast %686 : vector<1x1x16x16xf32> to vector<1x16x16xf32>
    %688 = vector.broadcast %685 : f32 to vector<1x16x16xf32>
    %689 = arith.mulf %688, %687 : vector<1x16x16xf32>
    %690 = arith.addf %682, %689 : vector<1x16x16xf32>
    %c86 = arith.constant 86 : index
    %691 = memref.load %arg2[%c86] : memref<98xf32, #tpu.memory_space<smem>>
    %692 = vector.extract_strided_slice %684 {offsets = [1, 0, 0, 0], sizes = [1, 1, 16, 16], strides = [1, 1, 1, 1]} : vector<2x1x16x16xf32> to vector<1x1x16x16xf32>
    %693 = vector.shape_cast %692 : vector<1x1x16x16xf32> to vector<1x16x16xf32>
    %694 = vector.broadcast %691 : f32 to vector<1x16x16xf32>
    %695 = arith.mulf %694, %693 : vector<1x16x16xf32>
    %696 = arith.addf %690, %695 : vector<1x16x16xf32>
    %c3_398 = arith.constant 3 : index
    %c0_399 = arith.constant 0 : index
    %c0_400 = arith.constant 0 : index
    %c5_401 = arith.constant 5 : index
    %c0_402 = arith.constant 0 : index
    %697 = vector.load %arg5[%c3_398, %c0_399, %c0_400, %c5_401, %c0_402] : memref<7x2x1x22x16xf32, #tpu.memory_space<vmem>>, vector<1x2x1x16x16xf32>
    %698 = vector.shape_cast %697 : vector<1x2x1x16x16xf32> to vector<2x1x16x16xf32>
    %c38 = arith.constant 38 : index
    %699 = memref.load %arg2[%c38] : memref<98xf32, #tpu.memory_space<smem>>
    %700 = vector.extract_strided_slice %698 {offsets = [0, 0, 0, 0], sizes = [1, 1, 16, 16], strides = [1, 1, 1, 1]} : vector<2x1x16x16xf32> to vector<1x1x16x16xf32>
    %701 = vector.shape_cast %700 : vector<1x1x16x16xf32> to vector<1x16x16xf32>
    %702 = vector.broadcast %699 : f32 to vector<1x16x16xf32>
    %703 = arith.mulf %702, %701 : vector<1x16x16xf32>
    %704 = arith.addf %696, %703 : vector<1x16x16xf32>
    %c87 = arith.constant 87 : index
    %705 = memref.load %arg2[%c87] : memref<98xf32, #tpu.memory_space<smem>>
    %706 = vector.extract_strided_slice %698 {offsets = [1, 0, 0, 0], sizes = [1, 1, 16, 16], strides = [1, 1, 1, 1]} : vector<2x1x16x16xf32> to vector<1x1x16x16xf32>
    %707 = vector.shape_cast %706 : vector<1x1x16x16xf32> to vector<1x16x16xf32>
    %708 = vector.broadcast %705 : f32 to vector<1x16x16xf32>
    %709 = arith.mulf %708, %707 : vector<1x16x16xf32>
    %710 = arith.addf %704, %709 : vector<1x16x16xf32>
    %c4_403 = arith.constant 4 : index
    %c0_404 = arith.constant 0 : index
    %c0_405 = arith.constant 0 : index
    %c5_406 = arith.constant 5 : index
    %c0_407 = arith.constant 0 : index
    %711 = vector.load %arg5[%c4_403, %c0_404, %c0_405, %c5_406, %c0_407] : memref<7x2x1x22x16xf32, #tpu.memory_space<vmem>>, vector<1x2x1x16x16xf32>
    %712 = vector.shape_cast %711 : vector<1x2x1x16x16xf32> to vector<2x1x16x16xf32>
    %c39 = arith.constant 39 : index
    %713 = memref.load %arg2[%c39] : memref<98xf32, #tpu.memory_space<smem>>
    %714 = vector.extract_strided_slice %712 {offsets = [0, 0, 0, 0], sizes = [1, 1, 16, 16], strides = [1, 1, 1, 1]} : vector<2x1x16x16xf32> to vector<1x1x16x16xf32>
    %715 = vector.shape_cast %714 : vector<1x1x16x16xf32> to vector<1x16x16xf32>
    %716 = vector.broadcast %713 : f32 to vector<1x16x16xf32>
    %717 = arith.mulf %716, %715 : vector<1x16x16xf32>
    %718 = arith.addf %710, %717 : vector<1x16x16xf32>
    %c88 = arith.constant 88 : index
    %719 = memref.load %arg2[%c88] : memref<98xf32, #tpu.memory_space<smem>>
    %720 = vector.extract_strided_slice %712 {offsets = [1, 0, 0, 0], sizes = [1, 1, 16, 16], strides = [1, 1, 1, 1]} : vector<2x1x16x16xf32> to vector<1x1x16x16xf32>
    %721 = vector.shape_cast %720 : vector<1x1x16x16xf32> to vector<1x16x16xf32>
    %722 = vector.broadcast %719 : f32 to vector<1x16x16xf32>
    %723 = arith.mulf %722, %721 : vector<1x16x16xf32>
    %724 = arith.addf %718, %723 : vector<1x16x16xf32>
    %c5_408 = arith.constant 5 : index
    %c0_409 = arith.constant 0 : index
    %c0_410 = arith.constant 0 : index
    %c5_411 = arith.constant 5 : index
    %c0_412 = arith.constant 0 : index
    %725 = vector.load %arg5[%c5_408, %c0_409, %c0_410, %c5_411, %c0_412] : memref<7x2x1x22x16xf32, #tpu.memory_space<vmem>>, vector<1x2x1x16x16xf32>
    %726 = vector.shape_cast %725 : vector<1x2x1x16x16xf32> to vector<2x1x16x16xf32>
    %c40 = arith.constant 40 : index
    %727 = memref.load %arg2[%c40] : memref<98xf32, #tpu.memory_space<smem>>
    %728 = vector.extract_strided_slice %726 {offsets = [0, 0, 0, 0], sizes = [1, 1, 16, 16], strides = [1, 1, 1, 1]} : vector<2x1x16x16xf32> to vector<1x1x16x16xf32>
    %729 = vector.shape_cast %728 : vector<1x1x16x16xf32> to vector<1x16x16xf32>
    %730 = vector.broadcast %727 : f32 to vector<1x16x16xf32>
    %731 = arith.mulf %730, %729 : vector<1x16x16xf32>
    %732 = arith.addf %724, %731 : vector<1x16x16xf32>
    %c89 = arith.constant 89 : index
    %733 = memref.load %arg2[%c89] : memref<98xf32, #tpu.memory_space<smem>>
    %734 = vector.extract_strided_slice %726 {offsets = [1, 0, 0, 0], sizes = [1, 1, 16, 16], strides = [1, 1, 1, 1]} : vector<2x1x16x16xf32> to vector<1x1x16x16xf32>
    %735 = vector.shape_cast %734 : vector<1x1x16x16xf32> to vector<1x16x16xf32>
    %736 = vector.broadcast %733 : f32 to vector<1x16x16xf32>
    %737 = arith.mulf %736, %735 : vector<1x16x16xf32>
    %738 = arith.addf %732, %737 : vector<1x16x16xf32>
    %c6_413 = arith.constant 6 : index
    %c0_414 = arith.constant 0 : index
    %c0_415 = arith.constant 0 : index
    %c5_416 = arith.constant 5 : index
    %c0_417 = arith.constant 0 : index
    %739 = vector.load %arg5[%c6_413, %c0_414, %c0_415, %c5_416, %c0_417] : memref<7x2x1x22x16xf32, #tpu.memory_space<vmem>>, vector<1x2x1x16x16xf32>
    %740 = vector.shape_cast %739 : vector<1x2x1x16x16xf32> to vector<2x1x16x16xf32>
    %c41 = arith.constant 41 : index
    %741 = memref.load %arg2[%c41] : memref<98xf32, #tpu.memory_space<smem>>
    %742 = vector.extract_strided_slice %740 {offsets = [0, 0, 0, 0], sizes = [1, 1, 16, 16], strides = [1, 1, 1, 1]} : vector<2x1x16x16xf32> to vector<1x1x16x16xf32>
    %743 = vector.shape_cast %742 : vector<1x1x16x16xf32> to vector<1x16x16xf32>
    %744 = vector.broadcast %741 : f32 to vector<1x16x16xf32>
    %745 = arith.mulf %744, %743 : vector<1x16x16xf32>
    %746 = arith.addf %738, %745 : vector<1x16x16xf32>
    %c90 = arith.constant 90 : index
    %747 = memref.load %arg2[%c90] : memref<98xf32, #tpu.memory_space<smem>>
    %748 = vector.extract_strided_slice %740 {offsets = [1, 0, 0, 0], sizes = [1, 1, 16, 16], strides = [1, 1, 1, 1]} : vector<2x1x16x16xf32> to vector<1x1x16x16xf32>
    %749 = vector.shape_cast %748 : vector<1x1x16x16xf32> to vector<1x16x16xf32>
    %750 = vector.broadcast %747 : f32 to vector<1x16x16xf32>
    %751 = arith.mulf %750, %749 : vector<1x16x16xf32>
    %752 = arith.addf %746, %751 : vector<1x16x16xf32>
    %c0_418 = arith.constant 0 : index
    %c0_419 = arith.constant 0 : index
    %c0_420 = arith.constant 0 : index
    %c6_421 = arith.constant 6 : index
    %c0_422 = arith.constant 0 : index
    %753 = vector.load %arg5[%c0_418, %c0_419, %c0_420, %c6_421, %c0_422] : memref<7x2x1x22x16xf32, #tpu.memory_space<vmem>>, vector<1x2x1x16x16xf32>
    %754 = vector.shape_cast %753 : vector<1x2x1x16x16xf32> to vector<2x1x16x16xf32>
    %c42 = arith.constant 42 : index
    %755 = memref.load %arg2[%c42] : memref<98xf32, #tpu.memory_space<smem>>
    %756 = vector.extract_strided_slice %754 {offsets = [0, 0, 0, 0], sizes = [1, 1, 16, 16], strides = [1, 1, 1, 1]} : vector<2x1x16x16xf32> to vector<1x1x16x16xf32>
    %757 = vector.shape_cast %756 : vector<1x1x16x16xf32> to vector<1x16x16xf32>
    %758 = vector.broadcast %755 : f32 to vector<1x16x16xf32>
    %759 = arith.mulf %758, %757 : vector<1x16x16xf32>
    %760 = arith.addf %752, %759 : vector<1x16x16xf32>
    %c91 = arith.constant 91 : index
    %761 = memref.load %arg2[%c91] : memref<98xf32, #tpu.memory_space<smem>>
    %762 = vector.extract_strided_slice %754 {offsets = [1, 0, 0, 0], sizes = [1, 1, 16, 16], strides = [1, 1, 1, 1]} : vector<2x1x16x16xf32> to vector<1x1x16x16xf32>
    %763 = vector.shape_cast %762 : vector<1x1x16x16xf32> to vector<1x16x16xf32>
    %764 = vector.broadcast %761 : f32 to vector<1x16x16xf32>
    %765 = arith.mulf %764, %763 : vector<1x16x16xf32>
    %766 = arith.addf %760, %765 : vector<1x16x16xf32>
    %c1_423 = arith.constant 1 : index
    %c0_424 = arith.constant 0 : index
    %c0_425 = arith.constant 0 : index
    %c6_426 = arith.constant 6 : index
    %c0_427 = arith.constant 0 : index
    %767 = vector.load %arg5[%c1_423, %c0_424, %c0_425, %c6_426, %c0_427] : memref<7x2x1x22x16xf32, #tpu.memory_space<vmem>>, vector<1x2x1x16x16xf32>
    %768 = vector.shape_cast %767 : vector<1x2x1x16x16xf32> to vector<2x1x16x16xf32>
    %c43 = arith.constant 43 : index
    %769 = memref.load %arg2[%c43] : memref<98xf32, #tpu.memory_space<smem>>
    %770 = vector.extract_strided_slice %768 {offsets = [0, 0, 0, 0], sizes = [1, 1, 16, 16], strides = [1, 1, 1, 1]} : vector<2x1x16x16xf32> to vector<1x1x16x16xf32>
    %771 = vector.shape_cast %770 : vector<1x1x16x16xf32> to vector<1x16x16xf32>
    %772 = vector.broadcast %769 : f32 to vector<1x16x16xf32>
    %773 = arith.mulf %772, %771 : vector<1x16x16xf32>
    %774 = arith.addf %766, %773 : vector<1x16x16xf32>
    %c92 = arith.constant 92 : index
    %775 = memref.load %arg2[%c92] : memref<98xf32, #tpu.memory_space<smem>>
    %776 = vector.extract_strided_slice %768 {offsets = [1, 0, 0, 0], sizes = [1, 1, 16, 16], strides = [1, 1, 1, 1]} : vector<2x1x16x16xf32> to vector<1x1x16x16xf32>
    %777 = vector.shape_cast %776 : vector<1x1x16x16xf32> to vector<1x16x16xf32>
    %778 = vector.broadcast %775 : f32 to vector<1x16x16xf32>
    %779 = arith.mulf %778, %777 : vector<1x16x16xf32>
    %780 = arith.addf %774, %779 : vector<1x16x16xf32>
    %c2_428 = arith.constant 2 : index
    %c0_429 = arith.constant 0 : index
    %c0_430 = arith.constant 0 : index
    %c6_431 = arith.constant 6 : index
    %c0_432 = arith.constant 0 : index
    %781 = vector.load %arg5[%c2_428, %c0_429, %c0_430, %c6_431, %c0_432] : memref<7x2x1x22x16xf32, #tpu.memory_space<vmem>>, vector<1x2x1x16x16xf32>
    %782 = vector.shape_cast %781 : vector<1x2x1x16x16xf32> to vector<2x1x16x16xf32>
    %c44 = arith.constant 44 : index
    %783 = memref.load %arg2[%c44] : memref<98xf32, #tpu.memory_space<smem>>
    %784 = vector.extract_strided_slice %782 {offsets = [0, 0, 0, 0], sizes = [1, 1, 16, 16], strides = [1, 1, 1, 1]} : vector<2x1x16x16xf32> to vector<1x1x16x16xf32>
    %785 = vector.shape_cast %784 : vector<1x1x16x16xf32> to vector<1x16x16xf32>
    %786 = vector.broadcast %783 : f32 to vector<1x16x16xf32>
    %787 = arith.mulf %786, %785 : vector<1x16x16xf32>
    %788 = arith.addf %780, %787 : vector<1x16x16xf32>
    %c93 = arith.constant 93 : index
    %789 = memref.load %arg2[%c93] : memref<98xf32, #tpu.memory_space<smem>>
    %790 = vector.extract_strided_slice %782 {offsets = [1, 0, 0, 0], sizes = [1, 1, 16, 16], strides = [1, 1, 1, 1]} : vector<2x1x16x16xf32> to vector<1x1x16x16xf32>
    %791 = vector.shape_cast %790 : vector<1x1x16x16xf32> to vector<1x16x16xf32>
    %792 = vector.broadcast %789 : f32 to vector<1x16x16xf32>
    %793 = arith.mulf %792, %791 : vector<1x16x16xf32>
    %794 = arith.addf %788, %793 : vector<1x16x16xf32>
    %c3_433 = arith.constant 3 : index
    %c0_434 = arith.constant 0 : index
    %c0_435 = arith.constant 0 : index
    %c6_436 = arith.constant 6 : index
    %c0_437 = arith.constant 0 : index
    %795 = vector.load %arg5[%c3_433, %c0_434, %c0_435, %c6_436, %c0_437] : memref<7x2x1x22x16xf32, #tpu.memory_space<vmem>>, vector<1x2x1x16x16xf32>
    %796 = vector.shape_cast %795 : vector<1x2x1x16x16xf32> to vector<2x1x16x16xf32>
    %c45 = arith.constant 45 : index
    %797 = memref.load %arg2[%c45] : memref<98xf32, #tpu.memory_space<smem>>
    %798 = vector.extract_strided_slice %796 {offsets = [0, 0, 0, 0], sizes = [1, 1, 16, 16], strides = [1, 1, 1, 1]} : vector<2x1x16x16xf32> to vector<1x1x16x16xf32>
    %799 = vector.shape_cast %798 : vector<1x1x16x16xf32> to vector<1x16x16xf32>
    %800 = vector.broadcast %797 : f32 to vector<1x16x16xf32>
    %801 = arith.mulf %800, %799 : vector<1x16x16xf32>
    %802 = arith.addf %794, %801 : vector<1x16x16xf32>
    %c94 = arith.constant 94 : index
    %803 = memref.load %arg2[%c94] : memref<98xf32, #tpu.memory_space<smem>>
    %804 = vector.extract_strided_slice %796 {offsets = [1, 0, 0, 0], sizes = [1, 1, 16, 16], strides = [1, 1, 1, 1]} : vector<2x1x16x16xf32> to vector<1x1x16x16xf32>
    %805 = vector.shape_cast %804 : vector<1x1x16x16xf32> to vector<1x16x16xf32>
    %806 = vector.broadcast %803 : f32 to vector<1x16x16xf32>
    %807 = arith.mulf %806, %805 : vector<1x16x16xf32>
    %808 = arith.addf %802, %807 : vector<1x16x16xf32>
    %c4_438 = arith.constant 4 : index
    %c0_439 = arith.constant 0 : index
    %c0_440 = arith.constant 0 : index
    %c6_441 = arith.constant 6 : index
    %c0_442 = arith.constant 0 : index
    %809 = vector.load %arg5[%c4_438, %c0_439, %c0_440, %c6_441, %c0_442] : memref<7x2x1x22x16xf32, #tpu.memory_space<vmem>>, vector<1x2x1x16x16xf32>
    %810 = vector.shape_cast %809 : vector<1x2x1x16x16xf32> to vector<2x1x16x16xf32>
    %c46 = arith.constant 46 : index
    %811 = memref.load %arg2[%c46] : memref<98xf32, #tpu.memory_space<smem>>
    %812 = vector.extract_strided_slice %810 {offsets = [0, 0, 0, 0], sizes = [1, 1, 16, 16], strides = [1, 1, 1, 1]} : vector<2x1x16x16xf32> to vector<1x1x16x16xf32>
    %813 = vector.shape_cast %812 : vector<1x1x16x16xf32> to vector<1x16x16xf32>
    %814 = vector.broadcast %811 : f32 to vector<1x16x16xf32>
    %815 = arith.mulf %814, %813 : vector<1x16x16xf32>
    %816 = arith.addf %808, %815 : vector<1x16x16xf32>
    %c95 = arith.constant 95 : index
    %817 = memref.load %arg2[%c95] : memref<98xf32, #tpu.memory_space<smem>>
    %818 = vector.extract_strided_slice %810 {offsets = [1, 0, 0, 0], sizes = [1, 1, 16, 16], strides = [1, 1, 1, 1]} : vector<2x1x16x16xf32> to vector<1x1x16x16xf32>
    %819 = vector.shape_cast %818 : vector<1x1x16x16xf32> to vector<1x16x16xf32>
    %820 = vector.broadcast %817 : f32 to vector<1x16x16xf32>
    %821 = arith.mulf %820, %819 : vector<1x16x16xf32>
    %822 = arith.addf %816, %821 : vector<1x16x16xf32>
    %c5_443 = arith.constant 5 : index
    %c0_444 = arith.constant 0 : index
    %c0_445 = arith.constant 0 : index
    %c6_446 = arith.constant 6 : index
    %c0_447 = arith.constant 0 : index
    %823 = vector.load %arg5[%c5_443, %c0_444, %c0_445, %c6_446, %c0_447] : memref<7x2x1x22x16xf32, #tpu.memory_space<vmem>>, vector<1x2x1x16x16xf32>
    %824 = vector.shape_cast %823 : vector<1x2x1x16x16xf32> to vector<2x1x16x16xf32>
    %c47 = arith.constant 47 : index
    %825 = memref.load %arg2[%c47] : memref<98xf32, #tpu.memory_space<smem>>
    %826 = vector.extract_strided_slice %824 {offsets = [0, 0, 0, 0], sizes = [1, 1, 16, 16], strides = [1, 1, 1, 1]} : vector<2x1x16x16xf32> to vector<1x1x16x16xf32>
    %827 = vector.shape_cast %826 : vector<1x1x16x16xf32> to vector<1x16x16xf32>
    %828 = vector.broadcast %825 : f32 to vector<1x16x16xf32>
    %829 = arith.mulf %828, %827 : vector<1x16x16xf32>
    %830 = arith.addf %822, %829 : vector<1x16x16xf32>
    %c96 = arith.constant 96 : index
    %831 = memref.load %arg2[%c96] : memref<98xf32, #tpu.memory_space<smem>>
    %832 = vector.extract_strided_slice %824 {offsets = [1, 0, 0, 0], sizes = [1, 1, 16, 16], strides = [1, 1, 1, 1]} : vector<2x1x16x16xf32> to vector<1x1x16x16xf32>
    %833 = vector.shape_cast %832 : vector<1x1x16x16xf32> to vector<1x16x16xf32>
    %834 = vector.broadcast %831 : f32 to vector<1x16x16xf32>
    %835 = arith.mulf %834, %833 : vector<1x16x16xf32>
    %836 = arith.addf %830, %835 : vector<1x16x16xf32>
    %c6_448 = arith.constant 6 : index
    %c0_449 = arith.constant 0 : index
    %c0_450 = arith.constant 0 : index
    %c6_451 = arith.constant 6 : index
    %c0_452 = arith.constant 0 : index
    %837 = vector.load %arg5[%c6_448, %c0_449, %c0_450, %c6_451, %c0_452] : memref<7x2x1x22x16xf32, #tpu.memory_space<vmem>>, vector<1x2x1x16x16xf32>
    %838 = vector.shape_cast %837 : vector<1x2x1x16x16xf32> to vector<2x1x16x16xf32>
    %c48 = arith.constant 48 : index
    %839 = memref.load %arg2[%c48] : memref<98xf32, #tpu.memory_space<smem>>
    %840 = vector.extract_strided_slice %838 {offsets = [0, 0, 0, 0], sizes = [1, 1, 16, 16], strides = [1, 1, 1, 1]} : vector<2x1x16x16xf32> to vector<1x1x16x16xf32>
    %841 = vector.shape_cast %840 : vector<1x1x16x16xf32> to vector<1x16x16xf32>
    %842 = vector.broadcast %839 : f32 to vector<1x16x16xf32>
    %843 = arith.mulf %842, %841 : vector<1x16x16xf32>
    %844 = arith.addf %836, %843 : vector<1x16x16xf32>
    %c97 = arith.constant 97 : index
    %845 = memref.load %arg2[%c97] : memref<98xf32, #tpu.memory_space<smem>>
    %846 = vector.extract_strided_slice %838 {offsets = [1, 0, 0, 0], sizes = [1, 1, 16, 16], strides = [1, 1, 1, 1]} : vector<2x1x16x16xf32> to vector<1x1x16x16xf32>
    %847 = vector.shape_cast %846 : vector<1x1x16x16xf32> to vector<1x16x16xf32>
    %848 = vector.broadcast %845 : f32 to vector<1x16x16xf32>
    %849 = arith.mulf %848, %847 : vector<1x16x16xf32>
    %850 = arith.addf %844, %849 : vector<1x16x16xf32>
    %851 = arith.negf %850 : vector<1x16x16xf32>
    %852 = math.exp %851 : vector<1x16x16xf32>
    %cst_453 = arith.constant 1.000000e+00 : f32
    %853 = vector.broadcast %cst_453 : f32 to vector<1x16x16xf32>
    %854 = arith.addf %853, %852 : vector<1x16x16xf32>
    %855 = arith.divf %853, %854 : vector<1x16x16xf32>
    %856 = vector.extract_strided_slice %855 {offsets = [0, 0, 0], sizes = [1, 1, 16], strides = [1, 1, 1]} : vector<1x16x16xf32> to vector<1x1x16xf32>
    %857 = vector.shape_cast %856 : vector<1x1x16xf32> to vector<1x16xf32>
    %c0_454 = arith.constant 0 : index
    %c0_455 = arith.constant 0 : index
    %c0_456 = arith.constant 0 : index
    %858 = vector.load %arg6[%c0_454, %c0_455, %c0_456] : memref<1x1x256xf32, #tpu.memory_space<vmem>>, vector<1x1x16xf32>
    %859 = vector.shape_cast %858 : vector<1x1x16xf32> to vector<1x16xf32>
    %860 = vector.shape_cast %857 : vector<1x16xf32> to vector<1x1x16xf32>
    tpu.vector_store %arg6[%c0_454, %c0_455, %c0_456], %860 {strides = array<i32>} : memref<1x1x256xf32, #tpu.memory_space<vmem>>, vector<1x1x16xf32>,
    %861 = vector.extract_strided_slice %855 {offsets = [0, 1, 0], sizes = [1, 1, 16], strides = [1, 1, 1]} : vector<1x16x16xf32> to vector<1x1x16xf32>
    %862 = vector.shape_cast %861 : vector<1x1x16xf32> to vector<1x16xf32>
    %c0_457 = arith.constant 0 : index
    %c0_458 = arith.constant 0 : index
    %c16_459 = arith.constant 16 : index
    %863 = vector.load %arg6[%c0_457, %c0_458, %c16_459] : memref<1x1x256xf32, #tpu.memory_space<vmem>>, vector<1x1x16xf32>
    %864 = vector.shape_cast %863 : vector<1x1x16xf32> to vector<1x16xf32>
    %865 = vector.shape_cast %862 : vector<1x16xf32> to vector<1x1x16xf32>
    tpu.vector_store %arg6[%c0_457, %c0_458, %c16_459], %865 {strides = array<i32>} : memref<1x1x256xf32, #tpu.memory_space<vmem>>, vector<1x1x16xf32>,
    %866 = vector.extract_strided_slice %855 {offsets = [0, 2, 0], sizes = [1, 1, 16], strides = [1, 1, 1]} : vector<1x16x16xf32> to vector<1x1x16xf32>
    %867 = vector.shape_cast %866 : vector<1x1x16xf32> to vector<1x16xf32>
    %c0_460 = arith.constant 0 : index
    %c0_461 = arith.constant 0 : index
    %c32_462 = arith.constant 32 : index
    %868 = vector.load %arg6[%c0_460, %c0_461, %c32_462] : memref<1x1x256xf32, #tpu.memory_space<vmem>>, vector<1x1x16xf32>
    %869 = vector.shape_cast %868 : vector<1x1x16xf32> to vector<1x16xf32>
    %870 = vector.shape_cast %867 : vector<1x16xf32> to vector<1x1x16xf32>
    tpu.vector_store %arg6[%c0_460, %c0_461, %c32_462], %870 {strides = array<i32>} : memref<1x1x256xf32, #tpu.memory_space<vmem>>, vector<1x1x16xf32>,
    %871 = vector.extract_strided_slice %855 {offsets = [0, 3, 0], sizes = [1, 1, 16], strides = [1, 1, 1]} : vector<1x16x16xf32> to vector<1x1x16xf32>
    %872 = vector.shape_cast %871 : vector<1x1x16xf32> to vector<1x16xf32>
    %c0_463 = arith.constant 0 : index
    %c0_464 = arith.constant 0 : index
    %c48_465 = arith.constant 48 : index
    %873 = vector.load %arg6[%c0_463, %c0_464, %c48_465] : memref<1x1x256xf32, #tpu.memory_space<vmem>>, vector<1x1x16xf32>
    %874 = vector.shape_cast %873 : vector<1x1x16xf32> to vector<1x16xf32>
    %875 = vector.shape_cast %872 : vector<1x16xf32> to vector<1x1x16xf32>
    tpu.vector_store %arg6[%c0_463, %c0_464, %c48_465], %875 {strides = array<i32>} : memref<1x1x256xf32, #tpu.memory_space<vmem>>, vector<1x1x16xf32>,
    %876 = vector.extract_strided_slice %855 {offsets = [0, 4, 0], sizes = [1, 1, 16], strides = [1, 1, 1]} : vector<1x16x16xf32> to vector<1x1x16xf32>
    %877 = vector.shape_cast %876 : vector<1x1x16xf32> to vector<1x16xf32>
    %c0_466 = arith.constant 0 : index
    %c0_467 = arith.constant 0 : index
    %c64_468 = arith.constant 64 : index
    %878 = vector.load %arg6[%c0_466, %c0_467, %c64_468] : memref<1x1x256xf32, #tpu.memory_space<vmem>>, vector<1x1x16xf32>
    %879 = vector.shape_cast %878 : vector<1x1x16xf32> to vector<1x16xf32>
    %880 = vector.shape_cast %877 : vector<1x16xf32> to vector<1x1x16xf32>
    tpu.vector_store %arg6[%c0_466, %c0_467, %c64_468], %880 {strides = array<i32>} : memref<1x1x256xf32, #tpu.memory_space<vmem>>, vector<1x1x16xf32>,
    %881 = vector.extract_strided_slice %855 {offsets = [0, 5, 0], sizes = [1, 1, 16], strides = [1, 1, 1]} : vector<1x16x16xf32> to vector<1x1x16xf32>
    %882 = vector.shape_cast %881 : vector<1x1x16xf32> to vector<1x16xf32>
    %c0_469 = arith.constant 0 : index
    %c0_470 = arith.constant 0 : index
    %c80_471 = arith.constant 80 : index
    %883 = vector.load %arg6[%c0_469, %c0_470, %c80_471] : memref<1x1x256xf32, #tpu.memory_space<vmem>>, vector<1x1x16xf32>
    %884 = vector.shape_cast %883 : vector<1x1x16xf32> to vector<1x16xf32>
    %885 = vector.shape_cast %882 : vector<1x16xf32> to vector<1x1x16xf32>
    tpu.vector_store %arg6[%c0_469, %c0_470, %c80_471], %885 {strides = array<i32>} : memref<1x1x256xf32, #tpu.memory_space<vmem>>, vector<1x1x16xf32>,
    %886 = vector.extract_strided_slice %855 {offsets = [0, 6, 0], sizes = [1, 1, 16], strides = [1, 1, 1]} : vector<1x16x16xf32> to vector<1x1x16xf32>
    %887 = vector.shape_cast %886 : vector<1x1x16xf32> to vector<1x16xf32>
    %c0_472 = arith.constant 0 : index
    %c0_473 = arith.constant 0 : index
    %c96_474 = arith.constant 96 : index
    %888 = vector.load %arg6[%c0_472, %c0_473, %c96_474] : memref<1x1x256xf32, #tpu.memory_space<vmem>>, vector<1x1x16xf32>
    %889 = vector.shape_cast %888 : vector<1x1x16xf32> to vector<1x16xf32>
    %890 = vector.shape_cast %887 : vector<1x16xf32> to vector<1x1x16xf32>
    tpu.vector_store %arg6[%c0_472, %c0_473, %c96_474], %890 {strides = array<i32>} : memref<1x1x256xf32, #tpu.memory_space<vmem>>, vector<1x1x16xf32>,
    %891 = vector.extract_strided_slice %855 {offsets = [0, 7, 0], sizes = [1, 1, 16], strides = [1, 1, 1]} : vector<1x16x16xf32> to vector<1x1x16xf32>
    %892 = vector.shape_cast %891 : vector<1x1x16xf32> to vector<1x16xf32>
    %c0_475 = arith.constant 0 : index
    %c0_476 = arith.constant 0 : index
    %c112 = arith.constant 112 : index
    %893 = vector.load %arg6[%c0_475, %c0_476, %c112] : memref<1x1x256xf32, #tpu.memory_space<vmem>>, vector<1x1x16xf32>
    %894 = vector.shape_cast %893 : vector<1x1x16xf32> to vector<1x16xf32>
    %895 = vector.shape_cast %892 : vector<1x16xf32> to vector<1x1x16xf32>
    tpu.vector_store %arg6[%c0_475, %c0_476, %c112], %895 {strides = array<i32>} : memref<1x1x256xf32, #tpu.memory_space<vmem>>, vector<1x1x16xf32>,
    %896 = vector.extract_strided_slice %855 {offsets = [0, 8, 0], sizes = [1, 1, 16], strides = [1, 1, 1]} : vector<1x16x16xf32> to vector<1x1x16xf32>
    %897 = vector.shape_cast %896 : vector<1x1x16xf32> to vector<1x16xf32>
    %c0_477 = arith.constant 0 : index
    %c0_478 = arith.constant 0 : index
    %c128 = arith.constant 128 : index
    %898 = vector.load %arg6[%c0_477, %c0_478, %c128] : memref<1x1x256xf32, #tpu.memory_space<vmem>>, vector<1x1x16xf32>
    %899 = vector.shape_cast %898 : vector<1x1x16xf32> to vector<1x16xf32>
    %900 = vector.shape_cast %897 : vector<1x16xf32> to vector<1x1x16xf32>
    tpu.vector_store %arg6[%c0_477, %c0_478, %c128], %900 {strides = array<i32>} : memref<1x1x256xf32, #tpu.memory_space<vmem>>, vector<1x1x16xf32>,
    %901 = vector.extract_strided_slice %855 {offsets = [0, 9, 0], sizes = [1, 1, 16], strides = [1, 1, 1]} : vector<1x16x16xf32> to vector<1x1x16xf32>
    %902 = vector.shape_cast %901 : vector<1x1x16xf32> to vector<1x16xf32>
    %c0_479 = arith.constant 0 : index
    %c0_480 = arith.constant 0 : index
    %c144 = arith.constant 144 : index
    %903 = vector.load %arg6[%c0_479, %c0_480, %c144] : memref<1x1x256xf32, #tpu.memory_space<vmem>>, vector<1x1x16xf32>
    %904 = vector.shape_cast %903 : vector<1x1x16xf32> to vector<1x16xf32>
    %905 = vector.shape_cast %902 : vector<1x16xf32> to vector<1x1x16xf32>
    tpu.vector_store %arg6[%c0_479, %c0_480, %c144], %905 {strides = array<i32>} : memref<1x1x256xf32, #tpu.memory_space<vmem>>, vector<1x1x16xf32>,
    %906 = vector.extract_strided_slice %855 {offsets = [0, 10, 0], sizes = [1, 1, 16], strides = [1, 1, 1]} : vector<1x16x16xf32> to vector<1x1x16xf32>
    %907 = vector.shape_cast %906 : vector<1x1x16xf32> to vector<1x16xf32>
    %c0_481 = arith.constant 0 : index
    %c0_482 = arith.constant 0 : index
    %c160 = arith.constant 160 : index
    %908 = vector.load %arg6[%c0_481, %c0_482, %c160] : memref<1x1x256xf32, #tpu.memory_space<vmem>>, vector<1x1x16xf32>
    %909 = vector.shape_cast %908 : vector<1x1x16xf32> to vector<1x16xf32>
    %910 = vector.shape_cast %907 : vector<1x16xf32> to vector<1x1x16xf32>
    tpu.vector_store %arg6[%c0_481, %c0_482, %c160], %910 {strides = array<i32>} : memref<1x1x256xf32, #tpu.memory_space<vmem>>, vector<1x1x16xf32>,
    %911 = vector.extract_strided_slice %855 {offsets = [0, 11, 0], sizes = [1, 1, 16], strides = [1, 1, 1]} : vector<1x16x16xf32> to vector<1x1x16xf32>
    %912 = vector.shape_cast %911 : vector<1x1x16xf32> to vector<1x16xf32>
    %c0_483 = arith.constant 0 : index
    %c0_484 = arith.constant 0 : index
    %c176 = arith.constant 176 : index
    %913 = vector.load %arg6[%c0_483, %c0_484, %c176] : memref<1x1x256xf32, #tpu.memory_space<vmem>>, vector<1x1x16xf32>
    %914 = vector.shape_cast %913 : vector<1x1x16xf32> to vector<1x16xf32>
    %915 = vector.shape_cast %912 : vector<1x16xf32> to vector<1x1x16xf32>
    tpu.vector_store %arg6[%c0_483, %c0_484, %c176], %915 {strides = array<i32>} : memref<1x1x256xf32, #tpu.memory_space<vmem>>, vector<1x1x16xf32>,
    %916 = vector.extract_strided_slice %855 {offsets = [0, 12, 0], sizes = [1, 1, 16], strides = [1, 1, 1]} : vector<1x16x16xf32> to vector<1x1x16xf32>
    %917 = vector.shape_cast %916 : vector<1x1x16xf32> to vector<1x16xf32>
    %c0_485 = arith.constant 0 : index
    %c0_486 = arith.constant 0 : index
    %c192 = arith.constant 192 : index
    %918 = vector.load %arg6[%c0_485, %c0_486, %c192] : memref<1x1x256xf32, #tpu.memory_space<vmem>>, vector<1x1x16xf32>
    %919 = vector.shape_cast %918 : vector<1x1x16xf32> to vector<1x16xf32>
    %920 = vector.shape_cast %917 : vector<1x16xf32> to vector<1x1x16xf32>
    tpu.vector_store %arg6[%c0_485, %c0_486, %c192], %920 {strides = array<i32>} : memref<1x1x256xf32, #tpu.memory_space<vmem>>, vector<1x1x16xf32>,
    %921 = vector.extract_strided_slice %855 {offsets = [0, 13, 0], sizes = [1, 1, 16], strides = [1, 1, 1]} : vector<1x16x16xf32> to vector<1x1x16xf32>
    %922 = vector.shape_cast %921 : vector<1x1x16xf32> to vector<1x16xf32>
    %c0_487 = arith.constant 0 : index
    %c0_488 = arith.constant 0 : index
    %c208 = arith.constant 208 : index
    %923 = vector.load %arg6[%c0_487, %c0_488, %c208] : memref<1x1x256xf32, #tpu.memory_space<vmem>>, vector<1x1x16xf32>
    %924 = vector.shape_cast %923 : vector<1x1x16xf32> to vector<1x16xf32>
    %925 = vector.shape_cast %922 : vector<1x16xf32> to vector<1x1x16xf32>
    tpu.vector_store %arg6[%c0_487, %c0_488, %c208], %925 {strides = array<i32>} : memref<1x1x256xf32, #tpu.memory_space<vmem>>, vector<1x1x16xf32>,
    %926 = vector.extract_strided_slice %855 {offsets = [0, 14, 0], sizes = [1, 1, 16], strides = [1, 1, 1]} : vector<1x16x16xf32> to vector<1x1x16xf32>
    %927 = vector.shape_cast %926 : vector<1x1x16xf32> to vector<1x16xf32>
    %c0_489 = arith.constant 0 : index
    %c0_490 = arith.constant 0 : index
    %c224 = arith.constant 224 : index
    %928 = vector.load %arg6[%c0_489, %c0_490, %c224] : memref<1x1x256xf32, #tpu.memory_space<vmem>>, vector<1x1x16xf32>
    %929 = vector.shape_cast %928 : vector<1x1x16xf32> to vector<1x16xf32>
    %930 = vector.shape_cast %927 : vector<1x16xf32> to vector<1x1x16xf32>
    tpu.vector_store %arg6[%c0_489, %c0_490, %c224], %930 {strides = array<i32>} : memref<1x1x256xf32, #tpu.memory_space<vmem>>, vector<1x1x16xf32>,
    %931 = vector.extract_strided_slice %855 {offsets = [0, 15, 0], sizes = [1, 1, 16], strides = [1, 1, 1]} : vector<1x16x16xf32> to vector<1x1x16xf32>
    %932 = vector.shape_cast %931 : vector<1x1x16xf32> to vector<1x16xf32>
    %c0_491 = arith.constant 0 : index
    %c0_492 = arith.constant 0 : index
    %c240 = arith.constant 240 : index
    %933 = vector.load %arg6[%c0_491, %c0_492, %c240] : memref<1x1x256xf32, #tpu.memory_space<vmem>>, vector<1x1x16xf32>
    %934 = vector.shape_cast %933 : vector<1x1x16xf32> to vector<1x16xf32>
    %935 = vector.shape_cast %932 : vector<1x16xf32> to vector<1x1x16xf32>
    tpu.vector_store %arg6[%c0_491, %c0_492, %c240], %935 {strides = array<i32>} : memref<1x1x256xf32, #tpu.memory_space<vmem>>, vector<1x1x16xf32>,
    %c0_493 = arith.constant 0 : index
    %c0_494 = arith.constant 0 : index
    %c0_495 = arith.constant 0 : index
    %936 = vector.load %arg1[%c0_493, %c0_494, %c0_495] : memref<1x4x256xf32, #tpu.memory_space<vmem>>, vector<1x4x256xf32>
    %c0_496 = arith.constant 0 : index
    %c0_497 = arith.constant 0 : index
    %c0_498 = arith.constant 0 : index
    %937 = vector.load %arg6[%c0_496, %c0_497, %c0_498] : memref<1x1x256xf32, #tpu.memory_space<vmem>>, vector<1x1x256xf32>
    %938 = vector.broadcast %937 : vector<1x1x256xf32> to vector<1x4x256xf32>
    %939 = arith.mulf %936, %938 : vector<1x4x256xf32>
    %c0_499 = arith.constant 0 : index
    %c0_500 = arith.constant 0 : index
    %c0_501 = arith.constant 0 : index
    %940 = vector.load %arg4[%c0_499, %c0_500, %c0_501] : memref<1x4x256xf32, #tpu.memory_space<vmem>>, vector<1x4x256xf32>
    tpu.vector_store %arg4[%c0_499, %c0_500, %c0_501], %939 {strides = array<i32>} : memref<1x4x256xf32, #tpu.memory_space<vmem>>, vector<1x4x256xf32>,
    return
  }
  func.func @transform_0(%arg0: i32) -> (i32, i32, i32) {
    %c0_i32 = arith.constant 0 : i32
    %c0_i32_0 = arith.constant 0 : i32
    %c0_i32_1 = arith.constant 0 : i32
    return %arg0, %c0_i32, %c0_i32_0 : i32, i32, i32
  }
  func.func @transform_1(%arg0: i32) -> i32 {
    %c0_i32 = arith.constant 0 : i32
    %c0_i32_0 = arith.constant 0 : i32
    return %c0_i32 : i32
  }
  func.func @transform_2(%arg0: i32) -> i32 {
    %c0_i32 = arith.constant 0 : i32
    %c0_i32_0 = arith.constant 0 : i32
    return %c0_i32 : i32
  }
  func.func @transform_3(%arg0: i32) -> (i32, i32, i32) {
    %c0_i32 = arith.constant 0 : i32
    %c0_i32_0 = arith.constant 0 : i32
    %c0_i32_1 = arith.constant 0 : i32
    return %arg0, %c0_i32, %c0_i32_0 : i32, i32, i32
  }
}

</mosaic_0001>

<llo_original>
// kernel: tpu_custom_call.1
$region0: #{tpu_custom_call.1}
  #allocation0 [shape = 'u32[]', space=smem, size = 0x4, offset = 0x4, fixed_abs, tag = 'smem constant byte address 0x4 - core index']
  #allocation1 [shape = 'u32[72,128]{1,0:T(1,128)}', space=vmem, size = 0x9000, scoped, tag = 'internal scratch']
  #allocation2 [shape = 'f32[7,2,1,22,16]{4,3,2,1,0:T(8,128)}', space=vmem, size = 0x2a000, scoped, tag = 'scratch operand']
  #allocation3 [shape = 'f32[1,1,256]{2,1,0:T(1,128)}', space=vmem, size = 0x400, scoped, tag = 'scratch operand']
  #allocation4 [shape = 'f32[1]{0:T(128)S(6)}', space=smem, size = 0x200, scoped, tag = 'scoped memory for tpu_custom_call.1']
  %s0 = inlined_call_operand.hbm [shape: f32[2,4,256], index: 0, kind: input, shape index: {}]
  %s1 = inlined_call_operand.vmem [shape: f32[98], index: 1, kind: input, shape index: {}]
  %s2 = inlined_call_operand.<no memory space> [shape: f32[1], index: 2, kind: input, shape index: {}]
  %s3 = inlined_call_operand.hbm [shape: f32[2,4,256], index: 3, kind: output, shape index: {}]
  %s4 = sld [smem:[#allocation0]]
  $region53: #{tpu_custom_call.1} parent=0
    _
  %s6 = ssub.s32 1, %s4
  %s7 = scalar_select 0, %s6, %s4
  %8 = sst [smem:[#allocation4]] %s2
  $region1: #{tpu_custom_call.1} parent=0
    #allocation5 [shape = 'u8[8192]{0}', space=vmem, size = 0x2000, scoped, tag = 'input window, operand 0']
    #allocation6 [shape = 's32[2]{0}', space=sflag, size = 0x8, scoped, tag = 'scoped memory for tpu_custom_call.1']
    #allocation7 [shape = 's32[2]{0}', space=sflag, size = 0x8, scoped, tag = 'scoped memory for tpu_custom_call.1']
    #allocation8 [shape = 's32[2]{0}', space=sflag, size = 0x8, scoped, tag = 'scoped memory for tpu_custom_call.1']
    #allocation9 [shape = 'u8[512]{0}', space=smem, size = 0x200, scoped, tag = 'input window, operand 1, single buffered']
    #allocation10 [shape = 'u8[8192]{0}', space=vmem, size = 0x2000, scoped, tag = 'output window, operand 0']
    %9 = vsyncpa [#allocation6], 0
    %s10 = scalar_lea.sflag [#allocation6], 1
    %11 = vsyncpa %s10, 0
    %12 = vsyncpa [#allocation8], 0
    %13 = vsyncpa [#allocation7], 0
    %s14 = scalar_lea.sflag [#allocation7], 1
    %15 = vsyncpa %s14, 0
    loop: start=0, step=1, limit=4
    $region2: #{tpu_custom_call.1} parent=1 // loop_pre_header
      _
    $region3: #{tpu_custom_call.1} parent=1 // loop_header
      %s17 = sphi 0, %s21
      %p18 = scmp.ge.s32.totalorder %s17, 4
      %s27 = sphi 0, %s29
      %s30 = sphi 0, %s27
      %s31 = sphi 0, %s30
      %s47 = sphi 0, %s31
      %s51 = sphi 0, %s51
      %s53 = sphi 0, %s51
      %s54 = sphi 0, %s53
      %s68 = sphi 0, %s54
      %s72 = sphi 0, %s72
      %s74 = sphi 0, %s72
      %s75 = sphi 0, %s74
      %s89 = sphi 0, %s75
      %s95 = sphi 0, %s97
      %s98 = sphi 0, %s95
      %s99 = sphi 0, %s98
      %s115 = sphi 0, %s99
    $region4: #{tpu_custom_call.1} parent=1 // loop_header_branch
      %20 = sbr.rel (%p18) target = $region8
    $region5: #{tpu_custom_call.1} parent=1 // loop_body
      %s22 = ssub.s32 %s17, 1
      %s23 = ssub.s32 %s17, 2
      %s24 = sadd.s32 %s17, 1
      %s25 = ssub.s32 %s17, %s24
      %p26 = scmp.eq.s32.totalorder %s25, 0
      %s28 = sadd.s32 %s27, 1
      %s29 = scalar_select %p26, %s27, %s28
      %p32 = pneg %p26
      %p33 = scmp.eq.s32.totalorder %s17, 1
      %p34 = por %p32, %p33
      %p35 = scmp.ne.s32.totalorder %s27, %s30
      %p36 = scmp.eq.s32.totalorder %s17, 0
      %p37 = por %p35, %p36
      %p38 = scmp.ne.s32.totalorder %s27, %s30
      %p39 = scmp.eq.s32.totalorder %s22, 1
      %p40 = por %p38, %p39
      %p41 = scmp.ne.s32.totalorder %s30, %s31
      %p42 = scmp.eq.s32.totalorder %s22, 0
      %p43 = por %p41, %p42
      %p44 = scmp.ne.s32.totalorder %s30, %s31
      %p45 = scmp.eq.s32.totalorder %s23, 1
      %p46 = por %p44, %p45
      %p48 = scmp.ne.s32.totalorder %s31, %s47
      %p49 = scmp.eq.s32.totalorder %s23, 0
      %p50 = por %p48, %p49
      %s52 = sadd.s32 %s51, 1
      %p55 = scmp.eq.s32.totalorder %s17, 1
      %p56 = scmp.ne.s32.totalorder %s51, %s53
      %p57 = scmp.eq.s32.totalorder %s17, 0
      %p58 = por %p56, %p57
      %p59 = scmp.ne.s32.totalorder %s51, %s53
      %p60 = scmp.eq.s32.totalorder %s22, 1
      %p61 = por %p59, %p60
      %p62 = scmp.ne.s32.totalorder %s53, %s54
      %p63 = scmp.eq.s32.totalorder %s22, 0
      %p64 = por %p62, %p63
      %p65 = scmp.ne.s32.totalorder %s53, %s54
      %p66 = scmp.eq.s32.totalorder %s23, 1
      %p67 = por %p65, %p66
      %p69 = scmp.ne.s32.totalorder %s54, %s68
      %p70 = scmp.eq.s32.totalorder %s23, 0
      %p71 = por %p69, %p70
      %s73 = sadd.s32 %s72, 1
      %p76 = scmp.eq.s32.totalorder %s17, 1
      %p77 = scmp.ne.s32.totalorder %s72, %s74
      %p78 = scmp.eq.s32.totalorder %s17, 0
      %p79 = por %p77, %p78
      %p80 = scmp.ne.s32.totalorder %s72, %s74
      %p81 = scmp.eq.s32.totalorder %s22, 1
      %p82 = por %p80, %p81
      %p83 = scmp.ne.s32.totalorder %s74, %s75
      %p84 = scmp.eq.s32.totalorder %s22, 0
      %p85 = por %p83, %p84
      %p86 = scmp.ne.s32.totalorder %s74, %s75
      %p87 = scmp.eq.s32.totalorder %s23, 1
      %p88 = por %p86, %p87
      %p90 = scmp.ne.s32.totalorder %s75, %s89
      %p91 = scmp.eq.s32.totalorder %s23, 0
      %p92 = por %p90, %p91
      %s93 = ssub.s32 %s17, %s24
      %p94 = scmp.eq.s32.totalorder %s93, 0
      %s96 = sadd.s32 %s95, 1
      %s97 = scalar_select %p94, %s95, %s96
      %p100 = pneg %p94
      %p101 = scmp.eq.s32.totalorder %s17, 1
      %p102 = por %p100, %p101
      %p103 = scmp.ne.s32.totalorder %s95, %s98
      %p104 = scmp.eq.s32.totalorder %s17, 0
      %p105 = por %p103, %p104
      %p106 = scmp.ne.s32.totalorder %s95, %s98
      %p107 = scmp.eq.s32.totalorder %s22, 1
      %p108 = por %p106, %p107
      %p109 = scmp.ne.s32.totalorder %s98, %s99
      %p110 = scmp.eq.s32.totalorder %s22, 0
      %p111 = por %p109, %p110
      %p112 = scmp.ne.s32.totalorder %s98, %s99
      %p113 = scmp.eq.s32.totalorder %s23, 1
      %p114 = por %p112, %p113
      %p116 = scmp.ne.s32.totalorder %s99, %s115
      %p117 = scmp.eq.s32.totalorder %s23, 0
      %p118 = por %p116, %p117
      %p119 = scmp.le.s32.totalorder 1, %s17
      %p120 = scmp.lt.s32.totalorder %s17, 3
      %p121 = pnand %p119, %p120
      %p122 = pneg %p121
      // Predicated region
      $region9: #{tpu_custom_call.1} parent=5 // pred_check
        _
      $region10: #{tpu_custom_call.1} parent=5 // pred_check_branch
        %124 = sbr.rel (%p121) target = $region12
      $region11: #{tpu_custom_call.1} parent=5 // pred_region
        %s125 = ssub.s32 %s17, 1
        // Predicated region
        $region13: #{tpu_custom_call.1} parent=11 // pred_check
          %p126 = pneg %p64
        $region14: #{tpu_custom_call.1} parent=11 // pred_check_branch
          %128 = sbr.rel (%p126) target = $region16
        $region15: #{tpu_custom_call.1} parent=11 // pred_region
          %130 = vsyncadd [#allocation8], 0
          %s132 = sshll.u32 %s1, 4
          %s133 = int_to_ptr.vmem [resolvable:$true] %s132
          %135 = dma.vmem_to_smem %s133, 16, [#allocation9], [#allocation8]
        $region16: #{tpu_custom_call.1} parent=11 // pred_fallthru
          _
        // Predicated region
        $region17: #{tpu_custom_call.1} parent=11 // pred_check
          %p136 = pneg %p85
        $region18: #{tpu_custom_call.1} parent=11 // pred_check_branch
          %138 = sbr.rel (%p136) target = $region20
        $region19: #{tpu_custom_call.1} parent=11 // pred_region
          _
        $region20: #{tpu_custom_call.1} parent=11 // pred_fallthru
          _
      $region12: #{tpu_custom_call.1} parent=5 // pred_fallthru
        _
      %p139 = scmp.lt.s32.totalorder %s17, 2
      // Predicated region
      $region21: #{tpu_custom_call.1} parent=5 // pred_check
        %p140 = pneg %p139
      $region22: #{tpu_custom_call.1} parent=5 // pred_check_branch
        %142 = sbr.rel (%p140) target = $region24
      $region23: #{tpu_custom_call.1} parent=5 // pred_region
        // Predicated region
        $region25: #{tpu_custom_call.1} parent=23 // pred_check
          %p143 = pneg %p37
        $region26: #{tpu_custom_call.1} parent=23 // pred_check_branch
          %145 = sbr.rel (%p143) target = $region28
        $region27: #{tpu_custom_call.1} parent=23 // pred_region
          %s146 = sand.u32 %s27, 1
          %s147 = scalar_lea.sflag [#allocation6], %s146
          %s148 = sand.u32 %s27, 1
          %s149 = smul.addr %s148, 8
          %s150 = scalar_lea.vmem [#allocation5], %s149
          %152 = vsyncadd %s147, 0
          %s153 = smul.addr %s17, 2
          %s154 = smul.addr %s153, 4
          %s155 = scalar_lea.hbm %s0, %s154
          %s157 = sshll.u32 %s155, 4
          %s158 = int_to_ptr.hbm [resolvable:$true] %s157
          %s159 = sshll.u32 %s150, 4
          %s160 = int_to_ptr.vmem [resolvable:$true] %s159
          %162 = dma.hbm_to_vmem [thread:$0]  %s158, 128, %s160, %s147
        $region28: #{tpu_custom_call.1} parent=23 // pred_fallthru
          _
      $region24: #{tpu_custom_call.1} parent=5 // pred_fallthru
        _
      %p163 = scmp.le.s32.totalorder 1, %s17
      %p164 = scmp.lt.s32.totalorder %s17, 3
      %p165 = pnand %p163, %p164
      %p166 = pneg %p165
      // Predicated region
      $region29: #{tpu_custom_call.1} parent=5 // pred_check
        _
      $region30: #{tpu_custom_call.1} parent=5 // pred_check_branch
        %168 = sbr.rel (%p165) target = $region32
      $region31: #{tpu_custom_call.1} parent=5 // pred_region
        %s169 = ssub.s32 %s17, 1
        %s170 = sand.u32 %s30, 1
        %s171 = scalar_lea.sflag [#allocation6], %s170
        %s172 = sand.u32 %s30, 1
        %s173 = smul.addr %s172, 8
        %s174 = scalar_lea.vmem [#allocation5], %s173
        // Predicated region
        $region33: #{tpu_custom_call.1} parent=31 // pred_check
          %p175 = pneg %p43
        $region34: #{tpu_custom_call.1} parent=31 // pred_check_branch
          %177 = sbr.rel (%p175) target = $region36
        $region35: #{tpu_custom_call.1} parent=31 // pred_region
          %179 = dma.done %s171, 128
        $region36: #{tpu_custom_call.1} parent=31 // pred_fallthru
          _
        // Predicated region
        $region37: #{tpu_custom_call.1} parent=31 // pred_check
          %p180 = pneg %p64
        $region38: #{tpu_custom_call.1} parent=31 // pred_check_branch
          %182 = sbr.rel (%p180) target = $region40
        $region39: #{tpu_custom_call.1} parent=31 // pred_region
          %184 = dma.done [#allocation8], 16
        $region40: #{tpu_custom_call.1} parent=31 // pred_fallthru
          _
        %185 = sfence
        %s186 = sand.u32 %s30, 1
        %s187 = scalar_lea.sflag [#allocation6], %s186
        %s188 = sand.u32 %s30, 1
        %s189 = smul.addr %s188, 8
        %s190 = scalar_lea.vmem [#allocation5], %s189
        %p191 = pneg %p43
        %p192 = pneg %p40
        %p193 = pneg %p64
        %p194 = pneg %p61
        %p195 = pneg %p85
        %p196 = pneg %p82
        %p197 = pneg %p111
        %p198 = pneg %p108
        %s199 = sand.u32 %s98, 1
        %s200 = scalar_lea.sflag [#allocation7], %s199
        %s201 = sand.u32 %s98, 1
        %s202 = smul.addr %s201, 8
        %s203 = scalar_lea.vmem [#allocation10], %s202
        %v204 = vld [vmem:[%s174] sm:$0xff]
        %206 = vst [vmem:[#allocation1] ss:$2 sm:$0xff] %v204
        %v207 = vld.sshfl [vmem:[#allocation1] sm:$0xff pattern:$0x75316420]
        %v208 = vld.sshfl [vmem:[#allocation1 + $0x8] sm:$0xff pattern:$0x75316420]
        %vm211 = vcmask 1043456
        %v212 = vsel %vm211, %v207, -inf
        %v213 = vrot.slane %v212, 4
        %v214 = vmax.f32 %v212, %v213
        %v215 = vrot.slane %v214, 2
        %v216 = vmax.f32 %v214, %v215
        %v217 = vrot.slane %v216, 1
        %v218 = vmax.f32 %v216, %v217
        %v219 = vsel %vm211, %v208, -inf
        %v220 = vrot.slane %v219, 4
        %v221 = vmax.f32 %v219, %v220
        %v222 = vrot.slane %v221, 2
        %v223 = vmax.f32 %v221, %v222
        %v224 = vrot.slane %v223, 1
        %v225 = vmax.f32 %v223, %v224
        %226 = vst [vmem:[#allocation1] ss:$2 sm:$0xff] %v204
        %v227 = vld.sshfl [vmem:[#allocation1] sm:$0xff pattern:$0x75316420]
        %v228 = vld.sshfl [vmem:[#allocation1 + $0x8] sm:$0xff pattern:$0x75316420]
        %v231 = vsel %vm211, %v227, 0.0
        %v232 = vrot.slane %v231, 4
        %v233 = vadd.f32 %v231, %v232
        %v234 = vrot.slane %v233, 2
        %v235 = vadd.f32 %v233, %v234
        %v236 = vrot.slane %v235, 1
        %v237 = vadd.f32 %v235, %v236
        %v238 = vsel %vm211, %v228, 0.0
        %v239 = vrot.slane %v238, 4
        %v240 = vadd.f32 %v238, %v239
        %v241 = vrot.slane %v240, 2
        %v242 = vadd.f32 %v240, %v241
        %v243 = vrot.slane %v242, 1
        %v244 = vadd.f32 %v242, %v243
        %v245 = vrcp.pop 4.0
        %v246 = vmul.f32 4.0, %v245
        %v247 = vsub.f32 1.0, %v246
        %v248 = vmul.f32 %v245, %v247
        %v249 = vadd.f32 %v245, %v248
        %vm250 = vweird.f32 %v245
        %v251 = vsel %vm250, %v245, %v249
        %v252 = vmul.f32 %v237, %v251
        %v253 = vmul.f32 %v244, %v251
        %vm254 = vcmask 130048
        %255 = vst.msk [vmem:[#allocation2] sm:$0xff] %vm254, 0.0
        %256 = vst.msk [vmem:[#allocation2 + $0x8] sm:$0xff] %vm254, 0.0
        %vm257 = vcmask 128000
        %258 = vst.msk [vmem:[#allocation2 + $0x10] sm:$0x3f] %vm257, 0.0
        %259 = vst.msk [vmem:[#allocation2 + $0x18] sm:$0xff] %vm254, 0.0
        %260 = vst.msk [vmem:[#allocation2 + $0x20] sm:$0xff] %vm254, 0.0
        %261 = vst.msk [vmem:[#allocation2 + $0x28] sm:$0x3f] %vm257, 0.0
        %262 = vst.msk [vmem:[#allocation2 + $0x30] sm:$0xff] %vm254, 0.0
        %263 = vst.msk [vmem:[#allocation2 + $0x38] sm:$0xff] %vm254, 0.0
        %264 = vst.msk [vmem:[#allocation2 + $0x40] sm:$0x3f] %vm257, 0.0
        %265 = vst.msk [vmem:[#allocation2 + $0x48] sm:$0xff] %vm254, 0.0
        %266 = vst.msk [vmem:[#allocation2 + $0x50] sm:$0xff] %vm254, 0.0
        %267 = vst.msk [vmem:[#allocation2 + $0x58] sm:$0x3f] %vm257, 0.0
        %268 = vst.msk [vmem:[#allocation2 + $0x60] sm:$0xff] %vm254, 0.0
        %269 = vst.msk [vmem:[#allocation2 + $0x68] sm:$0xff] %vm254, 0.0
        %270 = vst.msk [vmem:[#allocation2 + $0x70] sm:$0x3f] %vm257, 0.0
        %271 = vst.msk [vmem:[#allocation2 + $0x78] sm:$0xff] %vm254, 0.0
        %272 = vst.msk [vmem:[#allocation2 + $0x80] sm:$0xff] %vm254, 0.0
        %273 = vst.msk [vmem:[#allocation2 + $0x88] sm:$0x3f] %vm257, 0.0
        %274 = vst.msk [vmem:[#allocation2 + $0x90] sm:$0xff] %vm254, 0.0
        %275 = vst.msk [vmem:[#allocation2 + $0x98] sm:$0xff] %vm254, 0.0
        %276 = vst.msk [vmem:[#allocation2 + $0xa0] sm:$0x3f] %vm257, 0.0
        %277 = vst.msk [vmem:[#allocation2 + $0xa8] sm:$0xff] %vm254, 0.0
        %278 = vst.msk [vmem:[#allocation2 + $0xb0] sm:$0xff] %vm254, 0.0
        %279 = vst.msk [vmem:[#allocation2 + $0xb8] sm:$0x3f] %vm257, 0.0
        %280 = vst.msk [vmem:[#allocation2 + $0xc0] sm:$0xff] %vm254, 0.0
        %281 = vst.msk [vmem:[#allocation2 + $0xc8] sm:$0xff] %vm254, 0.0
        %282 = vst.msk [vmem:[#allocation2 + $0xd0] sm:$0x3f] %vm257, 0.0
        %283 = vst.msk [vmem:[#allocation2 + $0xd8] sm:$0xff] %vm254, 0.0
        %284 = vst.msk [vmem:[#allocation2 + $0xe0] sm:$0xff] %vm254, 0.0
        %285 = vst.msk [vmem:[#allocation2 + $0xe8] sm:$0x3f] %vm257, 0.0
        %286 = vst.msk [vmem:[#allocation2 + $0xf0] sm:$0xff] %vm254, 0.0
        %287 = vst.msk [vmem:[#allocation2 + $0xf8] sm:$0xff] %vm254, 0.0
        %288 = vst.msk [vmem:[#allocation2 + $0x100] sm:$0x3f] %vm257, 0.0
        %289 = vst.msk [vmem:[#allocation2 + $0x108] sm:$0xff] %vm254, 0.0
        %290 = vst.msk [vmem:[#allocation2 + $0x110] sm:$0xff] %vm254, 0.0
        %291 = vst.msk [vmem:[#allocation2 + $0x118] sm:$0x3f] %vm257, 0.0
        %292 = vst.msk [vmem:[#allocation2 + $0x120] sm:$0xff] %vm254, 0.0
        %293 = vst.msk [vmem:[#allocation2 + $0x128] sm:$0xff] %vm254, 0.0
        %294 = vst.msk [vmem:[#allocation2 + $0x130] sm:$0x3f] %vm257, 0.0
        %295 = vst.msk [vmem:[#allocation2 + $0x138] sm:$0xff] %vm254, 0.0
        %296 = vst.msk [vmem:[#allocation2 + $0x140] sm:$0xff] %vm254, 0.0
        %297 = vst.msk [vmem:[#allocation2 + $0x148] sm:$0x3f] %vm257, 0.0
        %s298 = scalar_lea.vmem [#allocation2], 144
        %vm299 = vcmask 122880
        %300 = vst.msk [vmem:[%s298 + $0x3] sm:$0x1] %vm299, %v218
        %s301 = scalar_lea.vmem [#allocation2], 168
        %302 = vst.msk [vmem:[%s301 + $0x3] sm:$0x1] %vm299, %v252
        %304 = vrot.lane.b32.xlu0 %v218, 112
        %v305 = vpop.permute.xlu0 %304
        %307 = vst.msk [vmem:[%s298 + $0x4] sm:$0x1] %vm299, %v305
        %309 = vrot.lane.b32.xlu0 %v252, 112
        %v310 = vpop.permute.xlu0 %309
        %312 = vst.msk [vmem:[%s301 + $0x4] sm:$0x1] %vm299, %v310
        %313 = vrot.lane.b32.xlu0 %v218, 96
        %v314 = vpop.permute.xlu0 %313
        %316 = vst.msk [vmem:[%s298 + $0x5] sm:$0x1] %vm299, %v314
        %317 = vrot.lane.b32.xlu0 %v252, 96
        %v318 = vpop.permute.xlu0 %317
        %320 = vst.msk [vmem:[%s301 + $0x5] sm:$0x1] %vm299, %v318
        %321 = vrot.lane.b32.xlu0 %v218, 80
        %v322 = vpop.permute.xlu0 %321
        %324 = vst.msk [vmem:[%s298 + $0x6] sm:$0x1] %vm299, %v322
        %325 = vrot.lane.b32.xlu0 %v252, 80
        %v326 = vpop.permute.xlu0 %325
        %328 = vst.msk [vmem:[%s301 + $0x6] sm:$0x1] %vm299, %v326
        %329 = vrot.lane.b32.xlu0 %v218, 64
        %v330 = vpop.permute.xlu0 %329
        %332 = vst.msk [vmem:[%s298 + $0x7] sm:$0x1] %vm299, %v330
        %333 = vrot.lane.b32.xlu0 %v252, 64
        %v334 = vpop.permute.xlu0 %333
        %336 = vst.msk [vmem:[%s301 + $0x7] sm:$0x1] %vm299, %v334
        %337 = vrot.lane.b32.xlu0 %v218, 48
        %v338 = vpop.permute.xlu0 %337
        %340 = vst.msk [vmem:[%s298 + $0x8] sm:$0x1] %vm299, %v338
        %341 = vrot.lane.b32.xlu0 %v252, 48
        %v342 = vpop.permute.xlu0 %341
        %344 = vst.msk [vmem:[%s301 + $0x8] sm:$0x1] %vm299, %v342
        %345 = vrot.lane.b32.xlu0 %v218, 32
        %v346 = vpop.permute.xlu0 %345
        %348 = vst.msk [vmem:[%s298 + $0x9] sm:$0x1] %vm299, %v346
        %349 = vrot.lane.b32.xlu0 %v252, 32
        %v350 = vpop.permute.xlu0 %349
        %352 = vst.msk [vmem:[%s301 + $0x9] sm:$0x1] %vm299, %v350
        %353 = vrot.lane.b32.xlu0 %v218, 16
        %v354 = vpop.permute.xlu0 %353
        %356 = vst.msk [vmem:[%s298 + $0xa] sm:$0x1] %vm299, %v354
        %357 = vrot.lane.b32.xlu0 %v252, 16
        %v358 = vpop.permute.xlu0 %357
        %360 = vst.msk [vmem:[%s301 + $0xa] sm:$0x1] %vm299, %v358
        %361 = vst.msk [vmem:[%s298 + $0xb] sm:$0x1] %vm299, %v225
        %362 = vst.msk [vmem:[%s301 + $0xb] sm:$0x1] %vm299, %v253
        %364 = vrot.lane.b32.xlu0 %v225, 112
        %v365 = vpop.permute.xlu0 %364
        %367 = vst.msk [vmem:[%s298 + $0xc] sm:$0x1] %vm299, %v365
        %369 = vrot.lane.b32.xlu0 %v253, 112
        %v370 = vpop.permute.xlu0 %369
        %372 = vst.msk [vmem:[%s301 + $0xc] sm:$0x1] %vm299, %v370
        %373 = vrot.lane.b32.xlu0 %v225, 96
        %v374 = vpop.permute.xlu0 %373
        %376 = vst.msk [vmem:[%s298 + $0xd] sm:$0x1] %vm299, %v374
        %377 = vrot.lane.b32.xlu0 %v253, 96
        %v378 = vpop.permute.xlu0 %377
        %380 = vst.msk [vmem:[%s301 + $0xd] sm:$0x1] %vm299, %v378
        %381 = vrot.lane.b32.xlu0 %v225, 80
        %v382 = vpop.permute.xlu0 %381
        %384 = vst.msk [vmem:[%s298 + $0xe] sm:$0x1] %vm299, %v382
        %385 = vrot.lane.b32.xlu0 %v253, 80
        %v386 = vpop.permute.xlu0 %385
        %388 = vst.msk [vmem:[%s301 + $0xe] sm:$0x1] %vm299, %v386
        %389 = vrot.lane.b32.xlu0 %v225, 64
        %v390 = vpop.permute.xlu0 %389
        %392 = vst.msk [vmem:[%s298 + $0xf] sm:$0x1] %vm299, %v390
        %393 = vrot.lane.b32.xlu0 %v253, 64
        %v394 = vpop.permute.xlu0 %393
        %396 = vst.msk [vmem:[%s301 + $0xf] sm:$0x1] %vm299, %v394
        %397 = vrot.lane.b32.xlu0 %v225, 48
        %v398 = vpop.permute.xlu0 %397
        %400 = vst.msk [vmem:[%s298 + $0x10] sm:$0x1] %vm299, %v398
        %401 = vrot.lane.b32.xlu0 %v253, 48
        %v402 = vpop.permute.xlu0 %401
        %404 = vst.msk [vmem:[%s301 + $0x10] sm:$0x1] %vm299, %v402
        %405 = vrot.lane.b32.xlu0 %v225, 32
        %v406 = vpop.permute.xlu0 %405
        %408 = vst.msk [vmem:[%s298 + $0x11] sm:$0x1] %vm299, %v406
        %409 = vrot.lane.b32.xlu0 %v253, 32
        %v410 = vpop.permute.xlu0 %409
        %412 = vst.msk [vmem:[%s301 + $0x11] sm:$0x1] %vm299, %v410
        %413 = vrot.lane.b32.xlu0 %v225, 16
        %v414 = vpop.permute.xlu0 %413
        %416 = vst.msk [vmem:[%s298 + $0x12] sm:$0x1] %vm299, %v414
        %417 = vrot.lane.b32.xlu0 %v253, 16
        %v418 = vpop.permute.xlu0 %417
        %420 = vst.msk [vmem:[%s301 + $0x12] sm:$0x1] %vm299, %v418
        %v421 = vld [vmem:[%s298 + $0x3] sm:$0xff]
        %v422 = vld [vmem:[%s298 + $0xb] sm:$0xff]
        %v423 = vld [vmem:[%s298 + $0x1b] sm:$0xff]
        %v424 = vld [vmem:[%s298 + $0x23] sm:$0xff]
        %429 = vrot.lane.b32.xlu0 %v421, 3
        %v430 = vpop.permute.xlu0 %429
        %431 = vrot.lane.b32.xlu0 %v422, 3
        %v432 = vpop.permute.xlu0 %431
        %433 = vrot.lane.b32.xlu0 %v423, 3
        %v434 = vpop.permute.xlu0 %433
        %435 = vrot.lane.b32.xlu0 %v424, 3
        %v436 = vpop.permute.xlu0 %435
        %vm441 = vcmask 130072
        %442 = vst.msk [vmem:[#allocation2 + $0x3] sm:$0xff] %vm441, %v430
        %443 = vst.msk [vmem:[#allocation2 + $0xb] sm:$0xff] %vm441, %v432
        %444 = vst.msk [vmem:[#allocation2 + $0x1b] sm:$0xff] %vm441, %v434
        %445 = vst.msk [vmem:[#allocation2 + $0x23] sm:$0xff] %vm441, %v436
        %446 = vrot.lane.b32.xlu0 %v421, 2
        %v447 = vpop.permute.xlu0 %446
        %448 = vrot.lane.b32.xlu0 %v422, 2
        %v449 = vpop.permute.xlu0 %448
        %450 = vrot.lane.b32.xlu0 %v423, 2
        %v451 = vpop.permute.xlu0 %450
        %452 = vrot.lane.b32.xlu0 %v424, 2
        %v453 = vpop.permute.xlu0 %452
        %s458 = scalar_lea.vmem [#allocation2], 48
        %vm459 = vcmask 130064
        %460 = vst.msk [vmem:[%s458 + $0x3] sm:$0xff] %vm459, %v447
        %461 = vst.msk [vmem:[%s458 + $0xb] sm:$0xff] %vm459, %v449
        %462 = vst.msk [vmem:[%s458 + $0x1b] sm:$0xff] %vm459, %v451
        %463 = vst.msk [vmem:[%s458 + $0x23] sm:$0xff] %vm459, %v453
        %464 = vrot.lane.b32.xlu0 %v421, 1
        %v465 = vpop.permute.xlu0 %464
        %466 = vrot.lane.b32.xlu0 %v422, 1
        %v467 = vpop.permute.xlu0 %466
        %468 = vrot.lane.b32.xlu0 %v423, 1
        %v469 = vpop.permute.xlu0 %468
        %470 = vrot.lane.b32.xlu0 %v424, 1
        %v471 = vpop.permute.xlu0 %470
        %s476 = scalar_lea.vmem [#allocation2], 96
        %vm477 = vcmask 130056
        %478 = vst.msk [vmem:[%s476 + $0x3] sm:$0xff] %vm477, %v465
        %479 = vst.msk [vmem:[%s476 + $0xb] sm:$0xff] %vm477, %v467
        %480 = vst.msk [vmem:[%s476 + $0x1b] sm:$0xff] %vm477, %v469
        %481 = vst.msk [vmem:[%s476 + $0x23] sm:$0xff] %vm477, %v471
        %482 = vrot.lane.b32.xlu0 %v421, 127
        %v483 = vpop.permute.xlu0 %482
        %484 = vrot.lane.b32.xlu0 %v422, 127
        %v485 = vpop.permute.xlu0 %484
        %486 = vrot.lane.b32.xlu0 %v423, 127
        %v487 = vpop.permute.xlu0 %486
        %488 = vrot.lane.b32.xlu0 %v424, 127
        %v489 = vpop.permute.xlu0 %488
        %s494 = scalar_lea.vmem [#allocation2], 192
        %vm495 = vcmask 121856
        %496 = vst.msk [vmem:[%s494 + $0x3] sm:$0xff] %vm495, %v483
        %497 = vst.msk [vmem:[%s494 + $0xb] sm:$0xff] %vm495, %v485
        %498 = vst.msk [vmem:[%s494 + $0x1b] sm:$0xff] %vm495, %v487
        %499 = vst.msk [vmem:[%s494 + $0x23] sm:$0xff] %vm495, %v489
        %500 = vrot.lane.b32.xlu0 %v421, 126
        %v501 = vpop.permute.xlu0 %500
        %502 = vrot.lane.b32.xlu0 %v422, 126
        %v503 = vpop.permute.xlu0 %502
        %504 = vrot.lane.b32.xlu0 %v423, 126
        %v505 = vpop.permute.xlu0 %504
        %506 = vrot.lane.b32.xlu0 %v424, 126
        %v507 = vpop.permute.xlu0 %506
        %s512 = scalar_lea.vmem [#allocation2], 240
        %vm513 = vcmask 113664
        %514 = vst.msk [vmem:[%s512 + $0x3] sm:$0xff] %vm513, %v501
        %515 = vst.msk [vmem:[%s512 + $0xb] sm:$0xff] %vm513, %v503
        %516 = vst.msk [vmem:[%s512 + $0x1b] sm:$0xff] %vm513, %v505
        %517 = vst.msk [vmem:[%s512 + $0x23] sm:$0xff] %vm513, %v507
        %518 = vrot.lane.b32.xlu0 %v421, 125
        %v519 = vpop.permute.xlu0 %518
        %520 = vrot.lane.b32.xlu0 %v422, 125
        %v521 = vpop.permute.xlu0 %520
        %522 = vrot.lane.b32.xlu0 %v423, 125
        %v523 = vpop.permute.xlu0 %522
        %524 = vrot.lane.b32.xlu0 %v424, 125
        %v525 = vpop.permute.xlu0 %524
        %s530 = scalar_lea.vmem [#allocation2], 288
        %vm531 = vcmask 105472
        %532 = vst.msk [vmem:[%s530 + $0x3] sm:$0xff] %vm531, %v519
        %533 = vst.msk [vmem:[%s530 + $0xb] sm:$0xff] %vm531, %v521
        %534 = vst.msk [vmem:[%s530 + $0x1b] sm:$0xff] %vm531, %v523
        %535 = vst.msk [vmem:[%s530 + $0x23] sm:$0xff] %vm531, %v525
        %s536 = sld [smem:[#allocation4]]
        %v537 = vstv %s536
        %v538 = vadd.f32 %v537, 0.0
        %v539 = vld [vmem:[#allocation2] sm:$0xff]
        %v540 = vld [vmem:[#allocation2 + $0x8] sm:$0xff]
        %v541 = vld [vmem:[#allocation2 + $0x18] sm:$0xff]
        %v542 = vld [vmem:[#allocation2 + $0x20] sm:$0xff]
        %s543 = sld [smem:[#allocation9]]
        %v544 = vstv %s543
        %v545 = vmul.f32 %v544, %v539
        %v546 = vmul.f32 %v544, %v540
        %v547 = vadd.f32 %v538, %v545
        %v548 = vadd.f32 %v538, %v546
        %s549 = sld [smem:[#allocation9 + $0x31]]
        %v550 = vstv %s549
        %v551 = vmul.f32 %v550, %v541
        %v552 = vmul.f32 %v550, %v542
        %v553 = vadd.f32 %v547, %v551
        %v554 = vadd.f32 %v548, %v552
        %v555 = vld [vmem:[%s458] sm:$0xff]
        %v556 = vld [vmem:[%s458 + $0x8] sm:$0xff]
        %v557 = vld [vmem:[%s458 + $0x18] sm:$0xff]
        %v558 = vld [vmem:[%s458 + $0x20] sm:$0xff]
        %s559 = sld [smem:[#allocation9 + $0x1]]
        %v560 = vstv %s559
        %v561 = vmul.f32 %v560, %v555
        %v562 = vmul.f32 %v560, %v556
        %v563 = vadd.f32 %v553, %v561
        %v564 = vadd.f32 %v554, %v562
        %s565 = sld [smem:[#allocation9 + $0x32]]
        %v566 = vstv %s565
        %v567 = vmul.f32 %v566, %v557
        %v568 = vmul.f32 %v566, %v558
        %v569 = vadd.f32 %v563, %v567
        %v570 = vadd.f32 %v564, %v568
        %v571 = vld [vmem:[%s476] sm:$0xff]
        %v572 = vld [vmem:[%s476 + $0x8] sm:$0xff]
        %v573 = vld [vmem:[%s476 + $0x18] sm:$0xff]
        %v574 = vld [vmem:[%s476 + $0x20] sm:$0xff]
        %s575 = sld [smem:[#allocation9 + $0x2]]
        %v576 = vstv %s575
        %v577 = vmul.f32 %v576, %v571
        %v578 = vmul.f32 %v576, %v572
        %v579 = vadd.f32 %v569, %v577
        %v580 = vadd.f32 %v570, %v578
        %s581 = sld [smem:[#allocation9 + $0x33]]
        %v582 = vstv %s581
        %v583 = vmul.f32 %v582, %v573
        %v584 = vmul.f32 %v582, %v574
        %v585 = vadd.f32 %v579, %v583
        %v586 = vadd.f32 %v580, %v584
        %v587 = vld [vmem:[%s298] sm:$0xff]
        %v588 = vld [vmem:[%s298 + $0x8] sm:$0xff]
        %v589 = vld [vmem:[%s298 + $0x18] sm:$0xff]
        %v590 = vld [vmem:[%s298 + $0x20] sm:$0xff]
        %s591 = sld [smem:[#allocation9 + $0x3]]
        %v592 = vstv %s591
        %v593 = vmul.f32 %v592, %v587
        %v594 = vmul.f32 %v592, %v588
        %v595 = vadd.f32 %v585, %v593
        %v596 = vadd.f32 %v586, %v594
        %s597 = sld [smem:[#allocation9 + $0x34]]
        %v598 = vstv %s597
        %v599 = vmul.f32 %v598, %v589
        %v600 = vmul.f32 %v598, %v590
        %v601 = vadd.f32 %v595, %v599
        %v602 = vadd.f32 %v596, %v600
        %v603 = vld [vmem:[%s494] sm:$0xff]
        %v604 = vld [vmem:[%s494 + $0x8] sm:$0xff]
        %v605 = vld [vmem:[%s494 + $0x18] sm:$0xff]
        %v606 = vld [vmem:[%s494 + $0x20] sm:$0xff]
        %s607 = sld [smem:[#allocation9 + $0x4]]
        %v608 = vstv %s607
        %v609 = vmul.f32 %v608, %v603
        %v610 = vmul.f32 %v608, %v604
        %v611 = vadd.f32 %v601, %v609
        %v612 = vadd.f32 %v602, %v610
        %s613 = sld [smem:[#allocation9 + $0x35]]
        %v614 = vstv %s613
        %v615 = vmul.f32 %v614, %v605
        %v616 = vmul.f32 %v614, %v606
        %v617 = vadd.f32 %v611, %v615
        %v618 = vadd.f32 %v612, %v616
        %v619 = vld [vmem:[%s512] sm:$0xff]
        %v620 = vld [vmem:[%s512 + $0x8] sm:$0xff]
        %v621 = vld [vmem:[%s512 + $0x18] sm:$0xff]
        %v622 = vld [vmem:[%s512 + $0x20] sm:$0xff]
        %s623 = sld [smem:[#allocation9 + $0x5]]
        %v624 = vstv %s623
        %v625 = vmul.f32 %v624, %v619
        %v626 = vmul.f32 %v624, %v620
        %v627 = vadd.f32 %v617, %v625
        %v628 = vadd.f32 %v618, %v626
        %s629 = sld [smem:[#allocation9 + $0x36]]
        %v630 = vstv %s629
        %v631 = vmul.f32 %v630, %v621
        %v632 = vmul.f32 %v630, %v622
        %v633 = vadd.f32 %v627, %v631
        %v634 = vadd.f32 %v628, %v632
        %v635 = vld [vmem:[%s530] sm:$0xff]
        %v636 = vld [vmem:[%s530 + $0x8] sm:$0xff]
        %v637 = vld [vmem:[%s530 + $0x18] sm:$0xff]
        %v638 = vld [vmem:[%s530 + $0x20] sm:$0xff]
        %s639 = sld [smem:[#allocation9 + $0x6]]
        %v640 = vstv %s639
        %v641 = vmul.f32 %v640, %v635
        %v642 = vmul.f32 %v640, %v636
        %v643 = vadd.f32 %v633, %v641
        %v644 = vadd.f32 %v634, %v642
        %s645 = sld [smem:[#allocation9 + $0x37]]
        %v646 = vstv %s645
        %v647 = vmul.f32 %v646, %v637
        %v648 = vmul.f32 %v646, %v638
        %v649 = vadd.f32 %v643, %v647
        %v650 = vadd.f32 %v644, %v648
        %v651 = vld [vmem:[#allocation2 + $0x1] sm:$0xff]
        %v652 = vld [vmem:[#allocation2 + $0x9] sm:$0xff]
        %v653 = vld [vmem:[#allocation2 + $0x19] sm:$0xff]
        %v654 = vld [vmem:[#allocation2 + $0x21] sm:$0xff]
        %s655 = sld [smem:[#allocation9 + $0x7]]
        %v656 = vstv %s655
        %v657 = vmul.f32 %v656, %v651
        %v658 = vmul.f32 %v656, %v652
        %v659 = vadd.f32 %v649, %v657
        %v660 = vadd.f32 %v650, %v658
        %s661 = sld [smem:[#allocation9 + $0x38]]
        %v662 = vstv %s661
        %v663 = vmul.f32 %v662, %v653
        %v664 = vmul.f32 %v662, %v654
        %v665 = vadd.f32 %v659, %v663
        %v666 = vadd.f32 %v660, %v664
        %v667 = vld [vmem:[%s458 + $0x1] sm:$0xff]
        %v668 = vld [vmem:[%s458 + $0x9] sm:$0xff]
        %v669 = vld [vmem:[%s458 + $0x19] sm:$0xff]
        %v670 = vld [vmem:[%s458 + $0x21] sm:$0xff]
        %s671 = sld [smem:[#allocation9 + $0x8]]
        %v672 = vstv %s671
        %v673 = vmul.f32 %v672, %v667
        %v674 = vmul.f32 %v672, %v668
        %v675 = vadd.f32 %v665, %v673
        %v676 = vadd.f32 %v666, %v674
        %s677 = sld [smem:[#allocation9 + $0x39]]
        %v678 = vstv %s677
        %v679 = vmul.f32 %v678, %v669
        %v680 = vmul.f32 %v678, %v670
        %v681 = vadd.f32 %v675, %v679
        %v682 = vadd.f32 %v676, %v680
        %v683 = vld [vmem:[%s476 + $0x1] sm:$0xff]
        %v684 = vld [vmem:[%s476 + $0x9] sm:$0xff]
        %v685 = vld [vmem:[%s476 + $0x19] sm:$0xff]
        %v686 = vld [vmem:[%s476 + $0x21] sm:$0xff]
        %s687 = sld [smem:[#allocation9 + $0x9]]
        %v688 = vstv %s687
        %v689 = vmul.f32 %v688, %v683
        %v690 = vmul.f32 %v688, %v684
        %v691 = vadd.f32 %v681, %v689
        %v692 = vadd.f32 %v682, %v690
        %s693 = sld [smem:[#allocation9 + $0x3a]]
        %v694 = vstv %s693
        %v695 = vmul.f32 %v694, %v685
        %v696 = vmul.f32 %v694, %v686
        %v697 = vadd.f32 %v691, %v695
        %v698 = vadd.f32 %v692, %v696
        %v699 = vld [vmem:[%s298 + $0x1] sm:$0xff]
        %v700 = vld [vmem:[%s298 + $0x9] sm:$0xff]
        %v701 = vld [vmem:[%s298 + $0x19] sm:$0xff]
        %v702 = vld [vmem:[%s298 + $0x21] sm:$0xff]
        %s703 = sld [smem:[#allocation9 + $0xa]]
        %v704 = vstv %s703
        %v705 = vmul.f32 %v704, %v699
        %v706 = vmul.f32 %v704, %v700
        %v707 = vadd.f32 %v697, %v705
        %v708 = vadd.f32 %v698, %v706
        %s709 = sld [smem:[#allocation9 + $0x3b]]
        %v710 = vstv %s709
        %v711 = vmul.f32 %v710, %v701
        %v712 = vmul.f32 %v710, %v702
        %v713 = vadd.f32 %v707, %v711
        %v714 = vadd.f32 %v708, %v712
        %v715 = vld [vmem:[%s494 + $0x1] sm:$0xff]
        %v716 = vld [vmem:[%s494 + $0x9] sm:$0xff]
        %v717 = vld [vmem:[%s494 + $0x19] sm:$0xff]
        %v718 = vld [vmem:[%s494 + $0x21] sm:$0xff]
        %s719 = sld [smem:[#allocation9 + $0xb]]
        %v720 = vstv %s719
        %v721 = vmul.f32 %v720, %v715
        %v722 = vmul.f32 %v720, %v716
        %v723 = vadd.f32 %v713, %v721
        %v724 = vadd.f32 %v714, %v722
        %s725 = sld [smem:[#allocation9 + $0x3c]]
        %v726 = vstv %s725
        %v727 = vmul.f32 %v726, %v717
        %v728 = vmul.f32 %v726, %v718
        %v729 = vadd.f32 %v723, %v727
        %v730 = vadd.f32 %v724, %v728
        %v731 = vld [vmem:[%s512 + $0x1] sm:$0xff]
        %v732 = vld [vmem:[%s512 + $0x9] sm:$0xff]
        %v733 = vld [vmem:[%s512 + $0x19] sm:$0xff]
        %v734 = vld [vmem:[%s512 + $0x21] sm:$0xff]
        %s735 = sld [smem:[#allocation9 + $0xc]]
        %v736 = vstv %s735
        %v737 = vmul.f32 %v736, %v731
        %v738 = vmul.f32 %v736, %v732
        %v739 = vadd.f32 %v729, %v737
        %v740 = vadd.f32 %v730, %v738
        %s741 = sld [smem:[#allocation9 + $0x3d]]
        %v742 = vstv %s741
        %v743 = vmul.f32 %v742, %v733
        %v744 = vmul.f32 %v742, %v734
        %v745 = vadd.f32 %v739, %v743
        %v746 = vadd.f32 %v740, %v744
        %v747 = vld [vmem:[%s530 + $0x1] sm:$0xff]
        %v748 = vld [vmem:[%s530 + $0x9] sm:$0xff]
        %v749 = vld [vmem:[%s530 + $0x19] sm:$0xff]
        %v750 = vld [vmem:[%s530 + $0x21] sm:$0xff]
        %s751 = sld [smem:[#allocation9 + $0xd]]
        %v752 = vstv %s751
        %v753 = vmul.f32 %v752, %v747
        %v754 = vmul.f32 %v752, %v748
        %v755 = vadd.f32 %v745, %v753
        %v756 = vadd.f32 %v746, %v754
        %s757 = sld [smem:[#allocation9 + $0x3e]]
        %v758 = vstv %s757
        %v759 = vmul.f32 %v758, %v749
        %v760 = vmul.f32 %v758, %v750
        %v761 = vadd.f32 %v755, %v759
        %v762 = vadd.f32 %v756, %v760
        %v763 = vld [vmem:[#allocation2 + $0x2] sm:$0xff]
        %v764 = vld [vmem:[#allocation2 + $0xa] sm:$0xff]
        %v765 = vld [vmem:[#allocation2 + $0x1a] sm:$0xff]
        %v766 = vld [vmem:[#allocation2 + $0x22] sm:$0xff]
        %s767 = sld [smem:[#allocation9 + $0xe]]
        %v768 = vstv %s767
        %v769 = vmul.f32 %v768, %v763
        %v770 = vmul.f32 %v768, %v764
        %v771 = vadd.f32 %v761, %v769
        %v772 = vadd.f32 %v762, %v770
        %s773 = sld [smem:[#allocation9 + $0x3f]]
        %v774 = vstv %s773
        %v775 = vmul.f32 %v774, %v765
        %v776 = vmul.f32 %v774, %v766
        %v777 = vadd.f32 %v771, %v775
        %v778 = vadd.f32 %v772, %v776
        %v779 = vld [vmem:[%s458 + $0x2] sm:$0xff]
        %v780 = vld [vmem:[%s458 + $0xa] sm:$0xff]
        %v781 = vld [vmem:[%s458 + $0x1a] sm:$0xff]
        %v782 = vld [vmem:[%s458 + $0x22] sm:$0xff]
        %s783 = sld [smem:[#allocation9 + $0xf]]
        %v784 = vstv %s783
        %v785 = vmul.f32 %v784, %v779
        %v786 = vmul.f32 %v784, %v780
        %v787 = vadd.f32 %v777, %v785
        %v788 = vadd.f32 %v778, %v786
        %s789 = sld [smem:[#allocation9 + $0x40]]
        %v790 = vstv %s789
        %v791 = vmul.f32 %v790, %v781
        %v792 = vmul.f32 %v790, %v782
        %v793 = vadd.f32 %v787, %v791
        %v794 = vadd.f32 %v788, %v792
        %v795 = vld [vmem:[%s476 + $0x2] sm:$0xff]
        %v796 = vld [vmem:[%s476 + $0xa] sm:$0xff]
        %v797 = vld [vmem:[%s476 + $0x1a] sm:$0xff]
        %v798 = vld [vmem:[%s476 + $0x22] sm:$0xff]
        %s799 = sld [smem:[#allocation9 + $0x10]]
        %v800 = vstv %s799
        %v801 = vmul.f32 %v800, %v795
        %v802 = vmul.f32 %v800, %v796
        %v803 = vadd.f32 %v793, %v801
        %v804 = vadd.f32 %v794, %v802
        %s805 = sld [smem:[#allocation9 + $0x41]]
        %v806 = vstv %s805
        %v807 = vmul.f32 %v806, %v797
        %v808 = vmul.f32 %v806, %v798
        %v809 = vadd.f32 %v803, %v807
        %v810 = vadd.f32 %v804, %v808
        %v811 = vld [vmem:[%s298 + $0x2] sm:$0xff]
        %v812 = vld [vmem:[%s298 + $0xa] sm:$0xff]
        %v813 = vld [vmem:[%s298 + $0x1a] sm:$0xff]
        %v814 = vld [vmem:[%s298 + $0x22] sm:$0xff]
        %s815 = sld [smem:[#allocation9 + $0x11]]
        %v816 = vstv %s815
        %v817 = vmul.f32 %v816, %v811
        %v818 = vmul.f32 %v816, %v812
        %v819 = vadd.f32 %v809, %v817
        %v820 = vadd.f32 %v810, %v818
        %s821 = sld [smem:[#allocation9 + $0x42]]
        %v822 = vstv %s821
        %v823 = vmul.f32 %v822, %v813
        %v824 = vmul.f32 %v822, %v814
        %v825 = vadd.f32 %v819, %v823
        %v826 = vadd.f32 %v820, %v824
        %v827 = vld [vmem:[%s494 + $0x2] sm:$0xff]
        %v828 = vld [vmem:[%s494 + $0xa] sm:$0xff]
        %v829 = vld [vmem:[%s494 + $0x1a] sm:$0xff]
        %v830 = vld [vmem:[%s494 + $0x22] sm:$0xff]
        %s831 = sld [smem:[#allocation9 + $0x12]]
        %v832 = vstv %s831
        %v833 = vmul.f32 %v832, %v827
        %v834 = vmul.f32 %v832, %v828
        %v835 = vadd.f32 %v825, %v833
        %v836 = vadd.f32 %v826, %v834
        %s837 = sld [smem:[#allocation9 + $0x43]]
        %v838 = vstv %s837
        %v839 = vmul.f32 %v838, %v829
        %v840 = vmul.f32 %v838, %v830
        %v841 = vadd.f32 %v835, %v839
        %v842 = vadd.f32 %v836, %v840
        %v843 = vld [vmem:[%s512 + $0x2] sm:$0xff]
        %v844 = vld [vmem:[%s512 + $0xa] sm:$0xff]
        %v845 = vld [vmem:[%s512 + $0x1a] sm:$0xff]
        %v846 = vld [vmem:[%s512 + $0x22] sm:$0xff]
        %s847 = sld [smem:[#allocation9 + $0x13]]
        %v848 = vstv %s847
        %v849 = vmul.f32 %v848, %v843
        %v850 = vmul.f32 %v848, %v844
        %v851 = vadd.f32 %v841, %v849
        %v852 = vadd.f32 %v842, %v850
        %s853 = sld [smem:[#allocation9 + $0x44]]
        %v854 = vstv %s853
        %v855 = vmul.f32 %v854, %v845
        %v856 = vmul.f32 %v854, %v846
        %v857 = vadd.f32 %v851, %v855
        %v858 = vadd.f32 %v852, %v856
        %v859 = vld [vmem:[%s530 + $0x2] sm:$0xff]
        %v860 = vld [vmem:[%s530 + $0xa] sm:$0xff]
        %v861 = vld [vmem:[%s530 + $0x1a] sm:$0xff]
        %v862 = vld [vmem:[%s530 + $0x22] sm:$0xff]
        %s863 = sld [smem:[#allocation9 + $0x14]]
        %v864 = vstv %s863
        %v865 = vmul.f32 %v864, %v859
        %v866 = vmul.f32 %v864, %v860
        %v867 = vadd.f32 %v857, %v865
        %v868 = vadd.f32 %v858, %v866
        %s869 = sld [smem:[#allocation9 + $0x45]]
        %v870 = vstv %s869
        %v871 = vmul.f32 %v870, %v861
        %v872 = vmul.f32 %v870, %v862
        %v873 = vadd.f32 %v867, %v871
        %v874 = vadd.f32 %v868, %v872
        %v875 = vld [vmem:[#allocation2 + $0x3] sm:$0xff]
        %v876 = vld [vmem:[#allocation2 + $0xb] sm:$0xff]
        %v877 = vld [vmem:[#allocation2 + $0x1b] sm:$0xff]
        %v878 = vld [vmem:[#allocation2 + $0x23] sm:$0xff]
        %s879 = sld [smem:[#allocation9 + $0x15]]
        %v880 = vstv %s879
        %v881 = vmul.f32 %v880, %v875
        %v882 = vmul.f32 %v880, %v876
        %v883 = vadd.f32 %v873, %v881
        %v884 = vadd.f32 %v874, %v882
        %s885 = sld [smem:[#allocation9 + $0x46]]
        %v886 = vstv %s885
        %v887 = vmul.f32 %v886, %v877
        %v888 = vmul.f32 %v886, %v878
        %v889 = vadd.f32 %v883, %v887
        %v890 = vadd.f32 %v884, %v888
        %v891 = vld [vmem:[%s458 + $0x3] sm:$0xff]
        %v892 = vld [vmem:[%s458 + $0xb] sm:$0xff]
        %v893 = vld [vmem:[%s458 + $0x1b] sm:$0xff]
        %v894 = vld [vmem:[%s458 + $0x23] sm:$0xff]
        %s895 = sld [smem:[#allocation9 + $0x16]]
        %v896 = vstv %s895
        %v897 = vmul.f32 %v896, %v891
        %v898 = vmul.f32 %v896, %v892
        %v899 = vadd.f32 %v889, %v897
        %v900 = vadd.f32 %v890, %v898
        %s901 = sld [smem:[#allocation9 + $0x47]]
        %v902 = vstv %s901
        %v903 = vmul.f32 %v902, %v893
        %v904 = vmul.f32 %v902, %v894
        %v905 = vadd.f32 %v899, %v903
        %v906 = vadd.f32 %v900, %v904
        %v907 = vld [vmem:[%s476 + $0x3] sm:$0xff]
        %v908 = vld [vmem:[%s476 + $0xb] sm:$0xff]
        %v909 = vld [vmem:[%s476 + $0x1b] sm:$0xff]
        %v910 = vld [vmem:[%s476 + $0x23] sm:$0xff]
        %s911 = sld [smem:[#allocation9 + $0x17]]
        %v912 = vstv %s911
        %v913 = vmul.f32 %v912, %v907
        %v914 = vmul.f32 %v912, %v908
        %v915 = vadd.f32 %v905, %v913
        %v916 = vadd.f32 %v906, %v914
        %s917 = sld [smem:[#allocation9 + $0x48]]
        %v918 = vstv %s917
        %v919 = vmul.f32 %v918, %v909
        %v920 = vmul.f32 %v918, %v910
        %v921 = vadd.f32 %v915, %v919
        %v922 = vadd.f32 %v916, %v920
        %v923 = vld [vmem:[%s298 + $0x3] sm:$0xff]
        %v924 = vld [vmem:[%s298 + $0xb] sm:$0xff]
        %v925 = vld [vmem:[%s298 + $0x1b] sm:$0xff]
        %v926 = vld [vmem:[%s298 + $0x23] sm:$0xff]
        %s927 = sld [smem:[#allocation9 + $0x18]]
        %v928 = vstv %s927
        %v929 = vmul.f32 %v928, %v923
        %v930 = vmul.f32 %v928, %v924
        %v931 = vadd.f32 %v921, %v929
        %v932 = vadd.f32 %v922, %v930
        %s933 = sld [smem:[#allocation9 + $0x49]]
        %v934 = vstv %s933
        %v935 = vmul.f32 %v934, %v925
        %v936 = vmul.f32 %v934, %v926
        %v937 = vadd.f32 %v931, %v935
        %v938 = vadd.f32 %v932, %v936
        %v939 = vld [vmem:[%s494 + $0x3] sm:$0xff]
        %v940 = vld [vmem:[%s494 + $0xb] sm:$0xff]
        %v941 = vld [vmem:[%s494 + $0x1b] sm:$0xff]
        %v942 = vld [vmem:[%s494 + $0x23] sm:$0xff]
        %s943 = sld [smem:[#allocation9 + $0x19]]
        %v944 = vstv %s943
        %v945 = vmul.f32 %v944, %v939
        %v946 = vmul.f32 %v944, %v940
        %v947 = vadd.f32 %v937, %v945
        %v948 = vadd.f32 %v938, %v946
        %s949 = sld [smem:[#allocation9 + $0x4a]]
        %v950 = vstv %s949
        %v951 = vmul.f32 %v950, %v941
        %v952 = vmul.f32 %v950, %v942
        %v953 = vadd.f32 %v947, %v951
        %v954 = vadd.f32 %v948, %v952
        %v955 = vld [vmem:[%s512 + $0x3] sm:$0xff]
        %v956 = vld [vmem:[%s512 + $0xb] sm:$0xff]
        %v957 = vld [vmem:[%s512 + $0x1b] sm:$0xff]
        %v958 = vld [vmem:[%s512 + $0x23] sm:$0xff]
        %s959 = sld [smem:[#allocation9 + $0x1a]]
        %v960 = vstv %s959
        %v961 = vmul.f32 %v960, %v955
        %v962 = vmul.f32 %v960, %v956
        %v963 = vadd.f32 %v953, %v961
        %v964 = vadd.f32 %v954, %v962
        %s965 = sld [smem:[#allocation9 + $0x4b]]
        %v966 = vstv %s965
        %v967 = vmul.f32 %v966, %v957
        %v968 = vmul.f32 %v966, %v958
        %v969 = vadd.f32 %v963, %v967
        %v970 = vadd.f32 %v964, %v968
        %v971 = vld [vmem:[%s530 + $0x3] sm:$0xff]
        %v972 = vld [vmem:[%s530 + $0xb] sm:$0xff]
        %v973 = vld [vmem:[%s530 + $0x1b] sm:$0xff]
        %v974 = vld [vmem:[%s530 + $0x23] sm:$0xff]
        %s975 = sld [smem:[#allocation9 + $0x1b]]
        %v976 = vstv %s975
        %v977 = vmul.f32 %v976, %v971
        %v978 = vmul.f32 %v976, %v972
        %v979 = vadd.f32 %v969, %v977
        %v980 = vadd.f32 %v970, %v978
        %s981 = sld [smem:[#allocation9 + $0x4c]]
        %v982 = vstv %s981
        %v983 = vmul.f32 %v982, %v973
        %v984 = vmul.f32 %v982, %v974
        %v985 = vadd.f32 %v979, %v983
        %v986 = vadd.f32 %v980, %v984
        %v987 = vld [vmem:[#allocation2 + $0x4] sm:$0xff]
        %v988 = vld [vmem:[#allocation2 + $0xc] sm:$0xff]
        %v989 = vld [vmem:[#allocation2 + $0x1c] sm:$0xff]
        %v990 = vld [vmem:[#allocation2 + $0x24] sm:$0xff]
        %s991 = sld [smem:[#allocation9 + $0x1c]]
        %v992 = vstv %s991
        %v993 = vmul.f32 %v992, %v987
        %v994 = vmul.f32 %v992, %v988
        %v995 = vadd.f32 %v985, %v993
        %v996 = vadd.f32 %v986, %v994
        %s997 = sld [smem:[#allocation9 + $0x4d]]
        %v998 = vstv %s997
        %v999 = vmul.f32 %v998, %v989
        %v1000 = vmul.f32 %v998, %v990
        %v1001 = vadd.f32 %v995, %v999
        %v1002 = vadd.f32 %v996, %v1000
        %v1003 = vld [vmem:[%s458 + $0x4] sm:$0xff]
        %v1004 = vld [vmem:[%s458 + $0xc] sm:$0xff]
        %v1005 = vld [vmem:[%s458 + $0x1c] sm:$0xff]
        %v1006 = vld [vmem:[%s458 + $0x24] sm:$0xff]
        %s1007 = sld [smem:[#allocation9 + $0x1d]]
        %v1008 = vstv %s1007
        %v1009 = vmul.f32 %v1008, %v1003
        %v1010 = vmul.f32 %v1008, %v1004
        %v1011 = vadd.f32 %v1001, %v1009
        %v1012 = vadd.f32 %v1002, %v1010
        %s1013 = sld [smem:[#allocation9 + $0x4e]]
        %v1014 = vstv %s1013
        %v1015 = vmul.f32 %v1014, %v1005
        %v1016 = vmul.f32 %v1014, %v1006
        %v1017 = vadd.f32 %v1011, %v1015
        %v1018 = vadd.f32 %v1012, %v1016
        %v1019 = vld [vmem:[%s476 + $0x4] sm:$0xff]
        %v1020 = vld [vmem:[%s476 + $0xc] sm:$0xff]
        %v1021 = vld [vmem:[%s476 + $0x1c] sm:$0xff]
        %v1022 = vld [vmem:[%s476 + $0x24] sm:$0xff]
        %s1023 = sld [smem:[#allocation9 + $0x1e]]
        %v1024 = vstv %s1023
        %v1025 = vmul.f32 %v1024, %v1019
        %v1026 = vmul.f32 %v1024, %v1020
        %v1027 = vadd.f32 %v1017, %v1025
        %v1028 = vadd.f32 %v1018, %v1026
        %s1029 = sld [smem:[#allocation9 + $0x4f]]
        %v1030 = vstv %s1029
        %v1031 = vmul.f32 %v1030, %v1021
        %v1032 = vmul.f32 %v1030, %v1022
        %v1033 = vadd.f32 %v1027, %v1031
        %v1034 = vadd.f32 %v1028, %v1032
        %v1035 = vld [vmem:[%s298 + $0x4] sm:$0xff]
        %v1036 = vld [vmem:[%s298 + $0xc] sm:$0xff]
        %v1037 = vld [vmem:[%s298 + $0x1c] sm:$0xff]
        %v1038 = vld [vmem:[%s298 + $0x24] sm:$0xff]
        %s1039 = sld [smem:[#allocation9 + $0x1f]]
        %v1040 = vstv %s1039
        %v1041 = vmul.f32 %v1040, %v1035
        %v1042 = vmul.f32 %v1040, %v1036
        %v1043 = vadd.f32 %v1033, %v1041
        %v1044 = vadd.f32 %v1034, %v1042
        %s1045 = sld [smem:[#allocation9 + $0x50]]
        %v1046 = vstv %s1045
        %v1047 = vmul.f32 %v1046, %v1037
        %v1048 = vmul.f32 %v1046, %v1038
        %v1049 = vadd.f32 %v1043, %v1047
        %v1050 = vadd.f32 %v1044, %v1048
        %v1051 = vld [vmem:[%s494 + $0x4] sm:$0xff]
        %v1052 = vld [vmem:[%s494 + $0xc] sm:$0xff]
        %v1053 = vld [vmem:[%s494 + $0x1c] sm:$0xff]
        %v1054 = vld [vmem:[%s494 + $0x24] sm:$0xff]
        %s1055 = sld [smem:[#allocation9 + $0x20]]
        %v1056 = vstv %s1055
        %v1057 = vmul.f32 %v1056, %v1051
        %v1058 = vmul.f32 %v1056, %v1052
        %v1059 = vadd.f32 %v1049, %v1057
        %v1060 = vadd.f32 %v1050, %v1058
        %s1061 = sld [smem:[#allocation9 + $0x51]]
        %v1062 = vstv %s1061
        %v1063 = vmul.f32 %v1062, %v1053
        %v1064 = vmul.f32 %v1062, %v1054
        %v1065 = vadd.f32 %v1059, %v1063
        %v1066 = vadd.f32 %v1060, %v1064
        %v1067 = vld [vmem:[%s512 + $0x4] sm:$0xff]
        %v1068 = vld [vmem:[%s512 + $0xc] sm:$0xff]
        %v1069 = vld [vmem:[%s512 + $0x1c] sm:$0xff]
        %v1070 = vld [vmem:[%s512 + $0x24] sm:$0xff]
        %s1071 = sld [smem:[#allocation9 + $0x21]]
        %v1072 = vstv %s1071
        %v1073 = vmul.f32 %v1072, %v1067
        %v1074 = vmul.f32 %v1072, %v1068
        %v1075 = vadd.f32 %v1065, %v1073
        %v1076 = vadd.f32 %v1066, %v1074
        %s1077 = sld [smem:[#allocation9 + $0x52]]
        %v1078 = vstv %s1077
        %v1079 = vmul.f32 %v1078, %v1069
        %v1080 = vmul.f32 %v1078, %v1070
        %v1081 = vadd.f32 %v1075, %v1079
        %v1082 = vadd.f32 %v1076, %v1080
        %v1083 = vld [vmem:[%s530 + $0x4] sm:$0xff]
        %v1084 = vld [vmem:[%s530 + $0xc] sm:$0xff]
        %v1085 = vld [vmem:[%s530 + $0x1c] sm:$0xff]
        %v1086 = vld [vmem:[%s530 + $0x24] sm:$0xff]
        %s1087 = sld [smem:[#allocation9 + $0x22]]
        %v1088 = vstv %s1087
        %v1089 = vmul.f32 %v1088, %v1083
        %v1090 = vmul.f32 %v1088, %v1084
        %v1091 = vadd.f32 %v1081, %v1089
        %v1092 = vadd.f32 %v1082, %v1090
        %s1093 = sld [smem:[#allocation9 + $0x53]]
        %v1094 = vstv %s1093
        %v1095 = vmul.f32 %v1094, %v1085
        %v1096 = vmul.f32 %v1094, %v1086
        %v1097 = vadd.f32 %v1091, %v1095
        %v1098 = vadd.f32 %v1092, %v1096
        %v1099 = vld [vmem:[#allocation2 + $0x5] sm:$0xff]
        %v1100 = vld [vmem:[#allocation2 + $0xd] sm:$0xff]
        %v1101 = vld [vmem:[#allocation2 + $0x1d] sm:$0xff]
        %v1102 = vld [vmem:[#allocation2 + $0x25] sm:$0xff]
        %s1103 = sld [smem:[#allocation9 + $0x23]]
        %v1104 = vstv %s1103
        %v1105 = vmul.f32 %v1104, %v1099
        %v1106 = vmul.f32 %v1104, %v1100
        %v1107 = vadd.f32 %v1097, %v1105
        %v1108 = vadd.f32 %v1098, %v1106
        %s1109 = sld [smem:[#allocation9 + $0x54]]
        %v1110 = vstv %s1109
        %v1111 = vmul.f32 %v1110, %v1101
        %v1112 = vmul.f32 %v1110, %v1102
        %v1113 = vadd.f32 %v1107, %v1111
        %v1114 = vadd.f32 %v1108, %v1112
        %v1115 = vld [vmem:[%s458 + $0x5] sm:$0xff]
        %v1116 = vld [vmem:[%s458 + $0xd] sm:$0xff]
        %v1117 = vld [vmem:[%s458 + $0x1d] sm:$0xff]
        %v1118 = vld [vmem:[%s458 + $0x25] sm:$0xff]
        %s1119 = sld [smem:[#allocation9 + $0x24]]
        %v1120 = vstv %s1119
        %v1121 = vmul.f32 %v1120, %v1115
        %v1122 = vmul.f32 %v1120, %v1116
        %v1123 = vadd.f32 %v1113, %v1121
        %v1124 = vadd.f32 %v1114, %v1122
        %s1125 = sld [smem:[#allocation9 + $0x55]]
        %v1126 = vstv %s1125
        %v1127 = vmul.f32 %v1126, %v1117
        %v1128 = vmul.f32 %v1126, %v1118
        %v1129 = vadd.f32 %v1123, %v1127
        %v1130 = vadd.f32 %v1124, %v1128
        %v1131 = vld [vmem:[%s476 + $0x5] sm:$0xff]
        %v1132 = vld [vmem:[%s476 + $0xd] sm:$0xff]
        %v1133 = vld [vmem:[%s476 + $0x1d] sm:$0xff]
        %v1134 = vld [vmem:[%s476 + $0x25] sm:$0xff]
        %s1135 = sld [smem:[#allocation9 + $0x25]]
        %v1136 = vstv %s1135
        %v1137 = vmul.f32 %v1136, %v1131
        %v1138 = vmul.f32 %v1136, %v1132
        %v1139 = vadd.f32 %v1129, %v1137
        %v1140 = vadd.f32 %v1130, %v1138
        %s1141 = sld [smem:[#allocation9 + $0x56]]
        %v1142 = vstv %s1141
        %v1143 = vmul.f32 %v1142, %v1133
        %v1144 = vmul.f32 %v1142, %v1134
        %v1145 = vadd.f32 %v1139, %v1143
        %v1146 = vadd.f32 %v1140, %v1144
        %v1147 = vld [vmem:[%s298 + $0x5] sm:$0xff]
        %v1148 = vld [vmem:[%s298 + $0xd] sm:$0xff]
        %v1149 = vld [vmem:[%s298 + $0x1d] sm:$0xff]
        %v1150 = vld [vmem:[%s298 + $0x25] sm:$0xff]
        %s1151 = sld [smem:[#allocation9 + $0x26]]
        %v1152 = vstv %s1151
        %v1153 = vmul.f32 %v1152, %v1147
        %v1154 = vmul.f32 %v1152, %v1148
        %v1155 = vadd.f32 %v1145, %v1153
        %v1156 = vadd.f32 %v1146, %v1154
        %s1157 = sld [smem:[#allocation9 + $0x57]]
        %v1158 = vstv %s1157
        %v1159 = vmul.f32 %v1158, %v1149
        %v1160 = vmul.f32 %v1158, %v1150
        %v1161 = vadd.f32 %v1155, %v1159
        %v1162 = vadd.f32 %v1156, %v1160
        %v1163 = vld [vmem:[%s494 + $0x5] sm:$0xff]
        %v1164 = vld [vmem:[%s494 + $0xd] sm:$0xff]
        %v1165 = vld [vmem:[%s494 + $0x1d] sm:$0xff]
        %v1166 = vld [vmem:[%s494 + $0x25] sm:$0xff]
        %s1167 = sld [smem:[#allocation9 + $0x27]]
        %v1168 = vstv %s1167
        %v1169 = vmul.f32 %v1168, %v1163
        %v1170 = vmul.f32 %v1168, %v1164
        %v1171 = vadd.f32 %v1161, %v1169
        %v1172 = vadd.f32 %v1162, %v1170
        %s1173 = sld [smem:[#allocation9 + $0x58]]
        %v1174 = vstv %s1173
        %v1175 = vmul.f32 %v1174, %v1165
        %v1176 = vmul.f32 %v1174, %v1166
        %v1177 = vadd.f32 %v1171, %v1175
        %v1178 = vadd.f32 %v1172, %v1176
        %v1179 = vld [vmem:[%s512 + $0x5] sm:$0xff]
        %v1180 = vld [vmem:[%s512 + $0xd] sm:$0xff]
        %v1181 = vld [vmem:[%s512 + $0x1d] sm:$0xff]
        %v1182 = vld [vmem:[%s512 + $0x25] sm:$0xff]
        %s1183 = sld [smem:[#allocation9 + $0x28]]
        %v1184 = vstv %s1183
        %v1185 = vmul.f32 %v1184, %v1179
        %v1186 = vmul.f32 %v1184, %v1180
        %v1187 = vadd.f32 %v1177, %v1185
        %v1188 = vadd.f32 %v1178, %v1186
        %s1189 = sld [smem:[#allocation9 + $0x59]]
        %v1190 = vstv %s1189
        %v1191 = vmul.f32 %v1190, %v1181
        %v1192 = vmul.f32 %v1190, %v1182
        %v1193 = vadd.f32 %v1187, %v1191
        %v1194 = vadd.f32 %v1188, %v1192
        %v1195 = vld [vmem:[%s530 + $0x5] sm:$0xff]
        %v1196 = vld [vmem:[%s530 + $0xd] sm:$0xff]
        %v1197 = vld [vmem:[%s530 + $0x1d] sm:$0xff]
        %v1198 = vld [vmem:[%s530 + $0x25] sm:$0xff]
        %s1199 = sld [smem:[#allocation9 + $0x29]]
        %v1200 = vstv %s1199
        %v1201 = vmul.f32 %v1200, %v1195
        %v1202 = vmul.f32 %v1200, %v1196
        %v1203 = vadd.f32 %v1193, %v1201
        %v1204 = vadd.f32 %v1194, %v1202
        %s1205 = sld [smem:[#allocation9 + $0x5a]]
        %v1206 = vstv %s1205
        %v1207 = vmul.f32 %v1206, %v1197
        %v1208 = vmul.f32 %v1206, %v1198
        %v1209 = vadd.f32 %v1203, %v1207
        %v1210 = vadd.f32 %v1204, %v1208
        %v1211 = vld [vmem:[#allocation2 + $0x6] sm:$0xff]
        %v1212 = vld [vmem:[#allocation2 + $0xe] sm:$0xff]
        %v1213 = vld [vmem:[#allocation2 + $0x1e] sm:$0xff]
        %v1214 = vld [vmem:[#allocation2 + $0x26] sm:$0xff]
        %s1215 = sld [smem:[#allocation9 + $0x2a]]
        %v1216 = vstv %s1215
        %v1217 = vmul.f32 %v1216, %v1211
        %v1218 = vmul.f32 %v1216, %v1212
        %v1219 = vadd.f32 %v1209, %v1217
        %v1220 = vadd.f32 %v1210, %v1218
        %s1221 = sld [smem:[#allocation9 + $0x5b]]
        %v1222 = vstv %s1221
        %v1223 = vmul.f32 %v1222, %v1213
        %v1224 = vmul.f32 %v1222, %v1214
        %v1225 = vadd.f32 %v1219, %v1223
        %v1226 = vadd.f32 %v1220, %v1224
        %v1227 = vld [vmem:[%s458 + $0x6] sm:$0xff]
        %v1228 = vld [vmem:[%s458 + $0xe] sm:$0xff]
        %v1229 = vld [vmem:[%s458 + $0x1e] sm:$0xff]
        %v1230 = vld [vmem:[%s458 + $0x26] sm:$0xff]
        %s1231 = sld [smem:[#allocation9 + $0x2b]]
        %v1232 = vstv %s1231
        %v1233 = vmul.f32 %v1232, %v1227
        %v1234 = vmul.f32 %v1232, %v1228
        %v1235 = vadd.f32 %v1225, %v1233
        %v1236 = vadd.f32 %v1226, %v1234
        %s1237 = sld [smem:[#allocation9 + $0x5c]]
        %v1238 = vstv %s1237
        %v1239 = vmul.f32 %v1238, %v1229
        %v1240 = vmul.f32 %v1238, %v1230
        %v1241 = vadd.f32 %v1235, %v1239
        %v1242 = vadd.f32 %v1236, %v1240
        %v1243 = vld [vmem:[%s476 + $0x6] sm:$0xff]
        %v1244 = vld [vmem:[%s476 + $0xe] sm:$0xff]
        %v1245 = vld [vmem:[%s476 + $0x1e] sm:$0xff]
        %v1246 = vld [vmem:[%s476 + $0x26] sm:$0xff]
        %s1247 = sld [smem:[#allocation9 + $0x2c]]
        %v1248 = vstv %s1247
        %v1249 = vmul.f32 %v1248, %v1243
        %v1250 = vmul.f32 %v1248, %v1244
        %v1251 = vadd.f32 %v1241, %v1249
        %v1252 = vadd.f32 %v1242, %v1250
        %s1253 = sld [smem:[#allocation9 + $0x5d]]
        %v1254 = vstv %s1253
        %v1255 = vmul.f32 %v1254, %v1245
        %v1256 = vmul.f32 %v1254, %v1246
        %v1257 = vadd.f32 %v1251, %v1255
        %v1258 = vadd.f32 %v1252, %v1256
        %v1259 = vld [vmem:[%s298 + $0x6] sm:$0xff]
        %v1260 = vld [vmem:[%s298 + $0xe] sm:$0xff]
        %v1261 = vld [vmem:[%s298 + $0x1e] sm:$0xff]
        %v1262 = vld [vmem:[%s298 + $0x26] sm:$0xff]
        %s1263 = sld [smem:[#allocation9 + $0x2d]]
        %v1264 = vstv %s1263
        %v1265 = vmul.f32 %v1264, %v1259
        %v1266 = vmul.f32 %v1264, %v1260
        %v1267 = vadd.f32 %v1257, %v1265
        %v1268 = vadd.f32 %v1258, %v1266
        %s1269 = sld [smem:[#allocation9 + $0x5e]]
        %v1270 = vstv %s1269
        %v1271 = vmul.f32 %v1270, %v1261
        %v1272 = vmul.f32 %v1270, %v1262
        %v1273 = vadd.f32 %v1267, %v1271
        %v1274 = vadd.f32 %v1268, %v1272
        %v1275 = vld [vmem:[%s494 + $0x6] sm:$0xff]
        %v1276 = vld [vmem:[%s494 + $0xe] sm:$0xff]
        %v1277 = vld [vmem:[%s494 + $0x1e] sm:$0xff]
        %v1278 = vld [vmem:[%s494 + $0x26] sm:$0xff]
        %s1279 = sld [smem:[#allocation9 + $0x2e]]
        %v1280 = vstv %s1279
        %v1281 = vmul.f32 %v1280, %v1275
        %v1282 = vmul.f32 %v1280, %v1276
        %v1283 = vadd.f32 %v1273, %v1281
        %v1284 = vadd.f32 %v1274, %v1282
        %s1285 = sld [smem:[#allocation9 + $0x5f]]
        %v1286 = vstv %s1285
        %v1287 = vmul.f32 %v1286, %v1277
        %v1288 = vmul.f32 %v1286, %v1278
        %v1289 = vadd.f32 %v1283, %v1287
        %v1290 = vadd.f32 %v1284, %v1288
        %v1291 = vld [vmem:[%s512 + $0x6] sm:$0xff]
        %v1292 = vld [vmem:[%s512 + $0xe] sm:$0xff]
        %v1293 = vld [vmem:[%s512 + $0x1e] sm:$0xff]
        %v1294 = vld [vmem:[%s512 + $0x26] sm:$0xff]
        %s1295 = sld [smem:[#allocation9 + $0x2f]]
        %v1296 = vstv %s1295
        %v1297 = vmul.f32 %v1296, %v1291
        %v1298 = vmul.f32 %v1296, %v1292
        %v1299 = vadd.f32 %v1289, %v1297
        %v1300 = vadd.f32 %v1290, %v1298
        %s1301 = sld [smem:[#allocation9 + $0x60]]
        %v1302 = vstv %s1301
        %v1303 = vmul.f32 %v1302, %v1293
        %v1304 = vmul.f32 %v1302, %v1294
        %v1305 = vadd.f32 %v1299, %v1303
        %v1306 = vadd.f32 %v1300, %v1304
        %v1307 = vld [vmem:[%s530 + $0x6] sm:$0xff]
        %v1308 = vld [vmem:[%s530 + $0xe] sm:$0xff]
        %v1309 = vld [vmem:[%s530 + $0x1e] sm:$0xff]
        %v1310 = vld [vmem:[%s530 + $0x26] sm:$0xff]
        %s1311 = sld [smem:[#allocation9 + $0x30]]
        %v1312 = vstv %s1311
        %v1313 = vmul.f32 %v1312, %v1307
        %v1314 = vmul.f32 %v1312, %v1308
        %v1315 = vadd.f32 %v1305, %v1313
        %v1316 = vadd.f32 %v1306, %v1314
        %s1317 = sld [smem:[#allocation9 + $0x61]]
        %v1318 = vstv %s1317
        %v1319 = vmul.f32 %v1318, %v1309
        %v1320 = vmul.f32 %v1318, %v1310
        %v1321 = vadd.f32 %v1315, %v1319
        %v1322 = vadd.f32 %v1316, %v1320
        %v1323 = vxor.u32 %v1321, 2147483648
        %v1324 = vxor.u32 %v1322, 2147483648
        %v1325 = vmul.f32 %v1323, 1.442695
        %v1326 = vpow.pop %v1325
        %v1327 = vmul.f32 %v1324, 1.442695
        %v1328 = vpow.pop %v1327
        %v1329 = vadd.f32 %v1326, 1.0
        %v1330 = vadd.f32 %v1328, 1.0
        %v1331 = vrcp.pop %v1329
        %v1332 = vmul.f32 %v1329, %v1331
        %v1333 = vsub.f32 1.0, %v1332
        %v1334 = vmul.f32 %v1331, %v1333
        %v1335 = vadd.f32 %v1331, %v1334
        %vm1336 = vweird.f32 %v1329
        %vm1337 = vweird.f32 %v1331
        %vm1338 = vmor %vm1336, %vm1337
        %v1339 = vsel %vm1338, %v1331, %v1335
        %v1340 = vand.u32 2147483647, %v1329
        %vm1341 = vcmp.eq.f32.partialorder %v1340, 8.507059e+37
        %v1342 = vand.u32 %v1329, 2147483648
        %v1343 = vor.u32 1.1754944e-38, %v1342
        %v1344 = vsel %vm1341, %v1343, %v1339
        %v1345 = vmul.f32 1.0, %v1344
        %v1346 = vrcp.pop %v1330
        %v1347 = vmul.f32 %v1330, %v1346
        %v1348 = vsub.f32 1.0, %v1347
        %v1349 = vmul.f32 %v1346, %v1348
        %v1350 = vadd.f32 %v1346, %v1349
        %vm1351 = vweird.f32 %v1330
        %vm1352 = vweird.f32 %v1346
        %vm1353 = vmor %vm1351, %vm1352
        %v1354 = vsel %vm1353, %v1346, %v1350
        %v1355 = vand.u32 2147483647, %v1330
        %vm1356 = vcmp.eq.f32.partialorder %v1355, 8.507059e+37
        %v1357 = vand.u32 %v1330, 2147483648
        %v1358 = vor.u32 1.1754944e-38, %v1357
        %v1359 = vsel %vm1356, %v1358, %v1354
        %v1360 = vmul.f32 1.0, %v1359
        %v1361 = vlaneseq
        %vm1362 = vcmp.ge.s32.totalorder %v1361, 0
        %vm1363 = vcmp.lt.s32.totalorder %v1361, 16
        %vm1364 = vmand %vm1362, %vm1363
        %1365 = vst.msk [vmem:[#allocation3] sm:$0x1] %vm1364, %v1345
        %1367 = vst [vmem:[#allocation1] sm:$0xff] %v1345
        %s1368 = scalar_lea.vmem [#allocation1], 1
        %v1369 = vld [vmem:[%s1368] ss:$9 sm:$0xff]
        %1370 = vrot.lane.b32.xlu0 %v1369, 16
        %v1371 = vpop.permute.xlu0 %1370
        %vm1373 = vcmp.ge.s32.totalorder %v1361, 16
        %vm1374 = vcmp.lt.s32.totalorder %v1361, 32
        %vm1375 = vmand %vm1373, %vm1374
        %1376 = vst.msk [vmem:[#allocation3] sm:$0x1] %vm1375, %v1371
        %1377 = vst [vmem:[#allocation1] sm:$0xff] %v1345
        %s1378 = scalar_lea.vmem [#allocation1], 2
        %v1379 = vld [vmem:[%s1378] ss:$9 sm:$0xff]
        %1380 = vrot.lane.b32.xlu0 %v1379, 32
        %v1381 = vpop.permute.xlu0 %1380
        %vm1383 = vcmp.ge.s32.totalorder %v1361, 32
        %vm1384 = vcmp.lt.s32.totalorder %v1361, 48
        %vm1385 = vmand %vm1383, %vm1384
        %1386 = vst.msk [vmem:[#allocation3] sm:$0x1] %vm1385, %v1381
        %1387 = vst [vmem:[#allocation1] sm:$0xff] %v1345
        %s1388 = scalar_lea.vmem [#allocation1], 3
        %v1389 = vld [vmem:[%s1388] ss:$9 sm:$0xff]
        %1390 = vrot.lane.b32.xlu0 %v1389, 48
        %v1391 = vpop.permute.xlu0 %1390
        %vm1393 = vcmp.ge.s32.totalorder %v1361, 48
        %vm1394 = vcmp.lt.s32.totalorder %v1361, 64
        %vm1395 = vmand %vm1393, %vm1394
        %1396 = vst.msk [vmem:[#allocation3] sm:$0x1] %vm1395, %v1391
        %1397 = vst [vmem:[#allocation1] sm:$0xff] %v1345
        %s1398 = scalar_lea.vmem [#allocation1], 4
        %v1399 = vld [vmem:[%s1398] ss:$9 sm:$0xff]
        %1400 = vrot.lane.b32.xlu0 %v1399, 64
        %v1401 = vpop.permute.xlu0 %1400
        %vm1403 = vcmp.ge.s32.totalorder %v1361, 64
        %vm1404 = vcmp.lt.s32.totalorder %v1361, 80
        %vm1405 = vmand %vm1403, %vm1404
        %1406 = vst.msk [vmem:[#allocation3] sm:$0x1] %vm1405, %v1401
        %1407 = vst [vmem:[#allocation1] sm:$0xff] %v1345
        %s1408 = scalar_lea.vmem [#allocation1], 5
        %v1409 = vld [vmem:[%s1408] ss:$9 sm:$0xff]
        %1410 = vrot.lane.b32.xlu0 %v1409, 80
        %v1411 = vpop.permute.xlu0 %1410
        %vm1413 = vcmp.ge.s32.totalorder %v1361, 80
        %vm1414 = vcmp.lt.s32.totalorder %v1361, 96
        %vm1415 = vmand %vm1413, %vm1414
        %1416 = vst.msk [vmem:[#allocation3] sm:$0x1] %vm1415, %v1411
        %1417 = vst [vmem:[#allocation1] sm:$0xff] %v1345
        %s1418 = scalar_lea.vmem [#allocation1], 6
        %v1419 = vld [vmem:[%s1418] ss:$9 sm:$0xff]
        %1420 = vrot.lane.b32.xlu0 %v1419, 96
        %v1421 = vpop.permute.xlu0 %1420
        %vm1423 = vcmp.ge.s32.totalorder %v1361, 96
        %vm1424 = vcmp.lt.s32.totalorder %v1361, 112
        %vm1425 = vmand %vm1423, %vm1424
        %1426 = vst.msk [vmem:[#allocation3] sm:$0x1] %vm1425, %v1421
        %1427 = vst [vmem:[#allocation1] sm:$0xff] %v1345
        %s1428 = scalar_lea.vmem [#allocation1], 7
        %v1429 = vld [vmem:[%s1428] ss:$9 sm:$0xff]
        %1430 = vrot.lane.b32.xlu0 %v1429, 112
        %v1431 = vpop.permute.xlu0 %1430
        %vm1433 = vcmp.ge.s32.totalorder %v1361, 112
        %vm1434 = vcmp.lt.s32.totalorder %v1361, 128
        %vm1435 = vmand %vm1433, %vm1434
        %1436 = vst.msk [vmem:[#allocation3] sm:$0x1] %vm1435, %v1431
        %1437 = vst.msk [vmem:[#allocation3 + $0x1] sm:$0x1] %vm1364, %v1360
        %1439 = vst [vmem:[#allocation1] sm:$0xff] %v1360
        %s1440 = scalar_lea.vmem [#allocation1], 1
        %v1441 = vld [vmem:[%s1440] ss:$9 sm:$0xff]
        %1442 = vrot.lane.b32.xlu0 %v1441, 16
        %v1443 = vpop.permute.xlu0 %1442
        %1445 = vst.msk [vmem:[#allocation3 + $0x1] sm:$0x1] %vm1375, %v1443
        %1446 = vst [vmem:[#allocation1] sm:$0xff] %v1360
        %s1447 = scalar_lea.vmem [#allocation1], 2
        %v1448 = vld [vmem:[%s1447] ss:$9 sm:$0xff]
        %1449 = vrot.lane.b32.xlu0 %v1448, 32
        %v1450 = vpop.permute.xlu0 %1449
        %1452 = vst.msk [vmem:[#allocation3 + $0x1] sm:$0x1] %vm1385, %v1450
        %1453 = vst [vmem:[#allocation1] sm:$0xff] %v1360
        %s1454 = scalar_lea.vmem [#allocation1], 3
        %v1455 = vld [vmem:[%s1454] ss:$9 sm:$0xff]
        %1456 = vrot.lane.b32.xlu0 %v1455, 48
        %v1457 = vpop.permute.xlu0 %1456
        %1459 = vst.msk [vmem:[#allocation3 + $0x1] sm:$0x1] %vm1395, %v1457
        %1460 = vst [vmem:[#allocation1] sm:$0xff] %v1360
        %s1461 = scalar_lea.vmem [#allocation1], 4
        %v1462 = vld [vmem:[%s1461] ss:$9 sm:$0xff]
        %1463 = vrot.lane.b32.xlu0 %v1462, 64
        %v1464 = vpop.permute.xlu0 %1463
        %1466 = vst.msk [vmem:[#allocation3 + $0x1] sm:$0x1] %vm1405, %v1464
        %1467 = vst [vmem:[#allocation1] sm:$0xff] %v1360
        %s1468 = scalar_lea.vmem [#allocation1], 5
        %v1469 = vld [vmem:[%s1468] ss:$9 sm:$0xff]
        %1470 = vrot.lane.b32.xlu0 %v1469, 80
        %v1471 = vpop.permute.xlu0 %1470
        %1473 = vst.msk [vmem:[#allocation3 + $0x1] sm:$0x1] %vm1415, %v1471
        %1474 = vst [vmem:[#allocation1] sm:$0xff] %v1360
        %s1475 = scalar_lea.vmem [#allocation1], 6
        %v1476 = vld [vmem:[%s1475] ss:$9 sm:$0xff]
        %1477 = vrot.lane.b32.xlu0 %v1476, 96
        %v1478 = vpop.permute.xlu0 %1477
        %1480 = vst.msk [vmem:[#allocation3 + $0x1] sm:$0x1] %vm1425, %v1478
        %1481 = vst [vmem:[#allocation1] sm:$0xff] %v1360
        %s1482 = scalar_lea.vmem [#allocation1], 7
        %v1483 = vld [vmem:[%s1482] ss:$9 sm:$0xff]
        %1484 = vrot.lane.b32.xlu0 %v1483, 112
        %v1485 = vpop.permute.xlu0 %1484
        %1487 = vst.msk [vmem:[#allocation3 + $0x1] sm:$0x1] %vm1435, %v1485
        %v1488 = vld [vmem:[%s174] sm:$0xff]
        %v1489 = vld [vmem:[#allocation3] sm:$0x3]
        %v1491 = vperm.slane %v1489, 0
        %v1492 = vperm.slane %v1489, 1
        %v1493 = vrot.slane %v1492, 4
        %v1494 = vsel %vm211, %v1491, %v1493
        %v1496 = vmul.f32 %v1488, %v1494
        %1497 = vst [vmem:[%s203] sm:$0xff] %v1496
        %s1498 = sand.u32 %s98, 1
        %s1499 = scalar_lea.sflag [#allocation7], %s1498
        %s1500 = sand.u32 %s98, 1
        %s1501 = smul.addr %s1500, 8
        %s1502 = scalar_lea.vmem [#allocation10], %s1501
        // Predicated region
        $region41: #{tpu_custom_call.1} parent=31 // pred_check
          %p1503 = pneg %p108
        $region42: #{tpu_custom_call.1} parent=31 // pred_check_branch
          %1505 = sbr.rel (%p1503) target = $region44
        $region43: #{tpu_custom_call.1} parent=31 // pred_region
          %1507 = vsyncadd %s1499, 0
          %s1508 = smul.addr %s22, 2
          %s1509 = smul.addr %s1508, 4
          %s1510 = scalar_lea.hbm %s3, %s1509
          %s1512 = sshll.u32 %s1502, 4
          %s1513 = int_to_ptr.vmem [resolvable:$true] %s1512
          %s1514 = sshll.u32 %s1510, 4
          %s1515 = int_to_ptr.hbm [resolvable:$true] %s1514
          %1517 = dma.vmem_to_hbm [thread:$0]  %s1513, 128, %s1515, %s1499
        $region44: #{tpu_custom_call.1} parent=31 // pred_fallthru
          _
      $region32: #{tpu_custom_call.1} parent=5 // pred_fallthru
        _
      %p1518 = scmp.le.s32.totalorder 2, %s17
      // Predicated region
      $region45: #{tpu_custom_call.1} parent=5 // pred_check
        %p1519 = pneg %p1518
      $region46: #{tpu_custom_call.1} parent=5 // pred_check_branch
        %1521 = sbr.rel (%p1519) target = $region48
      $region47: #{tpu_custom_call.1} parent=5 // pred_region
        %s1522 = ssub.s32 %s17, 2
        // Predicated region
        $region49: #{tpu_custom_call.1} parent=47 // pred_check
          %p1523 = pneg %p114
        $region50: #{tpu_custom_call.1} parent=47 // pred_check_branch
          %1525 = sbr.rel (%p1523) target = $region52
        $region51: #{tpu_custom_call.1} parent=47 // pred_region
          %s1526 = sand.u32 %s99, 1
          %s1527 = scalar_lea.sflag [#allocation7], %s1526
          %s1528 = sand.u32 %s99, 1
          %s1529 = smul.addr %s1528, 8
          %s1530 = scalar_lea.vmem [#allocation10], %s1529
          %1532 = dma.done %s1527, 128
        $region52: #{tpu_custom_call.1} parent=47 // pred_fallthru
          _
      $region48: #{tpu_custom_call.1} parent=5 // pred_fallthru
        _
    $region6: #{tpu_custom_call.1} parent=1 // loop_footer
      %s21 = sadd.s32 1, %s17
    $region7: #{tpu_custom_call.1} parent=1 // loop_footer_branch
      %16 = sbr.rel target = $region3
    $region8: #{tpu_custom_call.1} parent=1 // loop_exit
      _
    %1533 = vsyncpa [#allocation6], 1
    %s1534 = scalar_lea.sflag [#allocation6], 1
    %1535 = vsyncpa %s1534, 1
    %1536 = vsyncpa [#allocation7], 1
    %s1537 = scalar_lea.sflag [#allocation7], 1
    %1538 = vsyncpa %s1537, 1
    %1539 = vsyncpa [#allocation8], 1
    %s1540 = scalar_lea.sflag [#allocation8], 1
    %1541 = vsyncpa %s1540, 1

</llo_original>
